<compile_context>
chip_gen: v7x
topology: tpu7x:2x2x1
jax: 0.10.0
libtpu: 0.0.40
codegen_flags: <defaults>
</compile_context>

<pallas_src>
import jax
import jax.numpy as jnp
from jax import lax
from jax.experimental import pallas as pl
from jax.experimental.pallas import tpu as pltpu

# ----------------------------------------------------------------------------
# Small shapes consistent with the module (scaled down from
# input_size=134, hidden_size=128 defaults).
# ----------------------------------------------------------------------------
INPUT_SIZE = 16
HIDDEN = 32
NUM_LAYERS = 2
NUM_CLASSES = 2
BATCH = 2
SEQ = 8
BN_EPS = 1e-5
BP = 8           # batch padded to the sublane quantum
C_PAD = 128      # class dim padded to one full lane width (dense output store)


# ----------------------------------------------------------------------------
# Single fused Pallas kernel: bi-LSTM x2 + mean-pool + MLP head.
# ----------------------------------------------------------------------------
def _fused_forward_kernel(x_ref,                                   # (T*BP, D) time-major
                          w_ih0_ref, w_hh0_ref, b0_ref,            # layer 0: (D,8H),(2,H,4H),(1,8H)
                          w_ih1f_ref, w_ih1b_ref, w_hh1_ref, b1_ref,  # layer 1
                          w1f_ref, w1b_ref, bfc1_ref,              # fc1 (split halves)
                          gamma_ref, beta_ref, rmean_ref, rvar_ref,  # BatchNorm (eval)
                          w2_ref, bfc2_ref,                        # fc2 (lane-padded)
                          temp_ref,                                # temperature (SMEM)
                          out_ref,                                 # (BP, C_PAD)
                          hf_scr, hb_scr):                         # (T*BP, H) each
    T, Bp, H = SEQ, BP, HIDDEN
    G = 4 * H

    def cell(gx_t, h, c, w_hh):
        # gate columns pre-permuted to (i, f, o, g): one sigmoid slab + one tanh slab.
        gates = gx_t + jnp.dot(h, w_hh, preferred_element_type=jnp.float32)
        sig = jax.nn.sigmoid(gates[:, :3 * H])
        i_g = sig[:, 0 * H:1 * H]
        f_g = sig[:, 1 * H:2 * H]
        o_g = sig[:, 2 * H:3 * H]
        g_g = jnp.tanh(gates[:, 3 * H:4 * H])
        c_new = f_g * c + i_g * g_g
        h_new = o_g * jnp.tanh(c_new)
        return h_new, c_new

    zeros = jnp.zeros((Bp, H), jnp.float32)

    # ---------------- layer 0 (bidirectional, directions interleaved) ----------------
    x2d = x_ref[...]                                               # (T*Bp, D)
    # one input-projection matmul for BOTH directions (fwd cols 0:4H, bwd cols 4H:8H)
    gx_all = jnp.dot(x2d, w_ih0_ref[...], preferred_element_type=jnp.float32) + b0_ref[...]
    gx_f = gx_all[:, :G]                                           # 128-lane aligned slices
    gx_b = gx_all[:, G:]
    whh_f = w_hh0_ref[0]
    whh_b = w_hh0_ref[1]

    h_f, c_f, h_b, c_b = zeros, zeros, zeros, zeros
    for t in range(T):                                             # T static -> fully unrolled
        rf = slice(t * Bp, (t + 1) * Bp)
        rb = slice((T - 1 - t) * Bp, (T - t) * Bp)                 # reversed index, no copy
        h_f, c_f = cell(gx_f[rf], h_f, c_f, whh_f)
        h_b, c_b = cell(gx_b[rb], h_b, c_b, whh_b)
        hf_scr[rf, :] = h_f
        hb_scr[rb, :] = h_b

    # ---------------- layer 1 (bidirectional) + fused mean-pool ----------------------
    # split-weight projection: no [h_fwd ; h_bwd] concat is ever materialized.
    gx_all = (jnp.dot(hf_scr[...], w_ih1f_ref[...], preferred_element_type=jnp.float32)
              + jnp.dot(hb_scr[...], w_ih1b_ref[...], preferred_element_type=jnp.float32)
              + b1_ref[...])
    gx_f = gx_all[:, :G]
    gx_b = gx_all[:, G:]
    whh_f = w_hh1_ref[0]
    whh_b = w_hh1_ref[1]

    h_f, c_f, h_b, c_b = zeros, zeros, zeros, zeros
    sum_f, sum_b = zeros, zeros
    for t in range(T):
        rf = slice(t * Bp, (t + 1) * Bp)
        rb = slice((T - 1 - t) * Bp, (T - t) * Bp)
        h_f, c_f = cell(gx_f[rf], h_f, c_f, whh_f)
        h_b, c_b = cell(gx_b[rb], h_b, c_b, whh_b)
        sum_f = sum_f + h_f                                        # time-mean accumulation
        sum_b = sum_b + h_b

    inv_T = 1.0 / T
    pooled_f = sum_f * inv_T                                       # (Bp, H)
    pooled_b = sum_b * inv_T

    # ---------------- head: fc1 -> ReLU -> BN(eval) -> fc2 -> /temperature -----------
    # TODO(synk): train-mode batch statistics and dropout masking are not reproduced
    #             (inference semantics: dropout = identity, BN = running stats).
    z = (jnp.dot(pooled_f, w1f_ref[...], preferred_element_type=jnp.float32)
         + jnp.dot(pooled_b, w1b_ref[...], preferred_element_type=jnp.float32)
         + bfc1_ref[...])
    z = jnp.maximum(z, 0.0)
    z = (z - rmean_ref[...]) * lax.rsqrt(rvar_ref[...] + BN_EPS)
    z = z * gamma_ref[...] + beta_ref[...]
    logits = jnp.dot(z, w2_ref[...], preferred_element_type=jnp.float32) + bfc2_ref[...]
    temp = jnp.maximum(temp_ref[0], 1e-6)                          # temperature.clamp(min=1e-6)
    out_ref[...] = logits / temp                                   # dense (8,128) store


def _full_spec(shape):
    nd = len(shape)
    return pl.BlockSpec(shape, lambda i, _nd=nd: (0,) * _nd)


@jax.jit
def af_prediction_forward(x_btd, params):
    """x_btd: (B, T, INPUT_SIZE) float32 -> logits (B, NUM_CLASSES)."""
    B, T, D = x_btd.shape
    assert T == SEQ and D == INPUT_SIZE
    H = HIDDEN

    # pad batch to the 8-sublane quantum and flatten time-major to (T*BP, D)
    x_pad = jnp.zeros((BP, T, D), jnp.float32).at[:B].set(x_btd)
    x2d = jnp.transpose(x_pad, (1, 0, 2)).reshape(T * BP, D)

    logits = pl.pallas_call(
        _fused_forward_kernel,
        out_shape=jax.ShapeDtypeStruct((BP, C_PAD), jnp.float32),
        grid_spec=pltpu.PrefetchScalarGridSpec(
            num_scalar_prefetch=0,
            grid=(1,),
            in_specs=[
                _full_spec((T * BP, D)),            # x
                _full_spec((D, 8 * H)),             # w_ih layer 0 (fwd||bwd)
                _full_spec((2, H, 4 * H)),          # w_hh layer 0
                _full_spec((1, 8 * H)),             # b    layer 0
                _full_spec((H, 8 * H)),             # w_ih layer 1, rows hitting fwd hidden
                _full_spec((H, 8 * H)),             # w_ih layer 1, rows hitting bwd hidden
                _full_spec((2, H, 4 * H)),          # w_hh layer 1
                _full_spec((1, 8 * H)),             # b    layer 1
                _full_spec((H, H)),                 # fc1 w (fwd half)
                _full_spec((H, H)),                 # fc1 w (bwd half)
                _full_spec((1, H)),                 # fc1 b
                _full_spec((1, H)),                 # bn gamma
                _full_spec((1, H)),                 # bn beta
                _full_spec((1, H)),                 # bn running mean
                _full_spec((1, H)),                 # bn running var
                _full_spec((H, C_PAD)),             # fc2 w (lane-padded)
                _full_spec((1, C_PAD)),             # fc2 b (lane-padded)
                pl.BlockSpec(memory_space=pltpu.MemorySpace.SMEM),  # temperature
            ],
            out_specs=_full_spec((BP, C_PAD)),
            scratch_shapes=[
                pltpu.VMEM((T * BP, H), jnp.float32),   # layer-0 fwd outputs
                pltpu.VMEM((T * BP, H), jnp.float32),   # layer-0 bwd outputs
            ],
        ),
        compiler_params=pltpu.CompilerParams(
            dimension_semantics=("arbitrary",)),
    )(x2d,
      params["w_ih0"], params["w_hh0"], params["b0"],
      params["w_ih1_f"], params["w_ih1_b"], params["w_hh1"], params["b1"],
      params["fc1_wf"], params["fc1_wb"], params["fc1_b"],
      params["bn_gamma"], params["bn_beta"], params["bn_rmean"], params["bn_rvar"],
      params["fc2_w"], params["fc2_b"], params["temperature"])
    return logits[:B, :NUM_CLASSES]


# ----------------------------------------------------------------------------
# Parameters (deterministic synthetic init mirroring the PyTorch module).
# Gate columns are permuted (i,f,g,o) -> (i,f,o,g) consistently across
# w_ih, w_hh and the folded bias, matching the kernel's slab layout.
# Forward/backward direction weights are stacked column-wise so one matmul
# projects both directions' gates.
# ----------------------------------------------------------------------------
def init_params(key):
    H = HIDDEN
    perm = jnp.concatenate([
        jnp.arange(0 * H, 1 * H),   # i
        jnp.arange(1 * H, 2 * H),   # f
        jnp.arange(3 * H, 4 * H),   # o
        jnp.arange(2 * H, 3 * H),   # g
    ])
    bound = 1.0 / (H ** 0.5)        # PyTorch default LSTM init (untouched by _init_weights)
    params = {}

    for layer in range(NUM_LAYERS):
        d_in = INPUT_SIZE if layer == 0 else 2 * H
        w_ih_dirs, w_hh_dirs, b_dirs = [], [], []
        for _direction in range(2):           # forward, backward
            key, k1, k2, k3, k4 = jax.random.split(key, 5)
            w_ih = jax.random.uniform(k1, (4 * H, d_in), minval=-bound, maxval=bound,
                                      dtype=jnp.float32)
            w_hh = jax.random.uniform(k2, (4 * H, H), minval=-bound, maxval=bound,
                                      dtype=jnp.float32)
            b_ih = jax.random.uniform(k3, (4 * H,), minval=-bound, maxval=bound,
                                      dtype=jnp.float32)
            b_hh = jax.random.uniform(k4, (4 * H,), minval=-bound, maxval=bound,
                                      dtype=jnp.float32)
            w_ih_dirs.append(w_ih.T[:, perm])                       # (d_in, 4H)
            w_hh_dirs.append(w_hh.T[:, perm])                       # (H, 4H)
            b_dirs.append((b_ih + b_hh)[perm])                      # (4H,)

        params[f"w_hh{layer}"] = jnp.stack(w_hh_dirs)               # (2, H, 4H)
        params[f"b{layer}"] = jnp.concatenate(b_dirs)[None, :]      # (1, 8H)
        if layer == 0:
            params["w_ih0"] = jnp.concatenate(w_ih_dirs, axis=1)    # (D, 8H)
        else:
            # split rows: first H rows multiply fwd hidden, last H rows multiply bwd hidden
            params["w_ih1_f"] = jnp.concatenate([w[:H, :] for w in w_ih_dirs], axis=1)  # (H, 8H)
            params["w_ih1_b"] = jnp.concatenate([w[H:, :] for w in w_ih_dirs], axis=1)  # (H, 8H)

    # fc1 / fc2: xavier_normal weights, zero biases.
    key, k1, k2 = jax.random.split(key, 3)
    std1 = (2.0 / (2 * H + H)) ** 0.5
    std2 = (2.0 / (H + NUM_CLASSES)) ** 0.5
    fc1_wt = (std1 * jax.random.normal(k1, (H, 2 * H), jnp.float32)).T   # (2H, H)
    params["fc1_wf"] = fc1_wt[:H, :]                                     # (H, H)
    params["fc1_wb"] = fc1_wt[H:, :]                                     # (H, H)
    params["fc1_b"] = jnp.zeros((1, H), jnp.float32)
    fc2_wt = (std2 * jax.random.normal(k2, (NUM_CLASSES, H), jnp.float32)).T  # (H, C)
    params["fc2_w"] = jnp.zeros((H, C_PAD), jnp.float32).at[:, :NUM_CLASSES].set(fc2_wt)
    params["fc2_b"] = jnp.zeros((1, C_PAD), jnp.float32)

    # BatchNorm1d: weight=1, bias=0, running_mean=0, running_var=1.
    params["bn_gamma"] = jnp.ones((1, H), jnp.float32)
    params["bn_beta"] = jnp.zeros((1, H), jnp.float32)
    params["bn_rmean"] = jnp.zeros((1, H), jnp.float32)
    params["bn_rvar"] = jnp.ones((1, H), jnp.float32)

    # temperature parameter = ones(1).
    params["temperature"] = jnp.ones((1,), jnp.float32)
    return params


if __name__ == "__main__":
    key = jax.random.PRNGKey(0)
    key, xkey, pkey = jax.random.split(key, 3)
    x = jax.random.normal(xkey, (BATCH, SEQ, INPUT_SIZE), dtype=jnp.float32)
    params = init_params(pkey)

    logits = af_prediction_forward(x, params)
    logits = jax.block_until_ready(logits)

    assert logits.shape == (BATCH, NUM_CLASSES)
    assert bool(jnp.all(jnp.isfinite(logits)))
    print("KERNEL_OK")
</pallas_src>

<mosaic_0001>
module attributes {stable_mosaic.version = 11 : i64} {
  func.func @_fused_forward_kernel(%arg0: i32, %arg1: memref<64x16xf32, #tpu.memory_space<vmem>>, %arg2: memref<16x256xf32, #tpu.memory_space<vmem>>, %arg3: memref<2x32x128xf32, #tpu.memory_space<vmem>>, %arg4: memref<1x256xf32, #tpu.memory_space<vmem>>, %arg5: memref<32x256xf32, #tpu.memory_space<vmem>>, %arg6: memref<32x256xf32, #tpu.memory_space<vmem>>, %arg7: memref<2x32x128xf32, #tpu.memory_space<vmem>>, %arg8: memref<1x256xf32, #tpu.memory_space<vmem>>, %arg9: memref<32x32xf32, #tpu.memory_space<vmem>>, %arg10: memref<32x32xf32, #tpu.memory_space<vmem>>, %arg11: memref<1x32xf32, #tpu.memory_space<vmem>>, %arg12: memref<1x32xf32, #tpu.memory_space<vmem>>, %arg13: memref<1x32xf32, #tpu.memory_space<vmem>>, %arg14: memref<1x32xf32, #tpu.memory_space<vmem>>, %arg15: memref<1x32xf32, #tpu.memory_space<vmem>>, %arg16: memref<32x128xf32, #tpu.memory_space<vmem>>, %arg17: memref<1x128xf32, #tpu.memory_space<vmem>>, %arg18: memref<1xf32, #tpu.memory_space<smem>>, %arg19: memref<8x128xf32, #tpu.memory_space<vmem>>, %arg20: memref<64x32xf32, #tpu.memory_space<vmem>>, %arg21: memref<64x32xf32, #tpu.memory_space<vmem>>) attributes {dimension_semantics = [#tpu.dimension_semantics<arbitrary>], iteration_bounds = array<i64: 1>, scalar_prefetch = 0 : i64, scratch_operands = 2 : i64, tpu.core_type = #tpu.core_type<tc>, window_params = [{pipeline_mode = #tpu.pipeline_mode<synchronous>, transform_indices = @transform_0, window_bounds = array<i64: 64, 16>}, {pipeline_mode = #tpu.pipeline_mode<synchronous>, transform_indices = @transform_1, window_bounds = array<i64: 16, 256>}, {pipeline_mode = #tpu.pipeline_mode<synchronous>, transform_indices = @transform_2, window_bounds = array<i64: 2, 32, 128>}, {pipeline_mode = #tpu.pipeline_mode<synchronous>, transform_indices = @transform_3, window_bounds = array<i64: 1, 256>}, {pipeline_mode = #tpu.pipeline_mode<synchronous>, transform_indices = @transform_4, window_bounds = array<i64: 32, 256>}, {pipeline_mode = #tpu.pipeline_mode<synchronous>, transform_indices = @transform_5, window_bounds = array<i64: 32, 256>}, {pipeline_mode = #tpu.pipeline_mode<synchronous>, transform_indices = @transform_6, window_bounds = array<i64: 2, 32, 128>}, {pipeline_mode = #tpu.pipeline_mode<synchronous>, transform_indices = @transform_7, window_bounds = array<i64: 1, 256>}, {pipeline_mode = #tpu.pipeline_mode<synchronous>, transform_indices = @transform_8, window_bounds = array<i64: 32, 32>}, {pipeline_mode = #tpu.pipeline_mode<synchronous>, transform_indices = @transform_9, window_bounds = array<i64: 32, 32>}, {pipeline_mode = #tpu.pipeline_mode<synchronous>, transform_indices = @transform_10, window_bounds = array<i64: 1, 32>}, {pipeline_mode = #tpu.pipeline_mode<synchronous>, transform_indices = @transform_11, window_bounds = array<i64: 1, 32>}, {pipeline_mode = #tpu.pipeline_mode<synchronous>, transform_indices = @transform_12, window_bounds = array<i64: 1, 32>}, {pipeline_mode = #tpu.pipeline_mode<synchronous>, transform_indices = @transform_13, window_bounds = array<i64: 1, 32>}, {pipeline_mode = #tpu.pipeline_mode<synchronous>, transform_indices = @transform_14, window_bounds = array<i64: 1, 32>}, {pipeline_mode = #tpu.pipeline_mode<synchronous>, transform_indices = @transform_15, window_bounds = array<i64: 32, 128>}, {pipeline_mode = #tpu.pipeline_mode<synchronous>, transform_indices = @transform_16, window_bounds = array<i64: 1, 128>}, {transform_indices = @transform_17, window_bounds = array<i64: 1>}, {pipeline_mode = #tpu.pipeline_mode<synchronous>, transform_indices = @transform_18, window_bounds = array<i64: 8, 128>}]} {
    %cst = arith.constant 0.000000e+00 : f32
    %0 = vector.broadcast %cst : f32 to vector<8x32xf32>
    %c0 = arith.constant 0 : index
    %c0_0 = arith.constant 0 : index
    %1 = vector.load %arg1[%c0, %c0_0] : memref<64x16xf32, #tpu.memory_space<vmem>>, vector<64x16xf32>
    %c0_1 = arith.constant 0 : index
    %c0_2 = arith.constant 0 : index
    %2 = vector.load %arg2[%c0_1, %c0_2] : memref<16x256xf32, #tpu.memory_space<vmem>>, vector<16x256xf32>
    %cst_3 = arith.constant dense<0.000000e+00> : vector<64x256xf32>
    %3 = tpu.matmul %1, %2, %cst_3 {dimension_numbers = #tpu.dot_dimension_numbers<[1], [0], [0], [1], [0, 0, 1, 1], [], []>} : vector<64x16xf32>, vector<16x256xf32>, vector<64x256xf32> -> vector<64x256xf32>
    %c0_4 = arith.constant 0 : index
    %c0_5 = arith.constant 0 : index
    %4 = vector.load %arg4[%c0_4, %c0_5] : memref<1x256xf32, #tpu.memory_space<vmem>>, vector<1x256xf32>
    %5 = vector.broadcast %4 : vector<1x256xf32> to vector<64x256xf32>
    %6 = arith.addf %3, %5 : vector<64x256xf32>
    %7 = vector.extract_strided_slice %6 {offsets = [0, 0], sizes = [64, 128], strides = [1, 1]} : vector<64x256xf32> to vector<64x128xf32>
    %8 = vector.extract_strided_slice %6 {offsets = [0, 128], sizes = [64, 128], strides = [1, 1]} : vector<64x256xf32> to vector<64x128xf32>
    %c0_6 = arith.constant 0 : index
    %c0_7 = arith.constant 0 : index
    %c0_8 = arith.constant 0 : index
    %9 = vector.load %arg3[%c0_6, %c0_7, %c0_8] : memref<2x32x128xf32, #tpu.memory_space<vmem>>, vector<1x32x128xf32>
    %10 = vector.shape_cast %9 : vector<1x32x128xf32> to vector<32x128xf32>
    %c1 = arith.constant 1 : index
    %c0_9 = arith.constant 0 : index
    %c0_10 = arith.constant 0 : index
    %11 = vector.load %arg3[%c1, %c0_9, %c0_10] : memref<2x32x128xf32, #tpu.memory_space<vmem>>, vector<1x32x128xf32>
    %12 = vector.shape_cast %11 : vector<1x32x128xf32> to vector<32x128xf32>
    %13 = vector.extract_strided_slice %7 {offsets = [0, 0], sizes = [8, 128], strides = [1, 1]} : vector<64x128xf32> to vector<8x128xf32>
    %cst_11 = arith.constant dense<0.000000e+00> : vector<8x128xf32>
    %14 = tpu.matmul %0, %10, %cst_11 {dimension_numbers = #tpu.dot_dimension_numbers<[1], [0], [0], [1], [0, 0, 1, 1], [], []>} : vector<8x32xf32>, vector<32x128xf32>, vector<8x128xf32> -> vector<8x128xf32>
    %15 = arith.addf %13, %14 : vector<8x128xf32>
    %16 = vector.extract_strided_slice %15 {offsets = [0, 0], sizes = [8, 96], strides = [1, 1]} : vector<8x128xf32> to vector<8x96xf32>
    %17 = arith.negf %16 : vector<8x96xf32>
    %18 = math.exp %17 : vector<8x96xf32>
    %cst_12 = arith.constant 1.000000e+00 : f32
    %19 = vector.broadcast %cst_12 : f32 to vector<8x96xf32>
    %20 = arith.addf %19, %18 : vector<8x96xf32>
    %21 = arith.divf %19, %20 : vector<8x96xf32>
    %22 = vector.extract_strided_slice %21 {offsets = [0, 0], sizes = [8, 32], strides = [1, 1]} : vector<8x96xf32> to vector<8x32xf32>
    %23 = vector.extract_strided_slice %21 {offsets = [0, 32], sizes = [8, 32], strides = [1, 1]} : vector<8x96xf32> to vector<8x32xf32>
    %24 = vector.extract_strided_slice %21 {offsets = [0, 64], sizes = [8, 32], strides = [1, 1]} : vector<8x96xf32> to vector<8x32xf32>
    %25 = vector.extract_strided_slice %15 {offsets = [0, 96], sizes = [8, 32], strides = [1, 1]} : vector<8x128xf32> to vector<8x32xf32>
    %26 = math.tanh %25 : vector<8x32xf32>
    %27 = arith.mulf %23, %0 : vector<8x32xf32>
    %28 = arith.mulf %22, %26 : vector<8x32xf32>
    %29 = arith.addf %27, %28 : vector<8x32xf32>
    %30 = math.tanh %29 : vector<8x32xf32>
    %31 = arith.mulf %24, %30 : vector<8x32xf32>
    %32 = vector.extract_strided_slice %8 {offsets = [56, 0], sizes = [8, 128], strides = [1, 1]} : vector<64x128xf32> to vector<8x128xf32>
    %cst_13 = arith.constant dense<0.000000e+00> : vector<8x128xf32>
    %33 = tpu.matmul %0, %12, %cst_13 {dimension_numbers = #tpu.dot_dimension_numbers<[1], [0], [0], [1], [0, 0, 1, 1], [], []>} : vector<8x32xf32>, vector<32x128xf32>, vector<8x128xf32> -> vector<8x128xf32>
    %34 = arith.addf %32, %33 : vector<8x128xf32>
    %35 = vector.extract_strided_slice %34 {offsets = [0, 0], sizes = [8, 96], strides = [1, 1]} : vector<8x128xf32> to vector<8x96xf32>
    %36 = arith.negf %35 : vector<8x96xf32>
    %37 = math.exp %36 : vector<8x96xf32>
    %cst_14 = arith.constant 1.000000e+00 : f32
    %38 = vector.broadcast %cst_14 : f32 to vector<8x96xf32>
    %39 = arith.addf %38, %37 : vector<8x96xf32>
    %40 = arith.divf %38, %39 : vector<8x96xf32>
    %41 = vector.extract_strided_slice %40 {offsets = [0, 0], sizes = [8, 32], strides = [1, 1]} : vector<8x96xf32> to vector<8x32xf32>
    %42 = vector.extract_strided_slice %40 {offsets = [0, 32], sizes = [8, 32], strides = [1, 1]} : vector<8x96xf32> to vector<8x32xf32>
    %43 = vector.extract_strided_slice %40 {offsets = [0, 64], sizes = [8, 32], strides = [1, 1]} : vector<8x96xf32> to vector<8x32xf32>
    %44 = vector.extract_strided_slice %34 {offsets = [0, 96], sizes = [8, 32], strides = [1, 1]} : vector<8x128xf32> to vector<8x32xf32>
    %45 = math.tanh %44 : vector<8x32xf32>
    %46 = arith.mulf %42, %0 : vector<8x32xf32>
    %47 = arith.mulf %41, %45 : vector<8x32xf32>
    %48 = arith.addf %46, %47 : vector<8x32xf32>
    %49 = math.tanh %48 : vector<8x32xf32>
    %50 = arith.mulf %43, %49 : vector<8x32xf32>
    %c0_15 = arith.constant 0 : index
    %c0_16 = arith.constant 0 : index
    %51 = vector.load %arg20[%c0_15, %c0_16] : memref<64x32xf32, #tpu.memory_space<vmem>>, vector<8x32xf32>
    tpu.vector_store %arg20[%c0_15, %c0_16], %31 {strides = array<i32>} : memref<64x32xf32, #tpu.memory_space<vmem>>, vector<8x32xf32>,
    %c56 = arith.constant 56 : index
    %c0_17 = arith.constant 0 : index
    %52 = vector.load %arg21[%c56, %c0_17] : memref<64x32xf32, #tpu.memory_space<vmem>>, vector<8x32xf32>
    tpu.vector_store %arg21[%c56, %c0_17], %50 {strides = array<i32>} : memref<64x32xf32, #tpu.memory_space<vmem>>, vector<8x32xf32>,
    %53 = vector.extract_strided_slice %7 {offsets = [8, 0], sizes = [8, 128], strides = [1, 1]} : vector<64x128xf32> to vector<8x128xf32>
    %cst_18 = arith.constant dense<0.000000e+00> : vector<8x128xf32>
    %54 = tpu.matmul %31, %10, %cst_18 {dimension_numbers = #tpu.dot_dimension_numbers<[1], [0], [0], [1], [0, 0, 1, 1], [], []>} : vector<8x32xf32>, vector<32x128xf32>, vector<8x128xf32> -> vector<8x128xf32>
    %55 = arith.addf %53, %54 : vector<8x128xf32>
    %56 = vector.extract_strided_slice %55 {offsets = [0, 0], sizes = [8, 96], strides = [1, 1]} : vector<8x128xf32> to vector<8x96xf32>
    %57 = arith.negf %56 : vector<8x96xf32>
    %58 = math.exp %57 : vector<8x96xf32>
    %cst_19 = arith.constant 1.000000e+00 : f32
    %59 = vector.broadcast %cst_19 : f32 to vector<8x96xf32>
    %60 = arith.addf %59, %58 : vector<8x96xf32>
    %61 = arith.divf %59, %60 : vector<8x96xf32>
    %62 = vector.extract_strided_slice %61 {offsets = [0, 0], sizes = [8, 32], strides = [1, 1]} : vector<8x96xf32> to vector<8x32xf32>
    %63 = vector.extract_strided_slice %61 {offsets = [0, 32], sizes = [8, 32], strides = [1, 1]} : vector<8x96xf32> to vector<8x32xf32>
    %64 = vector.extract_strided_slice %61 {offsets = [0, 64], sizes = [8, 32], strides = [1, 1]} : vector<8x96xf32> to vector<8x32xf32>
    %65 = vector.extract_strided_slice %55 {offsets = [0, 96], sizes = [8, 32], strides = [1, 1]} : vector<8x128xf32> to vector<8x32xf32>
    %66 = math.tanh %65 : vector<8x32xf32>
    %67 = arith.mulf %63, %29 : vector<8x32xf32>
    %68 = arith.mulf %62, %66 : vector<8x32xf32>
    %69 = arith.addf %67, %68 : vector<8x32xf32>
    %70 = math.tanh %69 : vector<8x32xf32>
    %71 = arith.mulf %64, %70 : vector<8x32xf32>
    %72 = vector.extract_strided_slice %8 {offsets = [48, 0], sizes = [8, 128], strides = [1, 1]} : vector<64x128xf32> to vector<8x128xf32>
    %cst_20 = arith.constant dense<0.000000e+00> : vector<8x128xf32>
    %73 = tpu.matmul %50, %12, %cst_20 {dimension_numbers = #tpu.dot_dimension_numbers<[1], [0], [0], [1], [0, 0, 1, 1], [], []>} : vector<8x32xf32>, vector<32x128xf32>, vector<8x128xf32> -> vector<8x128xf32>
    %74 = arith.addf %72, %73 : vector<8x128xf32>
    %75 = vector.extract_strided_slice %74 {offsets = [0, 0], sizes = [8, 96], strides = [1, 1]} : vector<8x128xf32> to vector<8x96xf32>
    %76 = arith.negf %75 : vector<8x96xf32>
    %77 = math.exp %76 : vector<8x96xf32>
    %cst_21 = arith.constant 1.000000e+00 : f32
    %78 = vector.broadcast %cst_21 : f32 to vector<8x96xf32>
    %79 = arith.addf %78, %77 : vector<8x96xf32>
    %80 = arith.divf %78, %79 : vector<8x96xf32>
    %81 = vector.extract_strided_slice %80 {offsets = [0, 0], sizes = [8, 32], strides = [1, 1]} : vector<8x96xf32> to vector<8x32xf32>
    %82 = vector.extract_strided_slice %80 {offsets = [0, 32], sizes = [8, 32], strides = [1, 1]} : vector<8x96xf32> to vector<8x32xf32>
    %83 = vector.extract_strided_slice %80 {offsets = [0, 64], sizes = [8, 32], strides = [1, 1]} : vector<8x96xf32> to vector<8x32xf32>
    %84 = vector.extract_strided_slice %74 {offsets = [0, 96], sizes = [8, 32], strides = [1, 1]} : vector<8x128xf32> to vector<8x32xf32>
    %85 = math.tanh %84 : vector<8x32xf32>
    %86 = arith.mulf %82, %48 : vector<8x32xf32>
    %87 = arith.mulf %81, %85 : vector<8x32xf32>
    %88 = arith.addf %86, %87 : vector<8x32xf32>
    %89 = math.tanh %88 : vector<8x32xf32>
    %90 = arith.mulf %83, %89 : vector<8x32xf32>
    %c8 = arith.constant 8 : index
    %c0_22 = arith.constant 0 : index
    %91 = vector.load %arg20[%c8, %c0_22] : memref<64x32xf32, #tpu.memory_space<vmem>>, vector<8x32xf32>
    tpu.vector_store %arg20[%c8, %c0_22], %71 {strides = array<i32>} : memref<64x32xf32, #tpu.memory_space<vmem>>, vector<8x32xf32>,
    %c48 = arith.constant 48 : index
    %c0_23 = arith.constant 0 : index
    %92 = vector.load %arg21[%c48, %c0_23] : memref<64x32xf32, #tpu.memory_space<vmem>>, vector<8x32xf32>
    tpu.vector_store %arg21[%c48, %c0_23], %90 {strides = array<i32>} : memref<64x32xf32, #tpu.memory_space<vmem>>, vector<8x32xf32>,
    %93 = vector.extract_strided_slice %7 {offsets = [16, 0], sizes = [8, 128], strides = [1, 1]} : vector<64x128xf32> to vector<8x128xf32>
    %cst_24 = arith.constant dense<0.000000e+00> : vector<8x128xf32>
    %94 = tpu.matmul %71, %10, %cst_24 {dimension_numbers = #tpu.dot_dimension_numbers<[1], [0], [0], [1], [0, 0, 1, 1], [], []>} : vector<8x32xf32>, vector<32x128xf32>, vector<8x128xf32> -> vector<8x128xf32>
    %95 = arith.addf %93, %94 : vector<8x128xf32>
    %96 = vector.extract_strided_slice %95 {offsets = [0, 0], sizes = [8, 96], strides = [1, 1]} : vector<8x128xf32> to vector<8x96xf32>
    %97 = arith.negf %96 : vector<8x96xf32>
    %98 = math.exp %97 : vector<8x96xf32>
    %cst_25 = arith.constant 1.000000e+00 : f32
    %99 = vector.broadcast %cst_25 : f32 to vector<8x96xf32>
    %100 = arith.addf %99, %98 : vector<8x96xf32>
    %101 = arith.divf %99, %100 : vector<8x96xf32>
    %102 = vector.extract_strided_slice %101 {offsets = [0, 0], sizes = [8, 32], strides = [1, 1]} : vector<8x96xf32> to vector<8x32xf32>
    %103 = vector.extract_strided_slice %101 {offsets = [0, 32], sizes = [8, 32], strides = [1, 1]} : vector<8x96xf32> to vector<8x32xf32>
    %104 = vector.extract_strided_slice %101 {offsets = [0, 64], sizes = [8, 32], strides = [1, 1]} : vector<8x96xf32> to vector<8x32xf32>
    %105 = vector.extract_strided_slice %95 {offsets = [0, 96], sizes = [8, 32], strides = [1, 1]} : vector<8x128xf32> to vector<8x32xf32>
    %106 = math.tanh %105 : vector<8x32xf32>
    %107 = arith.mulf %103, %69 : vector<8x32xf32>
    %108 = arith.mulf %102, %106 : vector<8x32xf32>
    %109 = arith.addf %107, %108 : vector<8x32xf32>
    %110 = math.tanh %109 : vector<8x32xf32>
    %111 = arith.mulf %104, %110 : vector<8x32xf32>
    %112 = vector.extract_strided_slice %8 {offsets = [40, 0], sizes = [8, 128], strides = [1, 1]} : vector<64x128xf32> to vector<8x128xf32>
    %cst_26 = arith.constant dense<0.000000e+00> : vector<8x128xf32>
    %113 = tpu.matmul %90, %12, %cst_26 {dimension_numbers = #tpu.dot_dimension_numbers<[1], [0], [0], [1], [0, 0, 1, 1], [], []>} : vector<8x32xf32>, vector<32x128xf32>, vector<8x128xf32> -> vector<8x128xf32>
    %114 = arith.addf %112, %113 : vector<8x128xf32>
    %115 = vector.extract_strided_slice %114 {offsets = [0, 0], sizes = [8, 96], strides = [1, 1]} : vector<8x128xf32> to vector<8x96xf32>
    %116 = arith.negf %115 : vector<8x96xf32>
    %117 = math.exp %116 : vector<8x96xf32>
    %cst_27 = arith.constant 1.000000e+00 : f32
    %118 = vector.broadcast %cst_27 : f32 to vector<8x96xf32>
    %119 = arith.addf %118, %117 : vector<8x96xf32>
    %120 = arith.divf %118, %119 : vector<8x96xf32>
    %121 = vector.extract_strided_slice %120 {offsets = [0, 0], sizes = [8, 32], strides = [1, 1]} : vector<8x96xf32> to vector<8x32xf32>
    %122 = vector.extract_strided_slice %120 {offsets = [0, 32], sizes = [8, 32], strides = [1, 1]} : vector<8x96xf32> to vector<8x32xf32>
    %123 = vector.extract_strided_slice %120 {offsets = [0, 64], sizes = [8, 32], strides = [1, 1]} : vector<8x96xf32> to vector<8x32xf32>
    %124 = vector.extract_strided_slice %114 {offsets = [0, 96], sizes = [8, 32], strides = [1, 1]} : vector<8x128xf32> to vector<8x32xf32>
    %125 = math.tanh %124 : vector<8x32xf32>
    %126 = arith.mulf %122, %88 : vector<8x32xf32>
    %127 = arith.mulf %121, %125 : vector<8x32xf32>
    %128 = arith.addf %126, %127 : vector<8x32xf32>
    %129 = math.tanh %128 : vector<8x32xf32>
    %130 = arith.mulf %123, %129 : vector<8x32xf32>
    %c16 = arith.constant 16 : index
    %c0_28 = arith.constant 0 : index
    %131 = vector.load %arg20[%c16, %c0_28] : memref<64x32xf32, #tpu.memory_space<vmem>>, vector<8x32xf32>
    tpu.vector_store %arg20[%c16, %c0_28], %111 {strides = array<i32>} : memref<64x32xf32, #tpu.memory_space<vmem>>, vector<8x32xf32>,
    %c40 = arith.constant 40 : index
    %c0_29 = arith.constant 0 : index
    %132 = vector.load %arg21[%c40, %c0_29] : memref<64x32xf32, #tpu.memory_space<vmem>>, vector<8x32xf32>
    tpu.vector_store %arg21[%c40, %c0_29], %130 {strides = array<i32>} : memref<64x32xf32, #tpu.memory_space<vmem>>, vector<8x32xf32>,
    %133 = vector.extract_strided_slice %7 {offsets = [24, 0], sizes = [8, 128], strides = [1, 1]} : vector<64x128xf32> to vector<8x128xf32>
    %cst_30 = arith.constant dense<0.000000e+00> : vector<8x128xf32>
    %134 = tpu.matmul %111, %10, %cst_30 {dimension_numbers = #tpu.dot_dimension_numbers<[1], [0], [0], [1], [0, 0, 1, 1], [], []>} : vector<8x32xf32>, vector<32x128xf32>, vector<8x128xf32> -> vector<8x128xf32>
    %135 = arith.addf %133, %134 : vector<8x128xf32>
    %136 = vector.extract_strided_slice %135 {offsets = [0, 0], sizes = [8, 96], strides = [1, 1]} : vector<8x128xf32> to vector<8x96xf32>
    %137 = arith.negf %136 : vector<8x96xf32>
    %138 = math.exp %137 : vector<8x96xf32>
    %cst_31 = arith.constant 1.000000e+00 : f32
    %139 = vector.broadcast %cst_31 : f32 to vector<8x96xf32>
    %140 = arith.addf %139, %138 : vector<8x96xf32>
    %141 = arith.divf %139, %140 : vector<8x96xf32>
    %142 = vector.extract_strided_slice %141 {offsets = [0, 0], sizes = [8, 32], strides = [1, 1]} : vector<8x96xf32> to vector<8x32xf32>
    %143 = vector.extract_strided_slice %141 {offsets = [0, 32], sizes = [8, 32], strides = [1, 1]} : vector<8x96xf32> to vector<8x32xf32>
    %144 = vector.extract_strided_slice %141 {offsets = [0, 64], sizes = [8, 32], strides = [1, 1]} : vector<8x96xf32> to vector<8x32xf32>
    %145 = vector.extract_strided_slice %135 {offsets = [0, 96], sizes = [8, 32], strides = [1, 1]} : vector<8x128xf32> to vector<8x32xf32>
    %146 = math.tanh %145 : vector<8x32xf32>
    %147 = arith.mulf %143, %109 : vector<8x32xf32>
    %148 = arith.mulf %142, %146 : vector<8x32xf32>
    %149 = arith.addf %147, %148 : vector<8x32xf32>
    %150 = math.tanh %149 : vector<8x32xf32>
    %151 = arith.mulf %144, %150 : vector<8x32xf32>
    %152 = vector.extract_strided_slice %8 {offsets = [32, 0], sizes = [8, 128], strides = [1, 1]} : vector<64x128xf32> to vector<8x128xf32>
    %cst_32 = arith.constant dense<0.000000e+00> : vector<8x128xf32>
    %153 = tpu.matmul %130, %12, %cst_32 {dimension_numbers = #tpu.dot_dimension_numbers<[1], [0], [0], [1], [0, 0, 1, 1], [], []>} : vector<8x32xf32>, vector<32x128xf32>, vector<8x128xf32> -> vector<8x128xf32>
    %154 = arith.addf %152, %153 : vector<8x128xf32>
    %155 = vector.extract_strided_slice %154 {offsets = [0, 0], sizes = [8, 96], strides = [1, 1]} : vector<8x128xf32> to vector<8x96xf32>
    %156 = arith.negf %155 : vector<8x96xf32>
    %157 = math.exp %156 : vector<8x96xf32>
    %cst_33 = arith.constant 1.000000e+00 : f32
    %158 = vector.broadcast %cst_33 : f32 to vector<8x96xf32>
    %159 = arith.addf %158, %157 : vector<8x96xf32>
    %160 = arith.divf %158, %159 : vector<8x96xf32>
    %161 = vector.extract_strided_slice %160 {offsets = [0, 0], sizes = [8, 32], strides = [1, 1]} : vector<8x96xf32> to vector<8x32xf32>
    %162 = vector.extract_strided_slice %160 {offsets = [0, 32], sizes = [8, 32], strides = [1, 1]} : vector<8x96xf32> to vector<8x32xf32>
    %163 = vector.extract_strided_slice %160 {offsets = [0, 64], sizes = [8, 32], strides = [1, 1]} : vector<8x96xf32> to vector<8x32xf32>
    %164 = vector.extract_strided_slice %154 {offsets = [0, 96], sizes = [8, 32], strides = [1, 1]} : vector<8x128xf32> to vector<8x32xf32>
    %165 = math.tanh %164 : vector<8x32xf32>
    %166 = arith.mulf %162, %128 : vector<8x32xf32>
    %167 = arith.mulf %161, %165 : vector<8x32xf32>
    %168 = arith.addf %166, %167 : vector<8x32xf32>
    %169 = math.tanh %168 : vector<8x32xf32>
    %170 = arith.mulf %163, %169 : vector<8x32xf32>
    %c24 = arith.constant 24 : index
    %c0_34 = arith.constant 0 : index
    %171 = vector.load %arg20[%c24, %c0_34] : memref<64x32xf32, #tpu.memory_space<vmem>>, vector<8x32xf32>
    tpu.vector_store %arg20[%c24, %c0_34], %151 {strides = array<i32>} : memref<64x32xf32, #tpu.memory_space<vmem>>, vector<8x32xf32>,
    %c32 = arith.constant 32 : index
    %c0_35 = arith.constant 0 : index
    %172 = vector.load %arg21[%c32, %c0_35] : memref<64x32xf32, #tpu.memory_space<vmem>>, vector<8x32xf32>
    tpu.vector_store %arg21[%c32, %c0_35], %170 {strides = array<i32>} : memref<64x32xf32, #tpu.memory_space<vmem>>, vector<8x32xf32>,
    %173 = vector.extract_strided_slice %7 {offsets = [32, 0], sizes = [8, 128], strides = [1, 1]} : vector<64x128xf32> to vector<8x128xf32>
    %cst_36 = arith.constant dense<0.000000e+00> : vector<8x128xf32>
    %174 = tpu.matmul %151, %10, %cst_36 {dimension_numbers = #tpu.dot_dimension_numbers<[1], [0], [0], [1], [0, 0, 1, 1], [], []>} : vector<8x32xf32>, vector<32x128xf32>, vector<8x128xf32> -> vector<8x128xf32>
    %175 = arith.addf %173, %174 : vector<8x128xf32>
    %176 = vector.extract_strided_slice %175 {offsets = [0, 0], sizes = [8, 96], strides = [1, 1]} : vector<8x128xf32> to vector<8x96xf32>
    %177 = arith.negf %176 : vector<8x96xf32>
    %178 = math.exp %177 : vector<8x96xf32>
    %cst_37 = arith.constant 1.000000e+00 : f32
    %179 = vector.broadcast %cst_37 : f32 to vector<8x96xf32>
    %180 = arith.addf %179, %178 : vector<8x96xf32>
    %181 = arith.divf %179, %180 : vector<8x96xf32>
    %182 = vector.extract_strided_slice %181 {offsets = [0, 0], sizes = [8, 32], strides = [1, 1]} : vector<8x96xf32> to vector<8x32xf32>
    %183 = vector.extract_strided_slice %181 {offsets = [0, 32], sizes = [8, 32], strides = [1, 1]} : vector<8x96xf32> to vector<8x32xf32>
    %184 = vector.extract_strided_slice %181 {offsets = [0, 64], sizes = [8, 32], strides = [1, 1]} : vector<8x96xf32> to vector<8x32xf32>
    %185 = vector.extract_strided_slice %175 {offsets = [0, 96], sizes = [8, 32], strides = [1, 1]} : vector<8x128xf32> to vector<8x32xf32>
    %186 = math.tanh %185 : vector<8x32xf32>
    %187 = arith.mulf %183, %149 : vector<8x32xf32>
    %188 = arith.mulf %182, %186 : vector<8x32xf32>
    %189 = arith.addf %187, %188 : vector<8x32xf32>
    %190 = math.tanh %189 : vector<8x32xf32>
    %191 = arith.mulf %184, %190 : vector<8x32xf32>
    %192 = vector.extract_strided_slice %8 {offsets = [24, 0], sizes = [8, 128], strides = [1, 1]} : vector<64x128xf32> to vector<8x128xf32>
    %cst_38 = arith.constant dense<0.000000e+00> : vector<8x128xf32>
    %193 = tpu.matmul %170, %12, %cst_38 {dimension_numbers = #tpu.dot_dimension_numbers<[1], [0], [0], [1], [0, 0, 1, 1], [], []>} : vector<8x32xf32>, vector<32x128xf32>, vector<8x128xf32> -> vector<8x128xf32>
    %194 = arith.addf %192, %193 : vector<8x128xf32>
    %195 = vector.extract_strided_slice %194 {offsets = [0, 0], sizes = [8, 96], strides = [1, 1]} : vector<8x128xf32> to vector<8x96xf32>
    %196 = arith.negf %195 : vector<8x96xf32>
    %197 = math.exp %196 : vector<8x96xf32>
    %cst_39 = arith.constant 1.000000e+00 : f32
    %198 = vector.broadcast %cst_39 : f32 to vector<8x96xf32>
    %199 = arith.addf %198, %197 : vector<8x96xf32>
    %200 = arith.divf %198, %199 : vector<8x96xf32>
    %201 = vector.extract_strided_slice %200 {offsets = [0, 0], sizes = [8, 32], strides = [1, 1]} : vector<8x96xf32> to vector<8x32xf32>
    %202 = vector.extract_strided_slice %200 {offsets = [0, 32], sizes = [8, 32], strides = [1, 1]} : vector<8x96xf32> to vector<8x32xf32>
    %203 = vector.extract_strided_slice %200 {offsets = [0, 64], sizes = [8, 32], strides = [1, 1]} : vector<8x96xf32> to vector<8x32xf32>
    %204 = vector.extract_strided_slice %194 {offsets = [0, 96], sizes = [8, 32], strides = [1, 1]} : vector<8x128xf32> to vector<8x32xf32>
    %205 = math.tanh %204 : vector<8x32xf32>
    %206 = arith.mulf %202, %168 : vector<8x32xf32>
    %207 = arith.mulf %201, %205 : vector<8x32xf32>
    %208 = arith.addf %206, %207 : vector<8x32xf32>
    %209 = math.tanh %208 : vector<8x32xf32>
    %210 = arith.mulf %203, %209 : vector<8x32xf32>
    %c32_40 = arith.constant 32 : index
    %c0_41 = arith.constant 0 : index
    %211 = vector.load %arg20[%c32_40, %c0_41] : memref<64x32xf32, #tpu.memory_space<vmem>>, vector<8x32xf32>
    tpu.vector_store %arg20[%c32_40, %c0_41], %191 {strides = array<i32>} : memref<64x32xf32, #tpu.memory_space<vmem>>, vector<8x32xf32>,
    %c24_42 = arith.constant 24 : index
    %c0_43 = arith.constant 0 : index
    %212 = vector.load %arg21[%c24_42, %c0_43] : memref<64x32xf32, #tpu.memory_space<vmem>>, vector<8x32xf32>
    tpu.vector_store %arg21[%c24_42, %c0_43], %210 {strides = array<i32>} : memref<64x32xf32, #tpu.memory_space<vmem>>, vector<8x32xf32>,
    %213 = vector.extract_strided_slice %7 {offsets = [40, 0], sizes = [8, 128], strides = [1, 1]} : vector<64x128xf32> to vector<8x128xf32>
    %cst_44 = arith.constant dense<0.000000e+00> : vector<8x128xf32>
    %214 = tpu.matmul %191, %10, %cst_44 {dimension_numbers = #tpu.dot_dimension_numbers<[1], [0], [0], [1], [0, 0, 1, 1], [], []>} : vector<8x32xf32>, vector<32x128xf32>, vector<8x128xf32> -> vector<8x128xf32>
    %215 = arith.addf %213, %214 : vector<8x128xf32>
    %216 = vector.extract_strided_slice %215 {offsets = [0, 0], sizes = [8, 96], strides = [1, 1]} : vector<8x128xf32> to vector<8x96xf32>
    %217 = arith.negf %216 : vector<8x96xf32>
    %218 = math.exp %217 : vector<8x96xf32>
    %cst_45 = arith.constant 1.000000e+00 : f32
    %219 = vector.broadcast %cst_45 : f32 to vector<8x96xf32>
    %220 = arith.addf %219, %218 : vector<8x96xf32>
    %221 = arith.divf %219, %220 : vector<8x96xf32>
    %222 = vector.extract_strided_slice %221 {offsets = [0, 0], sizes = [8, 32], strides = [1, 1]} : vector<8x96xf32> to vector<8x32xf32>
    %223 = vector.extract_strided_slice %221 {offsets = [0, 32], sizes = [8, 32], strides = [1, 1]} : vector<8x96xf32> to vector<8x32xf32>
    %224 = vector.extract_strided_slice %221 {offsets = [0, 64], sizes = [8, 32], strides = [1, 1]} : vector<8x96xf32> to vector<8x32xf32>
    %225 = vector.extract_strided_slice %215 {offsets = [0, 96], sizes = [8, 32], strides = [1, 1]} : vector<8x128xf32> to vector<8x32xf32>
    %226 = math.tanh %225 : vector<8x32xf32>
    %227 = arith.mulf %223, %189 : vector<8x32xf32>
    %228 = arith.mulf %222, %226 : vector<8x32xf32>
    %229 = arith.addf %227, %228 : vector<8x32xf32>
    %230 = math.tanh %229 : vector<8x32xf32>
    %231 = arith.mulf %224, %230 : vector<8x32xf32>
    %232 = vector.extract_strided_slice %8 {offsets = [16, 0], sizes = [8, 128], strides = [1, 1]} : vector<64x128xf32> to vector<8x128xf32>
    %cst_46 = arith.constant dense<0.000000e+00> : vector<8x128xf32>
    %233 = tpu.matmul %210, %12, %cst_46 {dimension_numbers = #tpu.dot_dimension_numbers<[1], [0], [0], [1], [0, 0, 1, 1], [], []>} : vector<8x32xf32>, vector<32x128xf32>, vector<8x128xf32> -> vector<8x128xf32>
    %234 = arith.addf %232, %233 : vector<8x128xf32>
    %235 = vector.extract_strided_slice %234 {offsets = [0, 0], sizes = [8, 96], strides = [1, 1]} : vector<8x128xf32> to vector<8x96xf32>
    %236 = arith.negf %235 : vector<8x96xf32>
    %237 = math.exp %236 : vector<8x96xf32>
    %cst_47 = arith.constant 1.000000e+00 : f32
    %238 = vector.broadcast %cst_47 : f32 to vector<8x96xf32>
    %239 = arith.addf %238, %237 : vector<8x96xf32>
    %240 = arith.divf %238, %239 : vector<8x96xf32>
    %241 = vector.extract_strided_slice %240 {offsets = [0, 0], sizes = [8, 32], strides = [1, 1]} : vector<8x96xf32> to vector<8x32xf32>
    %242 = vector.extract_strided_slice %240 {offsets = [0, 32], sizes = [8, 32], strides = [1, 1]} : vector<8x96xf32> to vector<8x32xf32>
    %243 = vector.extract_strided_slice %240 {offsets = [0, 64], sizes = [8, 32], strides = [1, 1]} : vector<8x96xf32> to vector<8x32xf32>
    %244 = vector.extract_strided_slice %234 {offsets = [0, 96], sizes = [8, 32], strides = [1, 1]} : vector<8x128xf32> to vector<8x32xf32>
    %245 = math.tanh %244 : vector<8x32xf32>
    %246 = arith.mulf %242, %208 : vector<8x32xf32>
    %247 = arith.mulf %241, %245 : vector<8x32xf32>
    %248 = arith.addf %246, %247 : vector<8x32xf32>
    %249 = math.tanh %248 : vector<8x32xf32>
    %250 = arith.mulf %243, %249 : vector<8x32xf32>
    %c40_48 = arith.constant 40 : index
    %c0_49 = arith.constant 0 : index
    %251 = vector.load %arg20[%c40_48, %c0_49] : memref<64x32xf32, #tpu.memory_space<vmem>>, vector<8x32xf32>
    tpu.vector_store %arg20[%c40_48, %c0_49], %231 {strides = array<i32>} : memref<64x32xf32, #tpu.memory_space<vmem>>, vector<8x32xf32>,
    %c16_50 = arith.constant 16 : index
    %c0_51 = arith.constant 0 : index
    %252 = vector.load %arg21[%c16_50, %c0_51] : memref<64x32xf32, #tpu.memory_space<vmem>>, vector<8x32xf32>
    tpu.vector_store %arg21[%c16_50, %c0_51], %250 {strides = array<i32>} : memref<64x32xf32, #tpu.memory_space<vmem>>, vector<8x32xf32>,
    %253 = vector.extract_strided_slice %7 {offsets = [48, 0], sizes = [8, 128], strides = [1, 1]} : vector<64x128xf32> to vector<8x128xf32>
    %cst_52 = arith.constant dense<0.000000e+00> : vector<8x128xf32>
    %254 = tpu.matmul %231, %10, %cst_52 {dimension_numbers = #tpu.dot_dimension_numbers<[1], [0], [0], [1], [0, 0, 1, 1], [], []>} : vector<8x32xf32>, vector<32x128xf32>, vector<8x128xf32> -> vector<8x128xf32>
    %255 = arith.addf %253, %254 : vector<8x128xf32>
    %256 = vector.extract_strided_slice %255 {offsets = [0, 0], sizes = [8, 96], strides = [1, 1]} : vector<8x128xf32> to vector<8x96xf32>
    %257 = arith.negf %256 : vector<8x96xf32>
    %258 = math.exp %257 : vector<8x96xf32>
    %cst_53 = arith.constant 1.000000e+00 : f32
    %259 = vector.broadcast %cst_53 : f32 to vector<8x96xf32>
    %260 = arith.addf %259, %258 : vector<8x96xf32>
    %261 = arith.divf %259, %260 : vector<8x96xf32>
    %262 = vector.extract_strided_slice %261 {offsets = [0, 0], sizes = [8, 32], strides = [1, 1]} : vector<8x96xf32> to vector<8x32xf32>
    %263 = vector.extract_strided_slice %261 {offsets = [0, 32], sizes = [8, 32], strides = [1, 1]} : vector<8x96xf32> to vector<8x32xf32>
    %264 = vector.extract_strided_slice %261 {offsets = [0, 64], sizes = [8, 32], strides = [1, 1]} : vector<8x96xf32> to vector<8x32xf32>
    %265 = vector.extract_strided_slice %255 {offsets = [0, 96], sizes = [8, 32], strides = [1, 1]} : vector<8x128xf32> to vector<8x32xf32>
    %266 = math.tanh %265 : vector<8x32xf32>
    %267 = arith.mulf %263, %229 : vector<8x32xf32>
    %268 = arith.mulf %262, %266 : vector<8x32xf32>
    %269 = arith.addf %267, %268 : vector<8x32xf32>
    %270 = math.tanh %269 : vector<8x32xf32>
    %271 = arith.mulf %264, %270 : vector<8x32xf32>
    %272 = vector.extract_strided_slice %8 {offsets = [8, 0], sizes = [8, 128], strides = [1, 1]} : vector<64x128xf32> to vector<8x128xf32>
    %cst_54 = arith.constant dense<0.000000e+00> : vector<8x128xf32>
    %273 = tpu.matmul %250, %12, %cst_54 {dimension_numbers = #tpu.dot_dimension_numbers<[1], [0], [0], [1], [0, 0, 1, 1], [], []>} : vector<8x32xf32>, vector<32x128xf32>, vector<8x128xf32> -> vector<8x128xf32>
    %274 = arith.addf %272, %273 : vector<8x128xf32>
    %275 = vector.extract_strided_slice %274 {offsets = [0, 0], sizes = [8, 96], strides = [1, 1]} : vector<8x128xf32> to vector<8x96xf32>
    %276 = arith.negf %275 : vector<8x96xf32>
    %277 = math.exp %276 : vector<8x96xf32>
    %cst_55 = arith.constant 1.000000e+00 : f32
    %278 = vector.broadcast %cst_55 : f32 to vector<8x96xf32>
    %279 = arith.addf %278, %277 : vector<8x96xf32>
    %280 = arith.divf %278, %279 : vector<8x96xf32>
    %281 = vector.extract_strided_slice %280 {offsets = [0, 0], sizes = [8, 32], strides = [1, 1]} : vector<8x96xf32> to vector<8x32xf32>
    %282 = vector.extract_strided_slice %280 {offsets = [0, 32], sizes = [8, 32], strides = [1, 1]} : vector<8x96xf32> to vector<8x32xf32>
    %283 = vector.extract_strided_slice %280 {offsets = [0, 64], sizes = [8, 32], strides = [1, 1]} : vector<8x96xf32> to vector<8x32xf32>
    %284 = vector.extract_strided_slice %274 {offsets = [0, 96], sizes = [8, 32], strides = [1, 1]} : vector<8x128xf32> to vector<8x32xf32>
    %285 = math.tanh %284 : vector<8x32xf32>
    %286 = arith.mulf %282, %248 : vector<8x32xf32>
    %287 = arith.mulf %281, %285 : vector<8x32xf32>
    %288 = arith.addf %286, %287 : vector<8x32xf32>
    %289 = math.tanh %288 : vector<8x32xf32>
    %290 = arith.mulf %283, %289 : vector<8x32xf32>
    %c48_56 = arith.constant 48 : index
    %c0_57 = arith.constant 0 : index
    %291 = vector.load %arg20[%c48_56, %c0_57] : memref<64x32xf32, #tpu.memory_space<vmem>>, vector<8x32xf32>
    tpu.vector_store %arg20[%c48_56, %c0_57], %271 {strides = array<i32>} : memref<64x32xf32, #tpu.memory_space<vmem>>, vector<8x32xf32>,
    %c8_58 = arith.constant 8 : index
    %c0_59 = arith.constant 0 : index
    %292 = vector.load %arg21[%c8_58, %c0_59] : memref<64x32xf32, #tpu.memory_space<vmem>>, vector<8x32xf32>
    tpu.vector_store %arg21[%c8_58, %c0_59], %290 {strides = array<i32>} : memref<64x32xf32, #tpu.memory_space<vmem>>, vector<8x32xf32>,
    %293 = vector.extract_strided_slice %7 {offsets = [56, 0], sizes = [8, 128], strides = [1, 1]} : vector<64x128xf32> to vector<8x128xf32>
    %cst_60 = arith.constant dense<0.000000e+00> : vector<8x128xf32>
    %294 = tpu.matmul %271, %10, %cst_60 {dimension_numbers = #tpu.dot_dimension_numbers<[1], [0], [0], [1], [0, 0, 1, 1], [], []>} : vector<8x32xf32>, vector<32x128xf32>, vector<8x128xf32> -> vector<8x128xf32>
    %295 = arith.addf %293, %294 : vector<8x128xf32>
    %296 = vector.extract_strided_slice %295 {offsets = [0, 0], sizes = [8, 96], strides = [1, 1]} : vector<8x128xf32> to vector<8x96xf32>
    %297 = arith.negf %296 : vector<8x96xf32>
    %298 = math.exp %297 : vector<8x96xf32>
    %cst_61 = arith.constant 1.000000e+00 : f32
    %299 = vector.broadcast %cst_61 : f32 to vector<8x96xf32>
    %300 = arith.addf %299, %298 : vector<8x96xf32>
    %301 = arith.divf %299, %300 : vector<8x96xf32>
    %302 = vector.extract_strided_slice %301 {offsets = [0, 0], sizes = [8, 32], strides = [1, 1]} : vector<8x96xf32> to vector<8x32xf32>
    %303 = vector.extract_strided_slice %301 {offsets = [0, 32], sizes = [8, 32], strides = [1, 1]} : vector<8x96xf32> to vector<8x32xf32>
    %304 = vector.extract_strided_slice %301 {offsets = [0, 64], sizes = [8, 32], strides = [1, 1]} : vector<8x96xf32> to vector<8x32xf32>
    %305 = vector.extract_strided_slice %295 {offsets = [0, 96], sizes = [8, 32], strides = [1, 1]} : vector<8x128xf32> to vector<8x32xf32>
    %306 = math.tanh %305 : vector<8x32xf32>
    %307 = arith.mulf %303, %269 : vector<8x32xf32>
    %308 = arith.mulf %302, %306 : vector<8x32xf32>
    %309 = arith.addf %307, %308 : vector<8x32xf32>
    %310 = math.tanh %309 : vector<8x32xf32>
    %311 = arith.mulf %304, %310 : vector<8x32xf32>
    %312 = vector.extract_strided_slice %8 {offsets = [0, 0], sizes = [8, 128], strides = [1, 1]} : vector<64x128xf32> to vector<8x128xf32>
    %cst_62 = arith.constant dense<0.000000e+00> : vector<8x128xf32>
    %313 = tpu.matmul %290, %12, %cst_62 {dimension_numbers = #tpu.dot_dimension_numbers<[1], [0], [0], [1], [0, 0, 1, 1], [], []>} : vector<8x32xf32>, vector<32x128xf32>, vector<8x128xf32> -> vector<8x128xf32>
    %314 = arith.addf %312, %313 : vector<8x128xf32>
    %315 = vector.extract_strided_slice %314 {offsets = [0, 0], sizes = [8, 96], strides = [1, 1]} : vector<8x128xf32> to vector<8x96xf32>
    %316 = arith.negf %315 : vector<8x96xf32>
    %317 = math.exp %316 : vector<8x96xf32>
    %cst_63 = arith.constant 1.000000e+00 : f32
    %318 = vector.broadcast %cst_63 : f32 to vector<8x96xf32>
    %319 = arith.addf %318, %317 : vector<8x96xf32>
    %320 = arith.divf %318, %319 : vector<8x96xf32>
    %321 = vector.extract_strided_slice %320 {offsets = [0, 0], sizes = [8, 32], strides = [1, 1]} : vector<8x96xf32> to vector<8x32xf32>
    %322 = vector.extract_strided_slice %320 {offsets = [0, 32], sizes = [8, 32], strides = [1, 1]} : vector<8x96xf32> to vector<8x32xf32>
    %323 = vector.extract_strided_slice %320 {offsets = [0, 64], sizes = [8, 32], strides = [1, 1]} : vector<8x96xf32> to vector<8x32xf32>
    %324 = vector.extract_strided_slice %314 {offsets = [0, 96], sizes = [8, 32], strides = [1, 1]} : vector<8x128xf32> to vector<8x32xf32>
    %325 = math.tanh %324 : vector<8x32xf32>
    %326 = arith.mulf %322, %288 : vector<8x32xf32>
    %327 = arith.mulf %321, %325 : vector<8x32xf32>
    %328 = arith.addf %326, %327 : vector<8x32xf32>
    %329 = math.tanh %328 : vector<8x32xf32>
    %330 = arith.mulf %323, %329 : vector<8x32xf32>
    %c56_64 = arith.constant 56 : index
    %c0_65 = arith.constant 0 : index
    %331 = vector.load %arg20[%c56_64, %c0_65] : memref<64x32xf32, #tpu.memory_space<vmem>>, vector<8x32xf32>
    tpu.vector_store %arg20[%c56_64, %c0_65], %311 {strides = array<i32>} : memref<64x32xf32, #tpu.memory_space<vmem>>, vector<8x32xf32>,
    %c0_66 = arith.constant 0 : index
    %c0_67 = arith.constant 0 : index
    %332 = vector.load %arg21[%c0_66, %c0_67] : memref<64x32xf32, #tpu.memory_space<vmem>>, vector<8x32xf32>
    tpu.vector_store %arg21[%c0_66, %c0_67], %330 {strides = array<i32>} : memref<64x32xf32, #tpu.memory_space<vmem>>, vector<8x32xf32>,
    %c0_68 = arith.constant 0 : index
    %c0_69 = arith.constant 0 : index
    %333 = vector.load %arg20[%c0_68, %c0_69] : memref<64x32xf32, #tpu.memory_space<vmem>>, vector<64x32xf32>
    %c0_70 = arith.constant 0 : index
    %c0_71 = arith.constant 0 : index
    %334 = vector.load %arg5[%c0_70, %c0_71] : memref<32x256xf32, #tpu.memory_space<vmem>>, vector<32x256xf32>
    %cst_72 = arith.constant dense<0.000000e+00> : vector<64x256xf32>
    %335 = tpu.matmul %333, %334, %cst_72 {dimension_numbers = #tpu.dot_dimension_numbers<[1], [0], [0], [1], [0, 0, 1, 1], [], []>} : vector<64x32xf32>, vector<32x256xf32>, vector<64x256xf32> -> vector<64x256xf32>
    %c0_73 = arith.constant 0 : index
    %c0_74 = arith.constant 0 : index
    %336 = vector.load %arg21[%c0_73, %c0_74] : memref<64x32xf32, #tpu.memory_space<vmem>>, vector<64x32xf32>
    %c0_75 = arith.constant 0 : index
    %c0_76 = arith.constant 0 : index
    %337 = vector.load %arg6[%c0_75, %c0_76] : memref<32x256xf32, #tpu.memory_space<vmem>>, vector<32x256xf32>
    %cst_77 = arith.constant dense<0.000000e+00> : vector<64x256xf32>
    %338 = tpu.matmul %336, %337, %cst_77 {dimension_numbers = #tpu.dot_dimension_numbers<[1], [0], [0], [1], [0, 0, 1, 1], [], []>} : vector<64x32xf32>, vector<32x256xf32>, vector<64x256xf32> -> vector<64x256xf32>
    %339 = arith.addf %335, %338 : vector<64x256xf32>
    %c0_78 = arith.constant 0 : index
    %c0_79 = arith.constant 0 : index
    %340 = vector.load %arg8[%c0_78, %c0_79] : memref<1x256xf32, #tpu.memory_space<vmem>>, vector<1x256xf32>
    %341 = vector.broadcast %340 : vector<1x256xf32> to vector<64x256xf32>
    %342 = arith.addf %339, %341 : vector<64x256xf32>
    %343 = vector.extract_strided_slice %342 {offsets = [0, 0], sizes = [64, 128], strides = [1, 1]} : vector<64x256xf32> to vector<64x128xf32>
    %344 = vector.extract_strided_slice %342 {offsets = [0, 128], sizes = [64, 128], strides = [1, 1]} : vector<64x256xf32> to vector<64x128xf32>
    %c0_80 = arith.constant 0 : index
    %c0_81 = arith.constant 0 : index
    %c0_82 = arith.constant 0 : index
    %345 = vector.load %arg7[%c0_80, %c0_81, %c0_82] : memref<2x32x128xf32, #tpu.memory_space<vmem>>, vector<1x32x128xf32>
    %346 = vector.shape_cast %345 : vector<1x32x128xf32> to vector<32x128xf32>
    %c1_83 = arith.constant 1 : index
    %c0_84 = arith.constant 0 : index
    %c0_85 = arith.constant 0 : index
    %347 = vector.load %arg7[%c1_83, %c0_84, %c0_85] : memref<2x32x128xf32, #tpu.memory_space<vmem>>, vector<1x32x128xf32>
    %348 = vector.shape_cast %347 : vector<1x32x128xf32> to vector<32x128xf32>
    %349 = vector.extract_strided_slice %343 {offsets = [0, 0], sizes = [8, 128], strides = [1, 1]} : vector<64x128xf32> to vector<8x128xf32>
    %cst_86 = arith.constant dense<0.000000e+00> : vector<8x128xf32>
    %350 = tpu.matmul %0, %346, %cst_86 {dimension_numbers = #tpu.dot_dimension_numbers<[1], [0], [0], [1], [0, 0, 1, 1], [], []>} : vector<8x32xf32>, vector<32x128xf32>, vector<8x128xf32> -> vector<8x128xf32>
    %351 = arith.addf %349, %350 : vector<8x128xf32>
    %352 = vector.extract_strided_slice %351 {offsets = [0, 0], sizes = [8, 96], strides = [1, 1]} : vector<8x128xf32> to vector<8x96xf32>
    %353 = arith.negf %352 : vector<8x96xf32>
    %354 = math.exp %353 : vector<8x96xf32>
    %cst_87 = arith.constant 1.000000e+00 : f32
    %355 = vector.broadcast %cst_87 : f32 to vector<8x96xf32>
    %356 = arith.addf %355, %354 : vector<8x96xf32>
    %357 = arith.divf %355, %356 : vector<8x96xf32>
    %358 = vector.extract_strided_slice %357 {offsets = [0, 0], sizes = [8, 32], strides = [1, 1]} : vector<8x96xf32> to vector<8x32xf32>
    %359 = vector.extract_strided_slice %357 {offsets = [0, 32], sizes = [8, 32], strides = [1, 1]} : vector<8x96xf32> to vector<8x32xf32>
    %360 = vector.extract_strided_slice %357 {offsets = [0, 64], sizes = [8, 32], strides = [1, 1]} : vector<8x96xf32> to vector<8x32xf32>
    %361 = vector.extract_strided_slice %351 {offsets = [0, 96], sizes = [8, 32], strides = [1, 1]} : vector<8x128xf32> to vector<8x32xf32>
    %362 = math.tanh %361 : vector<8x32xf32>
    %363 = arith.mulf %359, %0 : vector<8x32xf32>
    %364 = arith.mulf %358, %362 : vector<8x32xf32>
    %365 = arith.addf %363, %364 : vector<8x32xf32>
    %366 = math.tanh %365 : vector<8x32xf32>
    %367 = arith.mulf %360, %366 : vector<8x32xf32>
    %368 = vector.extract_strided_slice %344 {offsets = [56, 0], sizes = [8, 128], strides = [1, 1]} : vector<64x128xf32> to vector<8x128xf32>
    %cst_88 = arith.constant dense<0.000000e+00> : vector<8x128xf32>
    %369 = tpu.matmul %0, %348, %cst_88 {dimension_numbers = #tpu.dot_dimension_numbers<[1], [0], [0], [1], [0, 0, 1, 1], [], []>} : vector<8x32xf32>, vector<32x128xf32>, vector<8x128xf32> -> vector<8x128xf32>
    %370 = arith.addf %368, %369 : vector<8x128xf32>
    %371 = vector.extract_strided_slice %370 {offsets = [0, 0], sizes = [8, 96], strides = [1, 1]} : vector<8x128xf32> to vector<8x96xf32>
    %372 = arith.negf %371 : vector<8x96xf32>
    %373 = math.exp %372 : vector<8x96xf32>
    %cst_89 = arith.constant 1.000000e+00 : f32
    %374 = vector.broadcast %cst_89 : f32 to vector<8x96xf32>
    %375 = arith.addf %374, %373 : vector<8x96xf32>
    %376 = arith.divf %374, %375 : vector<8x96xf32>
    %377 = vector.extract_strided_slice %376 {offsets = [0, 0], sizes = [8, 32], strides = [1, 1]} : vector<8x96xf32> to vector<8x32xf32>
    %378 = vector.extract_strided_slice %376 {offsets = [0, 32], sizes = [8, 32], strides = [1, 1]} : vector<8x96xf32> to vector<8x32xf32>
    %379 = vector.extract_strided_slice %376 {offsets = [0, 64], sizes = [8, 32], strides = [1, 1]} : vector<8x96xf32> to vector<8x32xf32>
    %380 = vector.extract_strided_slice %370 {offsets = [0, 96], sizes = [8, 32], strides = [1, 1]} : vector<8x128xf32> to vector<8x32xf32>
    %381 = math.tanh %380 : vector<8x32xf32>
    %382 = arith.mulf %378, %0 : vector<8x32xf32>
    %383 = arith.mulf %377, %381 : vector<8x32xf32>
    %384 = arith.addf %382, %383 : vector<8x32xf32>
    %385 = math.tanh %384 : vector<8x32xf32>
    %386 = arith.mulf %379, %385 : vector<8x32xf32>
    %387 = arith.addf %0, %367 : vector<8x32xf32>
    %388 = arith.addf %0, %386 : vector<8x32xf32>
    %389 = vector.extract_strided_slice %343 {offsets = [8, 0], sizes = [8, 128], strides = [1, 1]} : vector<64x128xf32> to vector<8x128xf32>
    %cst_90 = arith.constant dense<0.000000e+00> : vector<8x128xf32>
    %390 = tpu.matmul %367, %346, %cst_90 {dimension_numbers = #tpu.dot_dimension_numbers<[1], [0], [0], [1], [0, 0, 1, 1], [], []>} : vector<8x32xf32>, vector<32x128xf32>, vector<8x128xf32> -> vector<8x128xf32>
    %391 = arith.addf %389, %390 : vector<8x128xf32>
    %392 = vector.extract_strided_slice %391 {offsets = [0, 0], sizes = [8, 96], strides = [1, 1]} : vector<8x128xf32> to vector<8x96xf32>
    %393 = arith.negf %392 : vector<8x96xf32>
    %394 = math.exp %393 : vector<8x96xf32>
    %cst_91 = arith.constant 1.000000e+00 : f32
    %395 = vector.broadcast %cst_91 : f32 to vector<8x96xf32>
    %396 = arith.addf %395, %394 : vector<8x96xf32>
    %397 = arith.divf %395, %396 : vector<8x96xf32>
    %398 = vector.extract_strided_slice %397 {offsets = [0, 0], sizes = [8, 32], strides = [1, 1]} : vector<8x96xf32> to vector<8x32xf32>
    %399 = vector.extract_strided_slice %397 {offsets = [0, 32], sizes = [8, 32], strides = [1, 1]} : vector<8x96xf32> to vector<8x32xf32>
    %400 = vector.extract_strided_slice %397 {offsets = [0, 64], sizes = [8, 32], strides = [1, 1]} : vector<8x96xf32> to vector<8x32xf32>
    %401 = vector.extract_strided_slice %391 {offsets = [0, 96], sizes = [8, 32], strides = [1, 1]} : vector<8x128xf32> to vector<8x32xf32>
    %402 = math.tanh %401 : vector<8x32xf32>
    %403 = arith.mulf %399, %365 : vector<8x32xf32>
    %404 = arith.mulf %398, %402 : vector<8x32xf32>
    %405 = arith.addf %403, %404 : vector<8x32xf32>
    %406 = math.tanh %405 : vector<8x32xf32>
    %407 = arith.mulf %400, %406 : vector<8x32xf32>
    %408 = vector.extract_strided_slice %344 {offsets = [48, 0], sizes = [8, 128], strides = [1, 1]} : vector<64x128xf32> to vector<8x128xf32>
    %cst_92 = arith.constant dense<0.000000e+00> : vector<8x128xf32>
    %409 = tpu.matmul %386, %348, %cst_92 {dimension_numbers = #tpu.dot_dimension_numbers<[1], [0], [0], [1], [0, 0, 1, 1], [], []>} : vector<8x32xf32>, vector<32x128xf32>, vector<8x128xf32> -> vector<8x128xf32>
    %410 = arith.addf %408, %409 : vector<8x128xf32>
    %411 = vector.extract_strided_slice %410 {offsets = [0, 0], sizes = [8, 96], strides = [1, 1]} : vector<8x128xf32> to vector<8x96xf32>
    %412 = arith.negf %411 : vector<8x96xf32>
    %413 = math.exp %412 : vector<8x96xf32>
    %cst_93 = arith.constant 1.000000e+00 : f32
    %414 = vector.broadcast %cst_93 : f32 to vector<8x96xf32>
    %415 = arith.addf %414, %413 : vector<8x96xf32>
    %416 = arith.divf %414, %415 : vector<8x96xf32>
    %417 = vector.extract_strided_slice %416 {offsets = [0, 0], sizes = [8, 32], strides = [1, 1]} : vector<8x96xf32> to vector<8x32xf32>
    %418 = vector.extract_strided_slice %416 {offsets = [0, 32], sizes = [8, 32], strides = [1, 1]} : vector<8x96xf32> to vector<8x32xf32>
    %419 = vector.extract_strided_slice %416 {offsets = [0, 64], sizes = [8, 32], strides = [1, 1]} : vector<8x96xf32> to vector<8x32xf32>
    %420 = vector.extract_strided_slice %410 {offsets = [0, 96], sizes = [8, 32], strides = [1, 1]} : vector<8x128xf32> to vector<8x32xf32>
    %421 = math.tanh %420 : vector<8x32xf32>
    %422 = arith.mulf %418, %384 : vector<8x32xf32>
    %423 = arith.mulf %417, %421 : vector<8x32xf32>
    %424 = arith.addf %422, %423 : vector<8x32xf32>
    %425 = math.tanh %424 : vector<8x32xf32>
    %426 = arith.mulf %419, %425 : vector<8x32xf32>
    %427 = arith.addf %387, %407 : vector<8x32xf32>
    %428 = arith.addf %388, %426 : vector<8x32xf32>
    %429 = vector.extract_strided_slice %343 {offsets = [16, 0], sizes = [8, 128], strides = [1, 1]} : vector<64x128xf32> to vector<8x128xf32>
    %cst_94 = arith.constant dense<0.000000e+00> : vector<8x128xf32>
    %430 = tpu.matmul %407, %346, %cst_94 {dimension_numbers = #tpu.dot_dimension_numbers<[1], [0], [0], [1], [0, 0, 1, 1], [], []>} : vector<8x32xf32>, vector<32x128xf32>, vector<8x128xf32> -> vector<8x128xf32>
    %431 = arith.addf %429, %430 : vector<8x128xf32>
    %432 = vector.extract_strided_slice %431 {offsets = [0, 0], sizes = [8, 96], strides = [1, 1]} : vector<8x128xf32> to vector<8x96xf32>
    %433 = arith.negf %432 : vector<8x96xf32>
    %434 = math.exp %433 : vector<8x96xf32>
    %cst_95 = arith.constant 1.000000e+00 : f32
    %435 = vector.broadcast %cst_95 : f32 to vector<8x96xf32>
    %436 = arith.addf %435, %434 : vector<8x96xf32>
    %437 = arith.divf %435, %436 : vector<8x96xf32>
    %438 = vector.extract_strided_slice %437 {offsets = [0, 0], sizes = [8, 32], strides = [1, 1]} : vector<8x96xf32> to vector<8x32xf32>
    %439 = vector.extract_strided_slice %437 {offsets = [0, 32], sizes = [8, 32], strides = [1, 1]} : vector<8x96xf32> to vector<8x32xf32>
    %440 = vector.extract_strided_slice %437 {offsets = [0, 64], sizes = [8, 32], strides = [1, 1]} : vector<8x96xf32> to vector<8x32xf32>
    %441 = vector.extract_strided_slice %431 {offsets = [0, 96], sizes = [8, 32], strides = [1, 1]} : vector<8x128xf32> to vector<8x32xf32>
    %442 = math.tanh %441 : vector<8x32xf32>
    %443 = arith.mulf %439, %405 : vector<8x32xf32>
    %444 = arith.mulf %438, %442 : vector<8x32xf32>
    %445 = arith.addf %443, %444 : vector<8x32xf32>
    %446 = math.tanh %445 : vector<8x32xf32>
    %447 = arith.mulf %440, %446 : vector<8x32xf32>
    %448 = vector.extract_strided_slice %344 {offsets = [40, 0], sizes = [8, 128], strides = [1, 1]} : vector<64x128xf32> to vector<8x128xf32>
    %cst_96 = arith.constant dense<0.000000e+00> : vector<8x128xf32>
    %449 = tpu.matmul %426, %348, %cst_96 {dimension_numbers = #tpu.dot_dimension_numbers<[1], [0], [0], [1], [0, 0, 1, 1], [], []>} : vector<8x32xf32>, vector<32x128xf32>, vector<8x128xf32> -> vector<8x128xf32>
    %450 = arith.addf %448, %449 : vector<8x128xf32>
    %451 = vector.extract_strided_slice %450 {offsets = [0, 0], sizes = [8, 96], strides = [1, 1]} : vector<8x128xf32> to vector<8x96xf32>
    %452 = arith.negf %451 : vector<8x96xf32>
    %453 = math.exp %452 : vector<8x96xf32>
    %cst_97 = arith.constant 1.000000e+00 : f32
    %454 = vector.broadcast %cst_97 : f32 to vector<8x96xf32>
    %455 = arith.addf %454, %453 : vector<8x96xf32>
    %456 = arith.divf %454, %455 : vector<8x96xf32>
    %457 = vector.extract_strided_slice %456 {offsets = [0, 0], sizes = [8, 32], strides = [1, 1]} : vector<8x96xf32> to vector<8x32xf32>
    %458 = vector.extract_strided_slice %456 {offsets = [0, 32], sizes = [8, 32], strides = [1, 1]} : vector<8x96xf32> to vector<8x32xf32>
    %459 = vector.extract_strided_slice %456 {offsets = [0, 64], sizes = [8, 32], strides = [1, 1]} : vector<8x96xf32> to vector<8x32xf32>
    %460 = vector.extract_strided_slice %450 {offsets = [0, 96], sizes = [8, 32], strides = [1, 1]} : vector<8x128xf32> to vector<8x32xf32>
    %461 = math.tanh %460 : vector<8x32xf32>
    %462 = arith.mulf %458, %424 : vector<8x32xf32>
    %463 = arith.mulf %457, %461 : vector<8x32xf32>
    %464 = arith.addf %462, %463 : vector<8x32xf32>
    %465 = math.tanh %464 : vector<8x32xf32>
    %466 = arith.mulf %459, %465 : vector<8x32xf32>
    %467 = arith.addf %427, %447 : vector<8x32xf32>
    %468 = arith.addf %428, %466 : vector<8x32xf32>
    %469 = vector.extract_strided_slice %343 {offsets = [24, 0], sizes = [8, 128], strides = [1, 1]} : vector<64x128xf32> to vector<8x128xf32>
    %cst_98 = arith.constant dense<0.000000e+00> : vector<8x128xf32>
    %470 = tpu.matmul %447, %346, %cst_98 {dimension_numbers = #tpu.dot_dimension_numbers<[1], [0], [0], [1], [0, 0, 1, 1], [], []>} : vector<8x32xf32>, vector<32x128xf32>, vector<8x128xf32> -> vector<8x128xf32>
    %471 = arith.addf %469, %470 : vector<8x128xf32>
    %472 = vector.extract_strided_slice %471 {offsets = [0, 0], sizes = [8, 96], strides = [1, 1]} : vector<8x128xf32> to vector<8x96xf32>
    %473 = arith.negf %472 : vector<8x96xf32>
    %474 = math.exp %473 : vector<8x96xf32>
    %cst_99 = arith.constant 1.000000e+00 : f32
    %475 = vector.broadcast %cst_99 : f32 to vector<8x96xf32>
    %476 = arith.addf %475, %474 : vector<8x96xf32>
    %477 = arith.divf %475, %476 : vector<8x96xf32>
    %478 = vector.extract_strided_slice %477 {offsets = [0, 0], sizes = [8, 32], strides = [1, 1]} : vector<8x96xf32> to vector<8x32xf32>
    %479 = vector.extract_strided_slice %477 {offsets = [0, 32], sizes = [8, 32], strides = [1, 1]} : vector<8x96xf32> to vector<8x32xf32>
    %480 = vector.extract_strided_slice %477 {offsets = [0, 64], sizes = [8, 32], strides = [1, 1]} : vector<8x96xf32> to vector<8x32xf32>
    %481 = vector.extract_strided_slice %471 {offsets = [0, 96], sizes = [8, 32], strides = [1, 1]} : vector<8x128xf32> to vector<8x32xf32>
    %482 = math.tanh %481 : vector<8x32xf32>
    %483 = arith.mulf %479, %445 : vector<8x32xf32>
    %484 = arith.mulf %478, %482 : vector<8x32xf32>
    %485 = arith.addf %483, %484 : vector<8x32xf32>
    %486 = math.tanh %485 : vector<8x32xf32>
    %487 = arith.mulf %480, %486 : vector<8x32xf32>
    %488 = vector.extract_strided_slice %344 {offsets = [32, 0], sizes = [8, 128], strides = [1, 1]} : vector<64x128xf32> to vector<8x128xf32>
    %cst_100 = arith.constant dense<0.000000e+00> : vector<8x128xf32>
    %489 = tpu.matmul %466, %348, %cst_100 {dimension_numbers = #tpu.dot_dimension_numbers<[1], [0], [0], [1], [0, 0, 1, 1], [], []>} : vector<8x32xf32>, vector<32x128xf32>, vector<8x128xf32> -> vector<8x128xf32>
    %490 = arith.addf %488, %489 : vector<8x128xf32>
    %491 = vector.extract_strided_slice %490 {offsets = [0, 0], sizes = [8, 96], strides = [1, 1]} : vector<8x128xf32> to vector<8x96xf32>
    %492 = arith.negf %491 : vector<8x96xf32>
    %493 = math.exp %492 : vector<8x96xf32>
    %cst_101 = arith.constant 1.000000e+00 : f32
    %494 = vector.broadcast %cst_101 : f32 to vector<8x96xf32>
    %495 = arith.addf %494, %493 : vector<8x96xf32>
    %496 = arith.divf %494, %495 : vector<8x96xf32>
    %497 = vector.extract_strided_slice %496 {offsets = [0, 0], sizes = [8, 32], strides = [1, 1]} : vector<8x96xf32> to vector<8x32xf32>
    %498 = vector.extract_strided_slice %496 {offsets = [0, 32], sizes = [8, 32], strides = [1, 1]} : vector<8x96xf32> to vector<8x32xf32>
    %499 = vector.extract_strided_slice %496 {offsets = [0, 64], sizes = [8, 32], strides = [1, 1]} : vector<8x96xf32> to vector<8x32xf32>
    %500 = vector.extract_strided_slice %490 {offsets = [0, 96], sizes = [8, 32], strides = [1, 1]} : vector<8x128xf32> to vector<8x32xf32>
    %501 = math.tanh %500 : vector<8x32xf32>
    %502 = arith.mulf %498, %464 : vector<8x32xf32>
    %503 = arith.mulf %497, %501 : vector<8x32xf32>
    %504 = arith.addf %502, %503 : vector<8x32xf32>
    %505 = math.tanh %504 : vector<8x32xf32>
    %506 = arith.mulf %499, %505 : vector<8x32xf32>
    %507 = arith.addf %467, %487 : vector<8x32xf32>
    %508 = arith.addf %468, %506 : vector<8x32xf32>
    %509 = vector.extract_strided_slice %343 {offsets = [32, 0], sizes = [8, 128], strides = [1, 1]} : vector<64x128xf32> to vector<8x128xf32>
    %cst_102 = arith.constant dense<0.000000e+00> : vector<8x128xf32>
    %510 = tpu.matmul %487, %346, %cst_102 {dimension_numbers = #tpu.dot_dimension_numbers<[1], [0], [0], [1], [0, 0, 1, 1], [], []>} : vector<8x32xf32>, vector<32x128xf32>, vector<8x128xf32> -> vector<8x128xf32>
    %511 = arith.addf %509, %510 : vector<8x128xf32>
    %512 = vector.extract_strided_slice %511 {offsets = [0, 0], sizes = [8, 96], strides = [1, 1]} : vector<8x128xf32> to vector<8x96xf32>
    %513 = arith.negf %512 : vector<8x96xf32>
    %514 = math.exp %513 : vector<8x96xf32>
    %cst_103 = arith.constant 1.000000e+00 : f32
    %515 = vector.broadcast %cst_103 : f32 to vector<8x96xf32>
    %516 = arith.addf %515, %514 : vector<8x96xf32>
    %517 = arith.divf %515, %516 : vector<8x96xf32>
    %518 = vector.extract_strided_slice %517 {offsets = [0, 0], sizes = [8, 32], strides = [1, 1]} : vector<8x96xf32> to vector<8x32xf32>
    %519 = vector.extract_strided_slice %517 {offsets = [0, 32], sizes = [8, 32], strides = [1, 1]} : vector<8x96xf32> to vector<8x32xf32>
    %520 = vector.extract_strided_slice %517 {offsets = [0, 64], sizes = [8, 32], strides = [1, 1]} : vector<8x96xf32> to vector<8x32xf32>
    %521 = vector.extract_strided_slice %511 {offsets = [0, 96], sizes = [8, 32], strides = [1, 1]} : vector<8x128xf32> to vector<8x32xf32>
    %522 = math.tanh %521 : vector<8x32xf32>
    %523 = arith.mulf %519, %485 : vector<8x32xf32>
    %524 = arith.mulf %518, %522 : vector<8x32xf32>
    %525 = arith.addf %523, %524 : vector<8x32xf32>
    %526 = math.tanh %525 : vector<8x32xf32>
    %527 = arith.mulf %520, %526 : vector<8x32xf32>
    %528 = vector.extract_strided_slice %344 {offsets = [24, 0], sizes = [8, 128], strides = [1, 1]} : vector<64x128xf32> to vector<8x128xf32>
    %cst_104 = arith.constant dense<0.000000e+00> : vector<8x128xf32>
    %529 = tpu.matmul %506, %348, %cst_104 {dimension_numbers = #tpu.dot_dimension_numbers<[1], [0], [0], [1], [0, 0, 1, 1], [], []>} : vector<8x32xf32>, vector<32x128xf32>, vector<8x128xf32> -> vector<8x128xf32>
    %530 = arith.addf %528, %529 : vector<8x128xf32>
    %531 = vector.extract_strided_slice %530 {offsets = [0, 0], sizes = [8, 96], strides = [1, 1]} : vector<8x128xf32> to vector<8x96xf32>
    %532 = arith.negf %531 : vector<8x96xf32>
    %533 = math.exp %532 : vector<8x96xf32>
    %cst_105 = arith.constant 1.000000e+00 : f32
    %534 = vector.broadcast %cst_105 : f32 to vector<8x96xf32>
    %535 = arith.addf %534, %533 : vector<8x96xf32>
    %536 = arith.divf %534, %535 : vector<8x96xf32>
    %537 = vector.extract_strided_slice %536 {offsets = [0, 0], sizes = [8, 32], strides = [1, 1]} : vector<8x96xf32> to vector<8x32xf32>
    %538 = vector.extract_strided_slice %536 {offsets = [0, 32], sizes = [8, 32], strides = [1, 1]} : vector<8x96xf32> to vector<8x32xf32>
    %539 = vector.extract_strided_slice %536 {offsets = [0, 64], sizes = [8, 32], strides = [1, 1]} : vector<8x96xf32> to vector<8x32xf32>
    %540 = vector.extract_strided_slice %530 {offsets = [0, 96], sizes = [8, 32], strides = [1, 1]} : vector<8x128xf32> to vector<8x32xf32>
    %541 = math.tanh %540 : vector<8x32xf32>
    %542 = arith.mulf %538, %504 : vector<8x32xf32>
    %543 = arith.mulf %537, %541 : vector<8x32xf32>
    %544 = arith.addf %542, %543 : vector<8x32xf32>
    %545 = math.tanh %544 : vector<8x32xf32>
    %546 = arith.mulf %539, %545 : vector<8x32xf32>
    %547 = arith.addf %507, %527 : vector<8x32xf32>
    %548 = arith.addf %508, %546 : vector<8x32xf32>
    %549 = vector.extract_strided_slice %343 {offsets = [40, 0], sizes = [8, 128], strides = [1, 1]} : vector<64x128xf32> to vector<8x128xf32>
    %cst_106 = arith.constant dense<0.000000e+00> : vector<8x128xf32>
    %550 = tpu.matmul %527, %346, %cst_106 {dimension_numbers = #tpu.dot_dimension_numbers<[1], [0], [0], [1], [0, 0, 1, 1], [], []>} : vector<8x32xf32>, vector<32x128xf32>, vector<8x128xf32> -> vector<8x128xf32>
    %551 = arith.addf %549, %550 : vector<8x128xf32>
    %552 = vector.extract_strided_slice %551 {offsets = [0, 0], sizes = [8, 96], strides = [1, 1]} : vector<8x128xf32> to vector<8x96xf32>
    %553 = arith.negf %552 : vector<8x96xf32>
    %554 = math.exp %553 : vector<8x96xf32>
    %cst_107 = arith.constant 1.000000e+00 : f32
    %555 = vector.broadcast %cst_107 : f32 to vector<8x96xf32>
    %556 = arith.addf %555, %554 : vector<8x96xf32>
    %557 = arith.divf %555, %556 : vector<8x96xf32>
    %558 = vector.extract_strided_slice %557 {offsets = [0, 0], sizes = [8, 32], strides = [1, 1]} : vector<8x96xf32> to vector<8x32xf32>
    %559 = vector.extract_strided_slice %557 {offsets = [0, 32], sizes = [8, 32], strides = [1, 1]} : vector<8x96xf32> to vector<8x32xf32>
    %560 = vector.extract_strided_slice %557 {offsets = [0, 64], sizes = [8, 32], strides = [1, 1]} : vector<8x96xf32> to vector<8x32xf32>
    %561 = vector.extract_strided_slice %551 {offsets = [0, 96], sizes = [8, 32], strides = [1, 1]} : vector<8x128xf32> to vector<8x32xf32>
    %562 = math.tanh %561 : vector<8x32xf32>
    %563 = arith.mulf %559, %525 : vector<8x32xf32>
    %564 = arith.mulf %558, %562 : vector<8x32xf32>
    %565 = arith.addf %563, %564 : vector<8x32xf32>
    %566 = math.tanh %565 : vector<8x32xf32>
    %567 = arith.mulf %560, %566 : vector<8x32xf32>
    %568 = vector.extract_strided_slice %344 {offsets = [16, 0], sizes = [8, 128], strides = [1, 1]} : vector<64x128xf32> to vector<8x128xf32>
    %cst_108 = arith.constant dense<0.000000e+00> : vector<8x128xf32>
    %569 = tpu.matmul %546, %348, %cst_108 {dimension_numbers = #tpu.dot_dimension_numbers<[1], [0], [0], [1], [0, 0, 1, 1], [], []>} : vector<8x32xf32>, vector<32x128xf32>, vector<8x128xf32> -> vector<8x128xf32>
    %570 = arith.addf %568, %569 : vector<8x128xf32>
    %571 = vector.extract_strided_slice %570 {offsets = [0, 0], sizes = [8, 96], strides = [1, 1]} : vector<8x128xf32> to vector<8x96xf32>
    %572 = arith.negf %571 : vector<8x96xf32>
    %573 = math.exp %572 : vector<8x96xf32>
    %cst_109 = arith.constant 1.000000e+00 : f32
    %574 = vector.broadcast %cst_109 : f32 to vector<8x96xf32>
    %575 = arith.addf %574, %573 : vector<8x96xf32>
    %576 = arith.divf %574, %575 : vector<8x96xf32>
    %577 = vector.extract_strided_slice %576 {offsets = [0, 0], sizes = [8, 32], strides = [1, 1]} : vector<8x96xf32> to vector<8x32xf32>
    %578 = vector.extract_strided_slice %576 {offsets = [0, 32], sizes = [8, 32], strides = [1, 1]} : vector<8x96xf32> to vector<8x32xf32>
    %579 = vector.extract_strided_slice %576 {offsets = [0, 64], sizes = [8, 32], strides = [1, 1]} : vector<8x96xf32> to vector<8x32xf32>
    %580 = vector.extract_strided_slice %570 {offsets = [0, 96], sizes = [8, 32], strides = [1, 1]} : vector<8x128xf32> to vector<8x32xf32>
    %581 = math.tanh %580 : vector<8x32xf32>
    %582 = arith.mulf %578, %544 : vector<8x32xf32>
    %583 = arith.mulf %577, %581 : vector<8x32xf32>
    %584 = arith.addf %582, %583 : vector<8x32xf32>
    %585 = math.tanh %584 : vector<8x32xf32>
    %586 = arith.mulf %579, %585 : vector<8x32xf32>
    %587 = arith.addf %547, %567 : vector<8x32xf32>
    %588 = arith.addf %548, %586 : vector<8x32xf32>
    %589 = vector.extract_strided_slice %343 {offsets = [48, 0], sizes = [8, 128], strides = [1, 1]} : vector<64x128xf32> to vector<8x128xf32>
    %cst_110 = arith.constant dense<0.000000e+00> : vector<8x128xf32>
    %590 = tpu.matmul %567, %346, %cst_110 {dimension_numbers = #tpu.dot_dimension_numbers<[1], [0], [0], [1], [0, 0, 1, 1], [], []>} : vector<8x32xf32>, vector<32x128xf32>, vector<8x128xf32> -> vector<8x128xf32>
    %591 = arith.addf %589, %590 : vector<8x128xf32>
    %592 = vector.extract_strided_slice %591 {offsets = [0, 0], sizes = [8, 96], strides = [1, 1]} : vector<8x128xf32> to vector<8x96xf32>
    %593 = arith.negf %592 : vector<8x96xf32>
    %594 = math.exp %593 : vector<8x96xf32>
    %cst_111 = arith.constant 1.000000e+00 : f32
    %595 = vector.broadcast %cst_111 : f32 to vector<8x96xf32>
    %596 = arith.addf %595, %594 : vector<8x96xf32>
    %597 = arith.divf %595, %596 : vector<8x96xf32>
    %598 = vector.extract_strided_slice %597 {offsets = [0, 0], sizes = [8, 32], strides = [1, 1]} : vector<8x96xf32> to vector<8x32xf32>
    %599 = vector.extract_strided_slice %597 {offsets = [0, 32], sizes = [8, 32], strides = [1, 1]} : vector<8x96xf32> to vector<8x32xf32>
    %600 = vector.extract_strided_slice %597 {offsets = [0, 64], sizes = [8, 32], strides = [1, 1]} : vector<8x96xf32> to vector<8x32xf32>
    %601 = vector.extract_strided_slice %591 {offsets = [0, 96], sizes = [8, 32], strides = [1, 1]} : vector<8x128xf32> to vector<8x32xf32>
    %602 = math.tanh %601 : vector<8x32xf32>
    %603 = arith.mulf %599, %565 : vector<8x32xf32>
    %604 = arith.mulf %598, %602 : vector<8x32xf32>
    %605 = arith.addf %603, %604 : vector<8x32xf32>
    %606 = math.tanh %605 : vector<8x32xf32>
    %607 = arith.mulf %600, %606 : vector<8x32xf32>
    %608 = vector.extract_strided_slice %344 {offsets = [8, 0], sizes = [8, 128], strides = [1, 1]} : vector<64x128xf32> to vector<8x128xf32>
    %cst_112 = arith.constant dense<0.000000e+00> : vector<8x128xf32>
    %609 = tpu.matmul %586, %348, %cst_112 {dimension_numbers = #tpu.dot_dimension_numbers<[1], [0], [0], [1], [0, 0, 1, 1], [], []>} : vector<8x32xf32>, vector<32x128xf32>, vector<8x128xf32> -> vector<8x128xf32>
    %610 = arith.addf %608, %609 : vector<8x128xf32>
    %611 = vector.extract_strided_slice %610 {offsets = [0, 0], sizes = [8, 96], strides = [1, 1]} : vector<8x128xf32> to vector<8x96xf32>
    %612 = arith.negf %611 : vector<8x96xf32>
    %613 = math.exp %612 : vector<8x96xf32>
    %cst_113 = arith.constant 1.000000e+00 : f32
    %614 = vector.broadcast %cst_113 : f32 to vector<8x96xf32>
    %615 = arith.addf %614, %613 : vector<8x96xf32>
    %616 = arith.divf %614, %615 : vector<8x96xf32>
    %617 = vector.extract_strided_slice %616 {offsets = [0, 0], sizes = [8, 32], strides = [1, 1]} : vector<8x96xf32> to vector<8x32xf32>
    %618 = vector.extract_strided_slice %616 {offsets = [0, 32], sizes = [8, 32], strides = [1, 1]} : vector<8x96xf32> to vector<8x32xf32>
    %619 = vector.extract_strided_slice %616 {offsets = [0, 64], sizes = [8, 32], strides = [1, 1]} : vector<8x96xf32> to vector<8x32xf32>
    %620 = vector.extract_strided_slice %610 {offsets = [0, 96], sizes = [8, 32], strides = [1, 1]} : vector<8x128xf32> to vector<8x32xf32>
    %621 = math.tanh %620 : vector<8x32xf32>
    %622 = arith.mulf %618, %584 : vector<8x32xf32>
    %623 = arith.mulf %617, %621 : vector<8x32xf32>
    %624 = arith.addf %622, %623 : vector<8x32xf32>
    %625 = math.tanh %624 : vector<8x32xf32>
    %626 = arith.mulf %619, %625 : vector<8x32xf32>
    %627 = arith.addf %587, %607 : vector<8x32xf32>
    %628 = arith.addf %588, %626 : vector<8x32xf32>
    %629 = vector.extract_strided_slice %343 {offsets = [56, 0], sizes = [8, 128], strides = [1, 1]} : vector<64x128xf32> to vector<8x128xf32>
    %cst_114 = arith.constant dense<0.000000e+00> : vector<8x128xf32>
    %630 = tpu.matmul %607, %346, %cst_114 {dimension_numbers = #tpu.dot_dimension_numbers<[1], [0], [0], [1], [0, 0, 1, 1], [], []>} : vector<8x32xf32>, vector<32x128xf32>, vector<8x128xf32> -> vector<8x128xf32>
    %631 = arith.addf %629, %630 : vector<8x128xf32>
    %632 = vector.extract_strided_slice %631 {offsets = [0, 0], sizes = [8, 96], strides = [1, 1]} : vector<8x128xf32> to vector<8x96xf32>
    %633 = arith.negf %632 : vector<8x96xf32>
    %634 = math.exp %633 : vector<8x96xf32>
    %cst_115 = arith.constant 1.000000e+00 : f32
    %635 = vector.broadcast %cst_115 : f32 to vector<8x96xf32>
    %636 = arith.addf %635, %634 : vector<8x96xf32>
    %637 = arith.divf %635, %636 : vector<8x96xf32>
    %638 = vector.extract_strided_slice %637 {offsets = [0, 0], sizes = [8, 32], strides = [1, 1]} : vector<8x96xf32> to vector<8x32xf32>
    %639 = vector.extract_strided_slice %637 {offsets = [0, 32], sizes = [8, 32], strides = [1, 1]} : vector<8x96xf32> to vector<8x32xf32>
    %640 = vector.extract_strided_slice %637 {offsets = [0, 64], sizes = [8, 32], strides = [1, 1]} : vector<8x96xf32> to vector<8x32xf32>
    %641 = vector.extract_strided_slice %631 {offsets = [0, 96], sizes = [8, 32], strides = [1, 1]} : vector<8x128xf32> to vector<8x32xf32>
    %642 = math.tanh %641 : vector<8x32xf32>
    %643 = arith.mulf %639, %605 : vector<8x32xf32>
    %644 = arith.mulf %638, %642 : vector<8x32xf32>
    %645 = arith.addf %643, %644 : vector<8x32xf32>
    %646 = math.tanh %645 : vector<8x32xf32>
    %647 = arith.mulf %640, %646 : vector<8x32xf32>
    %648 = vector.extract_strided_slice %344 {offsets = [0, 0], sizes = [8, 128], strides = [1, 1]} : vector<64x128xf32> to vector<8x128xf32>
    %cst_116 = arith.constant dense<0.000000e+00> : vector<8x128xf32>
    %649 = tpu.matmul %626, %348, %cst_116 {dimension_numbers = #tpu.dot_dimension_numbers<[1], [0], [0], [1], [0, 0, 1, 1], [], []>} : vector<8x32xf32>, vector<32x128xf32>, vector<8x128xf32> -> vector<8x128xf32>
    %650 = arith.addf %648, %649 : vector<8x128xf32>
    %651 = vector.extract_strided_slice %650 {offsets = [0, 0], sizes = [8, 96], strides = [1, 1]} : vector<8x128xf32> to vector<8x96xf32>
    %652 = arith.negf %651 : vector<8x96xf32>
    %653 = math.exp %652 : vector<8x96xf32>
    %cst_117 = arith.constant 1.000000e+00 : f32
    %654 = vector.broadcast %cst_117 : f32 to vector<8x96xf32>
    %655 = arith.addf %654, %653 : vector<8x96xf32>
    %656 = arith.divf %654, %655 : vector<8x96xf32>
    %657 = vector.extract_strided_slice %656 {offsets = [0, 0], sizes = [8, 32], strides = [1, 1]} : vector<8x96xf32> to vector<8x32xf32>
    %658 = vector.extract_strided_slice %656 {offsets = [0, 32], sizes = [8, 32], strides = [1, 1]} : vector<8x96xf32> to vector<8x32xf32>
    %659 = vector.extract_strided_slice %656 {offsets = [0, 64], sizes = [8, 32], strides = [1, 1]} : vector<8x96xf32> to vector<8x32xf32>
    %660 = vector.extract_strided_slice %650 {offsets = [0, 96], sizes = [8, 32], strides = [1, 1]} : vector<8x128xf32> to vector<8x32xf32>
    %661 = math.tanh %660 : vector<8x32xf32>
    %662 = arith.mulf %658, %624 : vector<8x32xf32>
    %663 = arith.mulf %657, %661 : vector<8x32xf32>
    %664 = arith.addf %662, %663 : vector<8x32xf32>
    %665 = math.tanh %664 : vector<8x32xf32>
    %666 = arith.mulf %659, %665 : vector<8x32xf32>
    %667 = arith.addf %627, %647 : vector<8x32xf32>
    %668 = arith.addf %628, %666 : vector<8x32xf32>
    %cst_118 = arith.constant 1.250000e-01 : f32
    %669 = vector.broadcast %cst_118 : f32 to vector<8x32xf32>
    %670 = arith.mulf %667, %669 : vector<8x32xf32>
    %cst_119 = arith.constant 1.250000e-01 : f32
    %671 = vector.broadcast %cst_119 : f32 to vector<8x32xf32>
    %672 = arith.mulf %668, %671 : vector<8x32xf32>
    %c0_120 = arith.constant 0 : index
    %c0_121 = arith.constant 0 : index
    %673 = vector.load %arg9[%c0_120, %c0_121] : memref<32x32xf32, #tpu.memory_space<vmem>>, vector<32x32xf32>
    %cst_122 = arith.constant dense<0.000000e+00> : vector<8x32xf32>
    %674 = tpu.matmul %670, %673, %cst_122 {dimension_numbers = #tpu.dot_dimension_numbers<[1], [0], [0], [1], [0, 0, 1, 1], [], []>} : vector<8x32xf32>, vector<32x32xf32>, vector<8x32xf32> -> vector<8x32xf32>
    %c0_123 = arith.constant 0 : index
    %c0_124 = arith.constant 0 : index
    %675 = vector.load %arg10[%c0_123, %c0_124] : memref<32x32xf32, #tpu.memory_space<vmem>>, vector<32x32xf32>
    %cst_125 = arith.constant dense<0.000000e+00> : vector<8x32xf32>
    %676 = tpu.matmul %672, %675, %cst_125 {dimension_numbers = #tpu.dot_dimension_numbers<[1], [0], [0], [1], [0, 0, 1, 1], [], []>} : vector<8x32xf32>, vector<32x32xf32>, vector<8x32xf32> -> vector<8x32xf32>
    %677 = arith.addf %674, %676 : vector<8x32xf32>
    %c0_126 = arith.constant 0 : index
    %c0_127 = arith.constant 0 : index
    %678 = vector.load %arg11[%c0_126, %c0_127] : memref<1x32xf32, #tpu.memory_space<vmem>>, vector<1x32xf32>
    %679 = vector.broadcast %678 : vector<1x32xf32> to vector<8x32xf32>
    %680 = arith.addf %677, %679 : vector<8x32xf32>
    %cst_128 = arith.constant 0.000000e+00 : f32
    %681 = vector.broadcast %cst_128 : f32 to vector<8x32xf32>
    %682 = arith.maximumf %680, %681 : vector<8x32xf32>
    %c0_129 = arith.constant 0 : index
    %c0_130 = arith.constant 0 : index
    %683 = vector.load %arg14[%c0_129, %c0_130] : memref<1x32xf32, #tpu.memory_space<vmem>>, vector<1x32xf32>
    %684 = vector.broadcast %683 : vector<1x32xf32> to vector<8x32xf32>
    %685 = arith.subf %682, %684 : vector<8x32xf32>
    %c0_131 = arith.constant 0 : index
    %c0_132 = arith.constant 0 : index
    %686 = vector.load %arg15[%c0_131, %c0_132] : memref<1x32xf32, #tpu.memory_space<vmem>>, vector<1x32xf32>
    %cst_133 = arith.constant 9.99999974E-6 : f32
    %687 = vector.broadcast %cst_133 : f32 to vector<1x32xf32>
    %688 = arith.addf %686, %687 : vector<1x32xf32>
    %689 = math.rsqrt %688 : vector<1x32xf32>
    %690 = vector.broadcast %689 : vector<1x32xf32> to vector<8x32xf32>
    %691 = arith.mulf %685, %690 : vector<8x32xf32>
    %c0_134 = arith.constant 0 : index
    %c0_135 = arith.constant 0 : index
    %692 = vector.load %arg12[%c0_134, %c0_135] : memref<1x32xf32, #tpu.memory_space<vmem>>, vector<1x32xf32>
    %693 = vector.broadcast %692 : vector<1x32xf32> to vector<8x32xf32>
    %694 = arith.mulf %691, %693 : vector<8x32xf32>
    %c0_136 = arith.constant 0 : index
    %c0_137 = arith.constant 0 : index
    %695 = vector.load %arg13[%c0_136, %c0_137] : memref<1x32xf32, #tpu.memory_space<vmem>>, vector<1x32xf32>
    %696 = vector.broadcast %695 : vector<1x32xf32> to vector<8x32xf32>
    %697 = arith.addf %694, %696 : vector<8x32xf32>
    %c0_138 = arith.constant 0 : index
    %c0_139 = arith.constant 0 : index
    %698 = vector.load %arg16[%c0_138, %c0_139] : memref<32x128xf32, #tpu.memory_space<vmem>>, vector<32x128xf32>
    %cst_140 = arith.constant dense<0.000000e+00> : vector<8x128xf32>
    %699 = tpu.matmul %697, %698, %cst_140 {dimension_numbers = #tpu.dot_dimension_numbers<[1], [0], [0], [1], [0, 0, 1, 1], [], []>} : vector<8x32xf32>, vector<32x128xf32>, vector<8x128xf32> -> vector<8x128xf32>
    %c0_141 = arith.constant 0 : index
    %c0_142 = arith.constant 0 : index
    %700 = vector.load %arg17[%c0_141, %c0_142] : memref<1x128xf32, #tpu.memory_space<vmem>>, vector<1x128xf32>
    %701 = vector.broadcast %700 : vector<1x128xf32> to vector<8x128xf32>
    %702 = arith.addf %699, %701 : vector<8x128xf32>
    %c0_143 = arith.constant 0 : index
    %703 = memref.load %arg18[%c0_143] : memref<1xf32, #tpu.memory_space<smem>>
    %cst_144 = arith.constant 9.99999997E-7 : f32
    %704 = arith.maximumf %703, %cst_144 : f32
    %705 = vector.broadcast %704 : f32 to vector<8x128xf32>
    %706 = arith.divf %702, %705 : vector<8x128xf32>
    %c0_145 = arith.constant 0 : index
    %c0_146 = arith.constant 0 : index
    %707 = vector.load %arg19[%c0_145, %c0_146] : memref<8x128xf32, #tpu.memory_space<vmem>>, vector<8x128xf32>
    tpu.vector_store %arg19[%c0_145, %c0_146], %706 {strides = array<i32>} : memref<8x128xf32, #tpu.memory_space<vmem>>, vector<8x128xf32>,
    return
  }
  func.func @transform_0(%arg0: i32) -> (i32, i32) {
    %c0_i32 = arith.constant 0 : i32
    %c0_i32_0 = arith.constant 0 : i32
    %c0_i32_1 = arith.constant 0 : i32
    return %c0_i32, %c0_i32_0 : i32, i32
  }
  func.func @transform_1(%arg0: i32) -> (i32, i32) {
    %c0_i32 = arith.constant 0 : i32
    %c0_i32_0 = arith.constant 0 : i32
    %c0_i32_1 = arith.constant 0 : i32
    return %c0_i32, %c0_i32_0 : i32, i32
  }
  func.func @transform_2(%arg0: i32) -> (i32, i32, i32) {
    %c0_i32 = arith.constant 0 : i32
    %c0_i32_0 = arith.constant 0 : i32
    %c0_i32_1 = arith.constant 0 : i32
    %c0_i32_2 = arith.constant 0 : i32
    return %c0_i32, %c0_i32_0, %c0_i32_1 : i32, i32, i32
  }
  func.func @transform_3(%arg0: i32) -> (i32, i32) {
    %c0_i32 = arith.constant 0 : i32
    %c0_i32_0 = arith.constant 0 : i32
    %c0_i32_1 = arith.constant 0 : i32
    return %c0_i32, %c0_i32_0 : i32, i32
  }
  func.func @transform_4(%arg0: i32) -> (i32, i32) {
    %c0_i32 = arith.constant 0 : i32
    %c0_i32_0 = arith.constant 0 : i32
    %c0_i32_1 = arith.constant 0 : i32
    return %c0_i32, %c0_i32_0 : i32, i32
  }
  func.func @transform_5(%arg0: i32) -> (i32, i32) {
    %c0_i32 = arith.constant 0 : i32
    %c0_i32_0 = arith.constant 0 : i32
    %c0_i32_1 = arith.constant 0 : i32
    return %c0_i32, %c0_i32_0 : i32, i32
  }
  func.func @transform_6(%arg0: i32) -> (i32, i32, i32) {
    %c0_i32 = arith.constant 0 : i32
    %c0_i32_0 = arith.constant 0 : i32
    %c0_i32_1 = arith.constant 0 : i32
    %c0_i32_2 = arith.constant 0 : i32
    return %c0_i32, %c0_i32_0, %c0_i32_1 : i32, i32, i32
  }
  func.func @transform_7(%arg0: i32) -> (i32, i32) {
    %c0_i32 = arith.constant 0 : i32
    %c0_i32_0 = arith.constant 0 : i32
    %c0_i32_1 = arith.constant 0 : i32
    return %c0_i32, %c0_i32_0 : i32, i32
  }
  func.func @transform_8(%arg0: i32) -> (i32, i32) {
    %c0_i32 = arith.constant 0 : i32
    %c0_i32_0 = arith.constant 0 : i32
    %c0_i32_1 = arith.constant 0 : i32
    return %c0_i32, %c0_i32_0 : i32, i32
  }
  func.func @transform_9(%arg0: i32) -> (i32, i32) {
    %c0_i32 = arith.constant 0 : i32
    %c0_i32_0 = arith.constant 0 : i32
    %c0_i32_1 = arith.constant 0 : i32
    return %c0_i32, %c0_i32_0 : i32, i32
  }
  func.func @transform_10(%arg0: i32) -> (i32, i32) {
    %c0_i32 = arith.constant 0 : i32
    %c0_i32_0 = arith.constant 0 : i32
    %c0_i32_1 = arith.constant 0 : i32
    return %c0_i32, %c0_i32_0 : i32, i32
  }
  func.func @transform_11(%arg0: i32) -> (i32, i32) {
    %c0_i32 = arith.constant 0 : i32
    %c0_i32_0 = arith.constant 0 : i32
    %c0_i32_1 = arith.constant 0 : i32
    return %c0_i32, %c0_i32_0 : i32, i32
  }
  func.func @transform_12(%arg0: i32) -> (i32, i32) {
    %c0_i32 = arith.constant 0 : i32
    %c0_i32_0 = arith.constant 0 : i32
    %c0_i32_1 = arith.constant 0 : i32
    return %c0_i32, %c0_i32_0 : i32, i32
  }
  func.func @transform_13(%arg0: i32) -> (i32, i32) {
    %c0_i32 = arith.constant 0 : i32
    %c0_i32_0 = arith.constant 0 : i32
    %c0_i32_1 = arith.constant 0 : i32
    return %c0_i32, %c0_i32_0 : i32, i32
  }
  func.func @transform_14(%arg0: i32) -> (i32, i32) {
    %c0_i32 = arith.constant 0 : i32
    %c0_i32_0 = arith.constant 0 : i32
    %c0_i32_1 = arith.constant 0 : i32
    return %c0_i32, %c0_i32_0 : i32, i32
  }
  func.func @transform_15(%arg0: i32) -> (i32, i32) {
    %c0_i32 = arith.constant 0 : i32
    %c0_i32_0 = arith.constant 0 : i32
    %c0_i32_1 = arith.constant 0 : i32
    return %c0_i32, %c0_i32_0 : i32, i32
  }
  func.func @transform_16(%arg0: i32) -> (i32, i32) {
    %c0_i32 = arith.constant 0 : i32
    %c0_i32_0 = arith.constant 0 : i32
    %c0_i32_1 = arith.constant 0 : i32
    return %c0_i32, %c0_i32_0 : i32, i32
  }
  func.func @transform_17(%arg0: i32) -> i32 {
    %c0_i32 = arith.constant 0 : i32
    %c0_i32_0 = arith.constant 0 : i32
    return %c0_i32 : i32
  }
  func.func @transform_18(%arg0: i32) -> (i32, i32) {
    %c0_i32 = arith.constant 0 : i32
    %c0_i32_0 = arith.constant 0 : i32
    %c0_i32_1 = arith.constant 0 : i32
    return %c0_i32, %c0_i32_0 : i32, i32
  }
}

</mosaic_0001>

<llo_original>
// kernel: af_prediction_forward.1
$region0: #{af_prediction_forward.1}
  #allocation0 [shape = 'u32[]', space=smem, size = 0x4, offset = 0x4, fixed_abs, tag = 'smem constant byte address 0x4 - core index']
  #allocation1 [shape = 'u32[144,128]{1,0:T(1,128)}', space=vmem, size = 0x12000, scoped, tag = 'internal scratch']
  #allocation2 [shape = 'f32[64,32]{1,0:T(8,128)}', space=vmem, size = 0x8000, scoped, tag = 'scratch operand']
  #allocation3 [shape = 'f32[64,32]{1,0:T(8,128)}', space=vmem, size = 0x8000, scoped, tag = 'scratch operand']
  #allocation4 [shape = 'f32[1]{0:T(128)S(6)}', space=smem, size = 0x200, scoped, tag = 'scoped memory for af_prediction_forward.1']
  %s0 = inlined_call_operand.vmem [shape: f32[64,16], index: 0, kind: input, shape index: {}]
  %s1 = inlined_call_operand.hbm [shape: f32[16,256], index: 1, kind: input, shape index: {}]
  %s2 = inlined_call_operand.vmem [shape: f32[2,32,128], index: 2, kind: input, shape index: {}]
  %s3 = inlined_call_operand.vmem [shape: f32[1,256], index: 3, kind: input, shape index: {}]
  %s4 = inlined_call_operand.vmem [shape: f32[32,256], index: 4, kind: input, shape index: {}]
  %s5 = inlined_call_operand.vmem [shape: f32[32,256], index: 5, kind: input, shape index: {}]
  %s6 = inlined_call_operand.hbm [shape: f32[2,32,128], index: 6, kind: input, shape index: {}]
  %s7 = inlined_call_operand.vmem [shape: f32[1,256], index: 7, kind: input, shape index: {}]
  %s8 = inlined_call_operand.vmem [shape: f32[32,32], index: 8, kind: input, shape index: {}]
  %s9 = inlined_call_operand.hbm [shape: f32[32,32], index: 9, kind: input, shape index: {}]
  %s10 = inlined_call_operand.vmem [shape: f32[1,32], index: 10, kind: input, shape index: {}]
  %s11 = inlined_call_operand.vmem [shape: f32[1,32], index: 11, kind: input, shape index: {}]
  %s12 = inlined_call_operand.vmem [shape: f32[1,32], index: 12, kind: input, shape index: {}]
  %s13 = inlined_call_operand.vmem [shape: f32[1,32], index: 13, kind: input, shape index: {}]
  %s14 = inlined_call_operand.vmem [shape: f32[1,32], index: 14, kind: input, shape index: {}]
  %s15 = inlined_call_operand.hbm [shape: f32[32,128], index: 15, kind: input, shape index: {}]
  %s16 = inlined_call_operand.hbm [shape: f32[1,128], index: 16, kind: input, shape index: {}]
  %s17 = inlined_call_operand.<no memory space> [shape: f32[1], index: 17, kind: input, shape index: {}]
  %s18 = inlined_call_operand.vmem [shape: f32[8,128], index: 18, kind: output, shape index: {}]
  %s19 = sld [smem:[#allocation0]]
  $region102: #{af_prediction_forward.1} parent=0
    _
  %s21 = ssub.s32 1, %s19
  %s22 = scalar_select 0, %s21, %s19
  %23 = sst [smem:[#allocation4]] %s17
  $region1: #{af_prediction_forward.1} parent=0
    #allocation5 [shape = 'u8[16384]{0}', space=vmem, size = 0x4000, scoped, tag = 'input window, operand 1, single buffered']
    #allocation6 [shape = 's32[1]{0}', space=sflag, size = 0x4, scoped, tag = 'scoped memory for af_prediction_forward.1']
    #allocation7 [shape = 'u8[32768]{0}', space=vmem, size = 0x8000, scoped, tag = 'input window, operand 6, single buffered']
    #allocation8 [shape = 's32[1]{0}', space=sflag, size = 0x4, scoped, tag = 'scoped memory for af_prediction_forward.1']
    #allocation9 [shape = 'u8[16384]{0}', space=vmem, size = 0x4000, scoped, tag = 'input window, operand 9, single buffered']
    #allocation10 [shape = 'u8[16384]{0}', space=vmem, size = 0x4000, scoped, tag = 'input window, operand 15, single buffered']
    #allocation11 [shape = 's32[1]{0}', space=sflag, size = 0x4, scoped, tag = 'scoped memory for af_prediction_forward.1']
    #allocation12 [shape = 'u8[512]{0}', space=vmem, size = 0x400, scoped, tag = 'input window, operand 16, single buffered']
    %24 = vsyncpa [#allocation6], 0
    %25 = vsyncpa [#allocation8], 0
    %26 = vsyncpa [#allocation11], 0
    // Predicated region
    $region2: #{af_prediction_forward.1} parent=1 // pred_check
      _
    $region3: #{af_prediction_forward.1} parent=1 // pred_check_branch
      %28 = sbr.rel (0) target = $region5
    $region4: #{af_prediction_forward.1} parent=1 // pred_region
      _
    $region5: #{af_prediction_forward.1} parent=1 // pred_fallthru
      _
    // Predicated region
    $region6: #{af_prediction_forward.1} parent=1 // pred_check
      _
    $region7: #{af_prediction_forward.1} parent=1 // pred_check_branch
      %30 = sbr.rel (0) target = $region9
    $region8: #{af_prediction_forward.1} parent=1 // pred_region
      %s32 = ssub.s32 512, 512
      %33 = vsyncadd [#allocation6], %s32
      %s34 = sshll.u32 [#allocation5], 4
      %s35 = int_to_ptr.vmem [resolvable:$true] %s34
      %40 = dma.hbm_to_vmem [thread:$0]  %s1, 512, %s35, [#allocation6], 256, 256, 16
    $region9: #{af_prediction_forward.1} parent=1 // pred_fallthru
      _
    // Predicated region
    $region10: #{af_prediction_forward.1} parent=1 // pred_check
      _
    $region11: #{af_prediction_forward.1} parent=1 // pred_check_branch
      %42 = sbr.rel (0) target = $region13
    $region12: #{af_prediction_forward.1} parent=1 // pred_region
      _
    $region13: #{af_prediction_forward.1} parent=1 // pred_fallthru
      _
    // Predicated region
    $region14: #{af_prediction_forward.1} parent=1 // pred_check
      _
    $region15: #{af_prediction_forward.1} parent=1 // pred_check_branch
      %44 = sbr.rel (0) target = $region17
    $region16: #{af_prediction_forward.1} parent=1 // pred_region
      _
    $region17: #{af_prediction_forward.1} parent=1 // pred_fallthru
      _
    // Predicated region
    $region18: #{af_prediction_forward.1} parent=1 // pred_check
      _
    $region19: #{af_prediction_forward.1} parent=1 // pred_check_branch
      %46 = sbr.rel (0) target = $region21
    $region20: #{af_prediction_forward.1} parent=1 // pred_region
      _
    $region21: #{af_prediction_forward.1} parent=1 // pred_fallthru
      _
    // Predicated region
    $region22: #{af_prediction_forward.1} parent=1 // pred_check
      _
    $region23: #{af_prediction_forward.1} parent=1 // pred_check_branch
      %48 = sbr.rel (0) target = $region25
    $region24: #{af_prediction_forward.1} parent=1 // pred_region
      _
    $region25: #{af_prediction_forward.1} parent=1 // pred_fallthru
      _
    // Predicated region
    $region26: #{af_prediction_forward.1} parent=1 // pred_check
      _
    $region27: #{af_prediction_forward.1} parent=1 // pred_check_branch
      %50 = sbr.rel (0) target = $region29
    $region28: #{af_prediction_forward.1} parent=1 // pred_region
      %s52 = ssub.s32 1024, 1024
      %53 = vsyncadd [#allocation8], %s52
      %s54 = sshll.u32 [#allocation7], 4
      %s55 = int_to_ptr.vmem [resolvable:$true] %s54
      %60 = dma.hbm_to_vmem [thread:$0]  %s6, 1024, %s55, [#allocation8], 128, 128, 8
    $region29: #{af_prediction_forward.1} parent=1 // pred_fallthru
      _
    // Predicated region
    $region30: #{af_prediction_forward.1} parent=1 // pred_check
      _
    $region31: #{af_prediction_forward.1} parent=1 // pred_check_branch
      %62 = sbr.rel (0) target = $region33
    $region32: #{af_prediction_forward.1} parent=1 // pred_region
      _
    $region33: #{af_prediction_forward.1} parent=1 // pred_fallthru
      _
    // Predicated region
    $region34: #{af_prediction_forward.1} parent=1 // pred_check
      _
    $region35: #{af_prediction_forward.1} parent=1 // pred_check_branch
      %64 = sbr.rel (0) target = $region37
    $region36: #{af_prediction_forward.1} parent=1 // pred_region
      _
    $region37: #{af_prediction_forward.1} parent=1 // pred_fallthru
      _
    // Predicated region
    $region38: #{af_prediction_forward.1} parent=1 // pred_check
      _
    $region39: #{af_prediction_forward.1} parent=1 // pred_check_branch
      %66 = sbr.rel (0) target = $region41
    $region40: #{af_prediction_forward.1} parent=1 // pred_region
      %s68 = ssub.s32 512, 512
      %69 = vsyncadd [#allocation8], %s68
      %s70 = sshll.u32 [#allocation9], 4
      %s71 = int_to_ptr.vmem [resolvable:$true] %s70
      %76 = dma.hbm_to_vmem [thread:$0]  %s9, 512, %s71, [#allocation8], 128, 128, 8
    $region41: #{af_prediction_forward.1} parent=1 // pred_fallthru
      _
    // Predicated region
    $region42: #{af_prediction_forward.1} parent=1 // pred_check
      _
    $region43: #{af_prediction_forward.1} parent=1 // pred_check_branch
      %78 = sbr.rel (0) target = $region45
    $region44: #{af_prediction_forward.1} parent=1 // pred_region
      _
    $region45: #{af_prediction_forward.1} parent=1 // pred_fallthru
      _
    // Predicated region
    $region46: #{af_prediction_forward.1} parent=1 // pred_check
      _
    $region47: #{af_prediction_forward.1} parent=1 // pred_check_branch
      %80 = sbr.rel (0) target = $region49
    $region48: #{af_prediction_forward.1} parent=1 // pred_region
      _
    $region49: #{af_prediction_forward.1} parent=1 // pred_fallthru
      _
    // Predicated region
    $region50: #{af_prediction_forward.1} parent=1 // pred_check
      _
    $region51: #{af_prediction_forward.1} parent=1 // pred_check_branch
      %82 = sbr.rel (0) target = $region53
    $region52: #{af_prediction_forward.1} parent=1 // pred_region
      _
    $region53: #{af_prediction_forward.1} parent=1 // pred_fallthru
      _
    // Predicated region
    $region54: #{af_prediction_forward.1} parent=1 // pred_check
      _
    $region55: #{af_prediction_forward.1} parent=1 // pred_check_branch
      %84 = sbr.rel (0) target = $region57
    $region56: #{af_prediction_forward.1} parent=1 // pred_region
      _
    $region57: #{af_prediction_forward.1} parent=1 // pred_fallthru
      _
    // Predicated region
    $region58: #{af_prediction_forward.1} parent=1 // pred_check
      _
    $region59: #{af_prediction_forward.1} parent=1 // pred_check_branch
      %86 = sbr.rel (0) target = $region61
    $region60: #{af_prediction_forward.1} parent=1 // pred_region
      _
    $region61: #{af_prediction_forward.1} parent=1 // pred_fallthru
      _
    // Predicated region
    $region62: #{af_prediction_forward.1} parent=1 // pred_check
      _
    $region63: #{af_prediction_forward.1} parent=1 // pred_check_branch
      %88 = sbr.rel (0) target = $region65
    $region64: #{af_prediction_forward.1} parent=1 // pred_region
      %s90 = ssub.s32 512, 512
      %91 = vsyncadd [#allocation11], %s90
      %s92 = sshll.u32 [#allocation10], 4
      %s93 = int_to_ptr.vmem [resolvable:$true] %s92
      %98 = dma.hbm_to_vmem [thread:$0]  %s15, 512, %s93, [#allocation11], 128, 128, 8
    $region65: #{af_prediction_forward.1} parent=1 // pred_fallthru
      _
    // Predicated region
    $region66: #{af_prediction_forward.1} parent=1 // pred_check
      _
    $region67: #{af_prediction_forward.1} parent=1 // pred_check_branch
      %100 = sbr.rel (0) target = $region69
    $region68: #{af_prediction_forward.1} parent=1 // pred_region
      %s102 = ssub.s32 16, 16
      %103 = vsyncadd [#allocation11], %s102
      %s105 = sshll.u32 [#allocation12], 4
      %s106 = int_to_ptr.vmem [resolvable:$true] %s105
      %108 = dma.hbm_to_vmem [thread:$0]  %s16, 16, %s106, [#allocation11]
    $region69: #{af_prediction_forward.1} parent=1 // pred_fallthru
      _
    // Predicated region
    $region70: #{af_prediction_forward.1} parent=1 // pred_check
      _
    $region71: #{af_prediction_forward.1} parent=1 // pred_check_branch
      %110 = sbr.rel (0) target = $region73
    $region72: #{af_prediction_forward.1} parent=1 // pred_region
      _
    $region73: #{af_prediction_forward.1} parent=1 // pred_fallthru
      _
    // Predicated region
    $region74: #{af_prediction_forward.1} parent=1 // pred_check
      _
    $region75: #{af_prediction_forward.1} parent=1 // pred_check_branch
      %112 = sbr.rel (0) target = $region77
    $region76: #{af_prediction_forward.1} parent=1 // pred_region
      %113 = dma.done [#allocation6], 512
    $region77: #{af_prediction_forward.1} parent=1 // pred_fallthru
      _
    // Predicated region
    $region78: #{af_prediction_forward.1} parent=1 // pred_check
      _
    $region79: #{af_prediction_forward.1} parent=1 // pred_check_branch
      %115 = sbr.rel (0) target = $region81
    $region80: #{af_prediction_forward.1} parent=1 // pred_region
      %116 = dma.done [#allocation8], 1024
    $region81: #{af_prediction_forward.1} parent=1 // pred_fallthru
      _
    // Predicated region
    $region82: #{af_prediction_forward.1} parent=1 // pred_check
      _
    $region83: #{af_prediction_forward.1} parent=1 // pred_check_branch
      %118 = sbr.rel (0) target = $region85
    $region84: #{af_prediction_forward.1} parent=1 // pred_region
      %119 = dma.done [#allocation8], 512
    $region85: #{af_prediction_forward.1} parent=1 // pred_fallthru
      _
    // Predicated region
    $region86: #{af_prediction_forward.1} parent=1 // pred_check
      _
    $region87: #{af_prediction_forward.1} parent=1 // pred_check_branch
      %121 = sbr.rel (0) target = $region89
    $region88: #{af_prediction_forward.1} parent=1 // pred_region
      %122 = dma.done [#allocation11], 512
    $region89: #{af_prediction_forward.1} parent=1 // pred_fallthru
      _
    // Predicated region
    $region90: #{af_prediction_forward.1} parent=1 // pred_check
      _
    $region91: #{af_prediction_forward.1} parent=1 // pred_check_branch
      %124 = sbr.rel (0) target = $region93
    $region92: #{af_prediction_forward.1} parent=1 // pred_region
      %125 = dma.done [#allocation11], 16
    $region93: #{af_prediction_forward.1} parent=1 // pred_fallthru
      _
    %v126 = vld [vmem:[%s0] sm:$0xff]
    %v127 = vld [vmem:[%s0 + $0x8] sm:$0xff]
    %v128 = vld [vmem:[%s0 + $0x10] sm:$0xff]
    %v129 = vld [vmem:[%s0 + $0x18] sm:$0xff]
    %v130 = vld [vmem:[%s0 + $0x20] sm:$0xff]
    %v131 = vld [vmem:[%s0 + $0x28] sm:$0xff]
    %v132 = vld [vmem:[%s0 + $0x30] sm:$0xff]
    %v133 = vld [vmem:[%s0 + $0x38] sm:$0xff]
    %v134 = vld [vmem:[#allocation5] sm:$0xff]
    %v135 = vld [vmem:[#allocation5 + $0x8] sm:$0xff]
    %v136 = vld [vmem:[#allocation5 + $0x10] sm:$0xff]
    %v137 = vld [vmem:[#allocation5 + $0x18] sm:$0xff]
    %v138 = vld [vmem:[%s3] sm:$0x3]
    %v140 = vlaneseq
    %v141 = vshrl.u32 %v140, 7
    %v142 = vsub.s32 0, %v141
    %v143 = vrot.slane %v138, %v142
    %v144 = vlaneseq
    %v145 = vshrl.u32 %v144, 7
    %v146 = vsub.s32 1, %v145
    %v147 = vrot.slane %v138, %v146
    %vm150 = vcmask 130048
    %v152 = vsel %vm150, %v126, 0
    %v155 = vsel %vm150, %v127, 0
    %v158 = vsel %vm150, %v128, 0
    %v161 = vsel %vm150, %v129, 0
    %v164 = vsel %vm150, %v130, 0
    %v167 = vsel %vm150, %v131, 0
    %v170 = vsel %vm150, %v132, 0
    %v173 = vsel %vm150, %v133, 0
    %175 = vmatprep.subr.mxu0 %v135
    %176 = vmatpush1.msra.mxu0 %v134
    %177 = vmatprep.subr.mxu0 %v137
    %178 = vmatpush1.msra.mxu0 %v136
    %179 = vmatprep.subr.mxu0 0.0
    %180 = vmatpush1.msra.mxu0 0.0
    %181 = vmatprep.subr.mxu0 0.0
    %182 = vmatpush1.msra.mxu0 0.0
    %183 = vmatprep.subr.mxu0 0.0
    %184 = vmatpush1.msra.mxu0 0.0
    %185 = vmatprep.subr.mxu0 0.0
    %186 = vmatpush1.msra.mxu0 0.0
    %187 = vmatprep.subr.mxu0 0.0
    %188 = vmatpush1.msra.mxu0 0.0
    %189 = vmatprep.subr.mxu0 0.0
    %190 = vmatpush1.msra.mxu0 0.0
    %191 = vmatprep.subr.mxu0 0.0
    %192 = vmatpush1.msra.mxu0 0.0
    %193 = vmatprep.subr.mxu0 0.0
    %194 = vmatpush1.msra.mxu0 0.0
    %195 = vmatprep.subr.mxu0 0.0
    %196 = vmatpush1.msra.mxu0 0.0
    %197 = vmatprep.subr.mxu0 0.0
    %198 = vmatpush1.msra.mxu0 0.0
    %199 = vmatprep.subr.mxu0 0.0
    %200 = vmatpush1.msra.mxu0 0.0
    %201 = vmatprep.subr.mxu0 0.0
    %202 = vmatpush1.msra.mxu0 0.0
    %203 = vmatprep.subr.mxu0 0.0
    %204 = vmatpush1.msra.mxu0 0.0
    %205 = vmatprep.subr.mxu0 0.0
    %206 = vmatpush1.msra.mxu0 0.0
    %207 = vmatprep.subr.mxu0 0.0
    %208 = vmatpush1.msra.mxu0 0.0
    %209 = vmatprep.subr.mxu0 0.0
    %210 = vmatpush1.msra.mxu0 0.0
    %211 = vmatprep.subr.mxu0 0.0
    %212 = vmatpush1.msra.mxu0 0.0
    %213 = vmatprep.subr.mxu0 0.0
    %214 = vmatpush1.msra.mxu0 0.0
    %215 = vmatprep.subr.mxu0 0.0
    %216 = vmatpush1.msra.mxu0 0.0
    %217 = vmatprep.subr.mxu0 0.0
    %218 = vmatpush1.msra.mxu0 0.0
    %219 = vmatprep.subr.mxu0 0.0
    %220 = vmatpush1.msra.mxu0 0.0
    %221 = vmatprep.subr.mxu0 0.0
    %222 = vmatpush1.msra.mxu0 0.0
    %223 = vmatprep.subr.mxu0 0.0
    %224 = vmatpush1.msra.mxu0 0.0
    %225 = vmatprep.subr.mxu0 0.0
    %226 = vmatpush1.msra.mxu0 0.0
    %227 = vmatprep.subr.mxu0 0.0
    %228 = vmatpush1.msra.mxu0 0.0
    %229 = vmatprep.subr.mxu0 0.0
    %230 = vmatpush1.msra.mxu0 0.0
    %231 = vmatprep.subr.mxu0 0.0
    %232 = vmatpush1.msra.mxu0 0.0
    %233 = vmatprep.subr.mxu0 0.0
    %234 = vmatpush1.msra.mxu0 0.0
    %235 = vmatprep.subr.mxu0 0.0
    %236 = vmatpush1.msra.mxu0 0.0
    %237 = vmatprep.subr.mxu0 0.0
    %238 = vmatpush1.msra.mxu0 0.0
    %239 = vmatprep.mubr.f32.mxu0 0.0
    %240 = vmatmul.mubr.f32.gmra.mrb[0].mxu0 %v152
    %v241 = vpop.f32.mrb[0].mxu0
    %v242 = vadd.f32 %v143, %v241
    %v243 = vpop.f32.mrb[0].mxu0
    %v244 = vadd.f32 %v147, %v243
    %245 = vmatprep.mubr.f32.mxu0 0.0
    %246 = vmatmul.mubr.f32.gmra.mrb[0].mxu0 %v155
    %v247 = vpop.f32.mrb[0].mxu0
    %v248 = vadd.f32 %v143, %v247
    %v249 = vpop.f32.mrb[0].mxu0
    %v250 = vadd.f32 %v147, %v249
    %251 = vmatprep.mubr.f32.mxu0 0.0
    %252 = vmatmul.mubr.f32.gmra.mrb[0].mxu0 %v158
    %v253 = vpop.f32.mrb[0].mxu0
    %v254 = vadd.f32 %v143, %v253
    %v255 = vpop.f32.mrb[0].mxu0
    %v256 = vadd.f32 %v147, %v255
    %257 = vmatprep.mubr.f32.mxu0 0.0
    %258 = vmatmul.mubr.f32.gmra.mrb[0].mxu0 %v161
    %v259 = vpop.f32.mrb[0].mxu0
    %v260 = vadd.f32 %v143, %v259
    %v261 = vpop.f32.mrb[0].mxu0
    %v262 = vadd.f32 %v147, %v261
    %263 = vmatprep.mubr.f32.mxu0 0.0
    %264 = vmatmul.mubr.f32.gmra.mrb[0].mxu0 %v164
    %v265 = vpop.f32.mrb[0].mxu0
    %v266 = vadd.f32 %v143, %v265
    %v267 = vpop.f32.mrb[0].mxu0
    %v268 = vadd.f32 %v147, %v267
    %269 = vmatprep.mubr.f32.mxu0 0.0
    %270 = vmatmul.mubr.f32.gmra.mrb[0].mxu0 %v167
    %v271 = vpop.f32.mrb[0].mxu0
    %v272 = vadd.f32 %v143, %v271
    %v273 = vpop.f32.mrb[0].mxu0
    %v274 = vadd.f32 %v147, %v273
    %275 = vmatprep.mubr.f32.mxu0 0.0
    %276 = vmatmul.mubr.f32.gmra.mrb[0].mxu0 %v170
    %v277 = vpop.f32.mrb[0].mxu0
    %v278 = vadd.f32 %v143, %v277
    %v279 = vpop.f32.mrb[0].mxu0
    %v280 = vadd.f32 %v147, %v279
    %281 = vmatprep.mubr.f32.mxu0 0.0
    %282 = vmatmul.mubr.f32.gmra.mrb[0].mxu0 %v173
    %v283 = vpop.f32.mrb[0].mxu0
    %v284 = vadd.f32 %v143, %v283
    %v285 = vpop.f32.mrb[0].mxu0
    %v286 = vadd.f32 %v147, %v285
    %287 = vdwg.mxu0
    %v288 = vld [vmem:[%s2] sm:$0xff]
    %v289 = vld [vmem:[%s2 + $0x8] sm:$0xff]
    %v290 = vld [vmem:[%s2 + $0x10] sm:$0xff]
    %v291 = vld [vmem:[%s2 + $0x18] sm:$0xff]
    %s292 = scalar_lea.vmem %s2, 32
    %v293 = vld [vmem:[%s292] sm:$0xff]
    %v294 = vld [vmem:[%s292 + $0x8] sm:$0xff]
    %v295 = vld [vmem:[%s292 + $0x10] sm:$0xff]
    %v296 = vld [vmem:[%s292 + $0x18] sm:$0xff]
    %vm297 = vcmask 261120
    %v299 = vsel %vm297, 0.0, 0
    %301 = vmatprep.subr.mxu0 0.0
    %302 = vmatpush1.msra.mxu0 %v288
    %303 = vmatprep.subr.mxu0 0.0
    %304 = vmatpush1.msra.mxu0 %v289
    %305 = vmatprep.subr.mxu0 0.0
    %306 = vmatpush1.msra.mxu0 %v290
    %307 = vmatprep.subr.mxu0 0.0
    %308 = vmatpush1.msra.mxu0 %v291
    %309 = vmatprep.subr.mxu0 0.0
    %310 = vmatpush1.msra.mxu0 0.0
    %311 = vmatprep.subr.mxu0 0.0
    %312 = vmatpush1.msra.mxu0 0.0
    %313 = vmatprep.subr.mxu0 0.0
    %314 = vmatpush1.msra.mxu0 0.0
    %315 = vmatprep.subr.mxu0 0.0
    %316 = vmatpush1.msra.mxu0 0.0
    %317 = vmatprep.subr.mxu0 0.0
    %318 = vmatpush1.msra.mxu0 0.0
    %319 = vmatprep.subr.mxu0 0.0
    %320 = vmatpush1.msra.mxu0 0.0
    %321 = vmatprep.subr.mxu0 0.0
    %322 = vmatpush1.msra.mxu0 0.0
    %323 = vmatprep.subr.mxu0 0.0
    %324 = vmatpush1.msra.mxu0 0.0
    %325 = vmatprep.subr.mxu0 0.0
    %326 = vmatpush1.msra.mxu0 0.0
    %327 = vmatprep.subr.mxu0 0.0
    %328 = vmatpush1.msra.mxu0 0.0
    %329 = vmatprep.subr.mxu0 0.0
    %330 = vmatpush1.msra.mxu0 0.0
    %331 = vmatprep.subr.mxu0 0.0
    %332 = vmatpush1.msra.mxu0 0.0
    %333 = vmatprep.subr.mxu0 0.0
    %334 = vmatpush1.msra.mxu0 0.0
    %335 = vmatprep.subr.mxu0 0.0
    %336 = vmatpush1.msra.mxu0 0.0
    %337 = vmatprep.subr.mxu0 0.0
    %338 = vmatpush1.msra.mxu0 0.0
    %339 = vmatprep.subr.mxu0 0.0
    %340 = vmatpush1.msra.mxu0 0.0
    %341 = vmatprep.subr.mxu0 0.0
    %342 = vmatpush1.msra.mxu0 0.0
    %343 = vmatprep.subr.mxu0 0.0
    %344 = vmatpush1.msra.mxu0 0.0
    %345 = vmatprep.subr.mxu0 0.0
    %346 = vmatpush1.msra.mxu0 0.0
    %347 = vmatprep.subr.mxu0 0.0
    %348 = vmatpush1.msra.mxu0 0.0
    %349 = vmatprep.subr.mxu0 0.0
    %350 = vmatpush1.msra.mxu0 0.0
    %351 = vmatprep.subr.mxu0 0.0
    %352 = vmatpush1.msra.mxu0 0.0
    %353 = vmatprep.subr.mxu0 0.0
    %354 = vmatpush1.msra.mxu0 0.0
    %355 = vmatprep.subr.mxu0 0.0
    %356 = vmatpush1.msra.mxu0 0.0
    %357 = vmatprep.subr.mxu0 0.0
    %358 = vmatpush1.msra.mxu0 0.0
    %359 = vmatprep.subr.mxu0 0.0
    %360 = vmatpush1.msra.mxu0 0.0
    %361 = vmatprep.subr.mxu0 0.0
    %362 = vmatpush1.msra.mxu0 0.0
    %363 = vmatprep.subr.mxu0 0.0
    %364 = vmatpush1.msra.mxu0 0.0
    %365 = vmatprep.mubr.f32.mxu0 0.0
    %366 = vmatmul.mubr.f32.gmra.mrb[0].mxu0 %v299
    %v367 = vpop.f32.mrb[0].mxu0
    %v368 = vadd.f32 0.0, %v367
    %v369 = vpop.f32.mrb[0].mxu0
    %370 = vdwg.mxu0
    %v371 = vadd.f32 %v242, %v368
    %v372 = vxor.u32 %v371, 2147483648
    %v373 = vmul.f32 %v372, 1.442695
    %v374 = vpow.pop %v373
    %v375 = vadd.f32 %v374, 1.0
    %v376 = vrcp.pop %v375
    %v377 = vmul.f32 1.0, %v376
    %v378 = vtanh.pop %v371
    %v379 = vmul.f32 %v377, 0.0
    %381 = vrot.lane.b32.xlu0 %v378, 32
    %v382 = vpop.permute.xlu0 %381
    %v384 = vmul.f32 %v377, %v382
    %386 = vrot.lane.b32.xlu0 %v384, 32
    %v387 = vpop.permute.xlu0 %386
    %v389 = vadd.f32 %v379, %v387
    %v390 = vtanh.pop %v389
    %392 = vrot.lane.b32.xlu0 %v390, 32
    %v393 = vpop.permute.xlu0 %392
    %v395 = vmul.f32 %v377, %v393
    %396 = vmatprep.subr.mxu0 0.0
    %397 = vmatpush1.msra.mxu0 %v293
    %398 = vmatprep.subr.mxu0 0.0
    %399 = vmatpush1.msra.mxu0 %v294
    %400 = vmatprep.subr.mxu0 0.0
    %401 = vmatpush1.msra.mxu0 %v295
    %402 = vmatprep.subr.mxu0 0.0
    %403 = vmatpush1.msra.mxu0 %v296
    %404 = vmatprep.subr.mxu0 0.0
    %405 = vmatpush1.msra.mxu0 0.0
    %406 = vmatprep.subr.mxu0 0.0
    %407 = vmatpush1.msra.mxu0 0.0
    %408 = vmatprep.subr.mxu0 0.0
    %409 = vmatpush1.msra.mxu0 0.0
    %410 = vmatprep.subr.mxu0 0.0
    %411 = vmatpush1.msra.mxu0 0.0
    %412 = vmatprep.subr.mxu0 0.0
    %413 = vmatpush1.msra.mxu0 0.0
    %414 = vmatprep.subr.mxu0 0.0
    %415 = vmatpush1.msra.mxu0 0.0
    %416 = vmatprep.subr.mxu0 0.0
    %417 = vmatpush1.msra.mxu0 0.0
    %418 = vmatprep.subr.mxu0 0.0
    %419 = vmatpush1.msra.mxu0 0.0
    %420 = vmatprep.subr.mxu0 0.0
    %421 = vmatpush1.msra.mxu0 0.0
    %422 = vmatprep.subr.mxu0 0.0
    %423 = vmatpush1.msra.mxu0 0.0
    %424 = vmatprep.subr.mxu0 0.0
    %425 = vmatpush1.msra.mxu0 0.0
    %426 = vmatprep.subr.mxu0 0.0
    %427 = vmatpush1.msra.mxu0 0.0
    %428 = vmatprep.subr.mxu0 0.0
    %429 = vmatpush1.msra.mxu0 0.0
    %430 = vmatprep.subr.mxu0 0.0
    %431 = vmatpush1.msra.mxu0 0.0
    %432 = vmatprep.subr.mxu0 0.0
    %433 = vmatpush1.msra.mxu0 0.0
    %434 = vmatprep.subr.mxu0 0.0
    %435 = vmatpush1.msra.mxu0 0.0
    %436 = vmatprep.subr.mxu0 0.0
    %437 = vmatpush1.msra.mxu0 0.0
    %438 = vmatprep.subr.mxu0 0.0
    %439 = vmatpush1.msra.mxu0 0.0
    %440 = vmatprep.subr.mxu0 0.0
    %441 = vmatpush1.msra.mxu0 0.0
    %442 = vmatprep.subr.mxu0 0.0
    %443 = vmatpush1.msra.mxu0 0.0
    %444 = vmatprep.subr.mxu0 0.0
    %445 = vmatpush1.msra.mxu0 0.0
    %446 = vmatprep.subr.mxu0 0.0
    %447 = vmatpush1.msra.mxu0 0.0
    %448 = vmatprep.subr.mxu0 0.0
    %449 = vmatpush1.msra.mxu0 0.0
    %450 = vmatprep.subr.mxu0 0.0
    %451 = vmatpush1.msra.mxu0 0.0
    %452 = vmatprep.subr.mxu0 0.0
    %453 = vmatpush1.msra.mxu0 0.0
    %454 = vmatprep.subr.mxu0 0.0
    %455 = vmatpush1.msra.mxu0 0.0
    %456 = vmatprep.subr.mxu0 0.0
    %457 = vmatpush1.msra.mxu0 0.0
    %458 = vmatprep.subr.mxu0 0.0
    %459 = vmatpush1.msra.mxu0 0.0
    %460 = vmatprep.mubr.f32.mxu0 0.0
    %461 = vmatmul.mubr.f32.gmra.mrb[0].mxu0 %v299
    %v462 = vpop.f32.mrb[0].mxu0
    %v463 = vadd.f32 0.0, %v462
    %v464 = vpop.f32.mrb[0].mxu0
    %465 = vdwg.mxu0
    %v466 = vadd.f32 %v286, %v463
    %v467 = vxor.u32 %v466, 2147483648
    %v468 = vmul.f32 %v467, 1.442695
    %v469 = vpow.pop %v468
    %v470 = vadd.f32 %v469, 1.0
    %v471 = vrcp.pop %v470
    %v472 = vmul.f32 1.0, %v471
    %v473 = vtanh.pop %v466
    %v474 = vmul.f32 %v472, 0.0
    %476 = vrot.lane.b32.xlu0 %v473, 32
    %v477 = vpop.permute.xlu0 %476
    %v479 = vmul.f32 %v472, %v477
    %481 = vrot.lane.b32.xlu0 %v479, 32
    %v482 = vpop.permute.xlu0 %481
    %v484 = vadd.f32 %v474, %v482
    %v485 = vtanh.pop %v484
    %487 = vrot.lane.b32.xlu0 %v485, 32
    %v488 = vpop.permute.xlu0 %487
    %v490 = vmul.f32 %v472, %v488
    %492 = vrot.lane.b32.xlu0 %v395, 64
    %v493 = vpop.permute.xlu0 %492
    %495 = vst.msk [vmem:[#allocation2] sm:$0xff] %vm297, %v493
    %497 = vrot.lane.b32.xlu0 %v490, 64
    %v498 = vpop.permute.xlu0 %497
    %500 = vst.msk [vmem:[#allocation3 + $0x38] sm:$0xff] %vm297, %v498
    %v501 = vsel %vm297, %v493, 0
    %503 = vmatprep.subr.mxu0 0.0
    %504 = vmatpush1.msra.mxu0 %v288
    %505 = vmatprep.subr.mxu0 0.0
    %506 = vmatpush1.msra.mxu0 %v289
    %507 = vmatprep.subr.mxu0 0.0
    %508 = vmatpush1.msra.mxu0 %v290
    %509 = vmatprep.subr.mxu0 0.0
    %510 = vmatpush1.msra.mxu0 %v291
    %511 = vmatprep.subr.mxu0 0.0
    %512 = vmatpush1.msra.mxu0 0.0
    %513 = vmatprep.subr.mxu0 0.0
    %514 = vmatpush1.msra.mxu0 0.0
    %515 = vmatprep.subr.mxu0 0.0
    %516 = vmatpush1.msra.mxu0 0.0
    %517 = vmatprep.subr.mxu0 0.0
    %518 = vmatpush1.msra.mxu0 0.0
    %519 = vmatprep.subr.mxu0 0.0
    %520 = vmatpush1.msra.mxu0 0.0
    %521 = vmatprep.subr.mxu0 0.0
    %522 = vmatpush1.msra.mxu0 0.0
    %523 = vmatprep.subr.mxu0 0.0
    %524 = vmatpush1.msra.mxu0 0.0
    %525 = vmatprep.subr.mxu0 0.0
    %526 = vmatpush1.msra.mxu0 0.0
    %527 = vmatprep.subr.mxu0 0.0
    %528 = vmatpush1.msra.mxu0 0.0
    %529 = vmatprep.subr.mxu0 0.0
    %530 = vmatpush1.msra.mxu0 0.0
    %531 = vmatprep.subr.mxu0 0.0
    %532 = vmatpush1.msra.mxu0 0.0
    %533 = vmatprep.subr.mxu0 0.0
    %534 = vmatpush1.msra.mxu0 0.0
    %535 = vmatprep.subr.mxu0 0.0
    %536 = vmatpush1.msra.mxu0 0.0
    %537 = vmatprep.subr.mxu0 0.0
    %538 = vmatpush1.msra.mxu0 0.0
    %539 = vmatprep.subr.mxu0 0.0
    %540 = vmatpush1.msra.mxu0 0.0
    %541 = vmatprep.subr.mxu0 0.0
    %542 = vmatpush1.msra.mxu0 0.0
    %543 = vmatprep.subr.mxu0 0.0
    %544 = vmatpush1.msra.mxu0 0.0
    %545 = vmatprep.subr.mxu0 0.0
    %546 = vmatpush1.msra.mxu0 0.0
    %547 = vmatprep.subr.mxu0 0.0
    %548 = vmatpush1.msra.mxu0 0.0
    %549 = vmatprep.subr.mxu0 0.0
    %550 = vmatpush1.msra.mxu0 0.0
    %551 = vmatprep.subr.mxu0 0.0
    %552 = vmatpush1.msra.mxu0 0.0
    %553 = vmatprep.subr.mxu0 0.0
    %554 = vmatpush1.msra.mxu0 0.0
    %555 = vmatprep.subr.mxu0 0.0
    %556 = vmatpush1.msra.mxu0 0.0
    %557 = vmatprep.subr.mxu0 0.0
    %558 = vmatpush1.msra.mxu0 0.0
    %559 = vmatprep.subr.mxu0 0.0
    %560 = vmatpush1.msra.mxu0 0.0
    %561 = vmatprep.subr.mxu0 0.0
    %562 = vmatpush1.msra.mxu0 0.0
    %563 = vmatprep.subr.mxu0 0.0
    %564 = vmatpush1.msra.mxu0 0.0
    %565 = vmatprep.subr.mxu0 0.0
    %566 = vmatpush1.msra.mxu0 0.0
    %567 = vmatprep.mubr.f32.mxu0 0.0
    %568 = vmatmul.mubr.f32.gmra.mrb[0].mxu0 %v501
    %v569 = vpop.f32.mrb[0].mxu0
    %v570 = vadd.f32 0.0, %v569
    %v571 = vpop.f32.mrb[0].mxu0
    %572 = vdwg.mxu0
    %v573 = vadd.f32 %v248, %v570
    %v574 = vxor.u32 %v573, 2147483648
    %v575 = vmul.f32 %v574, 1.442695
    %v576 = vpow.pop %v575
    %v577 = vadd.f32 %v576, 1.0
    %v578 = vrcp.pop %v577
    %v579 = vmul.f32 1.0, %v578
    %v580 = vtanh.pop %v573
    %v581 = vmul.f32 %v579, %v389
    %583 = vrot.lane.b32.xlu0 %v580, 32
    %v584 = vpop.permute.xlu0 %583
    %v586 = vmul.f32 %v579, %v584
    %588 = vrot.lane.b32.xlu0 %v586, 32
    %v589 = vpop.permute.xlu0 %588
    %v591 = vadd.f32 %v581, %v589
    %v592 = vtanh.pop %v591
    %594 = vrot.lane.b32.xlu0 %v592, 32
    %v595 = vpop.permute.xlu0 %594
    %v597 = vmul.f32 %v579, %v595
    %v598 = vsel %vm297, %v498, 0
    %600 = vmatprep.subr.mxu0 0.0
    %601 = vmatpush1.msra.mxu0 %v293
    %602 = vmatprep.subr.mxu0 0.0
    %603 = vmatpush1.msra.mxu0 %v294
    %604 = vmatprep.subr.mxu0 0.0
    %605 = vmatpush1.msra.mxu0 %v295
    %606 = vmatprep.subr.mxu0 0.0
    %607 = vmatpush1.msra.mxu0 %v296
    %608 = vmatprep.subr.mxu0 0.0
    %609 = vmatpush1.msra.mxu0 0.0
    %610 = vmatprep.subr.mxu0 0.0
    %611 = vmatpush1.msra.mxu0 0.0
    %612 = vmatprep.subr.mxu0 0.0
    %613 = vmatpush1.msra.mxu0 0.0
    %614 = vmatprep.subr.mxu0 0.0
    %615 = vmatpush1.msra.mxu0 0.0
    %616 = vmatprep.subr.mxu0 0.0
    %617 = vmatpush1.msra.mxu0 0.0
    %618 = vmatprep.subr.mxu0 0.0
    %619 = vmatpush1.msra.mxu0 0.0
    %620 = vmatprep.subr.mxu0 0.0
    %621 = vmatpush1.msra.mxu0 0.0
    %622 = vmatprep.subr.mxu0 0.0
    %623 = vmatpush1.msra.mxu0 0.0
    %624 = vmatprep.subr.mxu0 0.0
    %625 = vmatpush1.msra.mxu0 0.0
    %626 = vmatprep.subr.mxu0 0.0
    %627 = vmatpush1.msra.mxu0 0.0
    %628 = vmatprep.subr.mxu0 0.0
    %629 = vmatpush1.msra.mxu0 0.0
    %630 = vmatprep.subr.mxu0 0.0
    %631 = vmatpush1.msra.mxu0 0.0
    %632 = vmatprep.subr.mxu0 0.0
    %633 = vmatpush1.msra.mxu0 0.0
    %634 = vmatprep.subr.mxu0 0.0
    %635 = vmatpush1.msra.mxu0 0.0
    %636 = vmatprep.subr.mxu0 0.0
    %637 = vmatpush1.msra.mxu0 0.0
    %638 = vmatprep.subr.mxu0 0.0
    %639 = vmatpush1.msra.mxu0 0.0
    %640 = vmatprep.subr.mxu0 0.0
    %641 = vmatpush1.msra.mxu0 0.0
    %642 = vmatprep.subr.mxu0 0.0
    %643 = vmatpush1.msra.mxu0 0.0
    %644 = vmatprep.subr.mxu0 0.0
    %645 = vmatpush1.msra.mxu0 0.0
    %646 = vmatprep.subr.mxu0 0.0
    %647 = vmatpush1.msra.mxu0 0.0
    %648 = vmatprep.subr.mxu0 0.0
    %649 = vmatpush1.msra.mxu0 0.0
    %650 = vmatprep.subr.mxu0 0.0
    %651 = vmatpush1.msra.mxu0 0.0
    %652 = vmatprep.subr.mxu0 0.0
    %653 = vmatpush1.msra.mxu0 0.0
    %654 = vmatprep.subr.mxu0 0.0
    %655 = vmatpush1.msra.mxu0 0.0
    %656 = vmatprep.subr.mxu0 0.0
    %657 = vmatpush1.msra.mxu0 0.0
    %658 = vmatprep.subr.mxu0 0.0
    %659 = vmatpush1.msra.mxu0 0.0
    %660 = vmatprep.subr.mxu0 0.0
    %661 = vmatpush1.msra.mxu0 0.0
    %662 = vmatprep.subr.mxu0 0.0
    %663 = vmatpush1.msra.mxu0 0.0
    %664 = vmatprep.mubr.f32.mxu0 0.0
    %665 = vmatmul.mubr.f32.gmra.mrb[0].mxu0 %v598
    %v666 = vpop.f32.mrb[0].mxu0
    %v667 = vadd.f32 0.0, %v666
    %v668 = vpop.f32.mrb[0].mxu0
    %669 = vdwg.mxu0
    %v670 = vadd.f32 %v280, %v667
    %v671 = vxor.u32 %v670, 2147483648
    %v672 = vmul.f32 %v671, 1.442695
    %v673 = vpow.pop %v672
    %v674 = vadd.f32 %v673, 1.0
    %v675 = vrcp.pop %v674
    %v676 = vmul.f32 1.0, %v675
    %v677 = vtanh.pop %v670
    %v678 = vmul.f32 %v676, %v484
    %680 = vrot.lane.b32.xlu0 %v677, 32
    %v681 = vpop.permute.xlu0 %680
    %v683 = vmul.f32 %v676, %v681
    %685 = vrot.lane.b32.xlu0 %v683, 32
    %v686 = vpop.permute.xlu0 %685
    %v688 = vadd.f32 %v678, %v686
    %v689 = vtanh.pop %v688
    %691 = vrot.lane.b32.xlu0 %v689, 32
    %v692 = vpop.permute.xlu0 %691
    %v694 = vmul.f32 %v676, %v692
    %696 = vrot.lane.b32.xlu0 %v597, 64
    %v697 = vpop.permute.xlu0 %696
    %699 = vst.msk [vmem:[#allocation2 + $0x8] sm:$0xff] %vm297, %v697
    %701 = vrot.lane.b32.xlu0 %v694, 64
    %v702 = vpop.permute.xlu0 %701
    %704 = vst.msk [vmem:[#allocation3 + $0x30] sm:$0xff] %vm297, %v702
    %v705 = vsel %vm297, %v697, 0
    %707 = vmatprep.subr.mxu0 0.0
    %708 = vmatpush1.msra.mxu0 %v288
    %709 = vmatprep.subr.mxu0 0.0
    %710 = vmatpush1.msra.mxu0 %v289
    %711 = vmatprep.subr.mxu0 0.0
    %712 = vmatpush1.msra.mxu0 %v290
    %713 = vmatprep.subr.mxu0 0.0
    %714 = vmatpush1.msra.mxu0 %v291
    %715 = vmatprep.subr.mxu0 0.0
    %716 = vmatpush1.msra.mxu0 0.0
    %717 = vmatprep.subr.mxu0 0.0
    %718 = vmatpush1.msra.mxu0 0.0
    %719 = vmatprep.subr.mxu0 0.0
    %720 = vmatpush1.msra.mxu0 0.0
    %721 = vmatprep.subr.mxu0 0.0
    %722 = vmatpush1.msra.mxu0 0.0
    %723 = vmatprep.subr.mxu0 0.0
    %724 = vmatpush1.msra.mxu0 0.0
    %725 = vmatprep.subr.mxu0 0.0
    %726 = vmatpush1.msra.mxu0 0.0
    %727 = vmatprep.subr.mxu0 0.0
    %728 = vmatpush1.msra.mxu0 0.0
    %729 = vmatprep.subr.mxu0 0.0
    %730 = vmatpush1.msra.mxu0 0.0
    %731 = vmatprep.subr.mxu0 0.0
    %732 = vmatpush1.msra.mxu0 0.0
    %733 = vmatprep.subr.mxu0 0.0
    %734 = vmatpush1.msra.mxu0 0.0
    %735 = vmatprep.subr.mxu0 0.0
    %736 = vmatpush1.msra.mxu0 0.0
    %737 = vmatprep.subr.mxu0 0.0
    %738 = vmatpush1.msra.mxu0 0.0
    %739 = vmatprep.subr.mxu0 0.0
    %740 = vmatpush1.msra.mxu0 0.0
    %741 = vmatprep.subr.mxu0 0.0
    %742 = vmatpush1.msra.mxu0 0.0
    %743 = vmatprep.subr.mxu0 0.0
    %744 = vmatpush1.msra.mxu0 0.0
    %745 = vmatprep.subr.mxu0 0.0
    %746 = vmatpush1.msra.mxu0 0.0
    %747 = vmatprep.subr.mxu0 0.0
    %748 = vmatpush1.msra.mxu0 0.0
    %749 = vmatprep.subr.mxu0 0.0
    %750 = vmatpush1.msra.mxu0 0.0
    %751 = vmatprep.subr.mxu0 0.0
    %752 = vmatpush1.msra.mxu0 0.0
    %753 = vmatprep.subr.mxu0 0.0
    %754 = vmatpush1.msra.mxu0 0.0
    %755 = vmatprep.subr.mxu0 0.0
    %756 = vmatpush1.msra.mxu0 0.0
    %757 = vmatprep.subr.mxu0 0.0
    %758 = vmatpush1.msra.mxu0 0.0
    %759 = vmatprep.subr.mxu0 0.0
    %760 = vmatpush1.msra.mxu0 0.0
    %761 = vmatprep.subr.mxu0 0.0
    %762 = vmatpush1.msra.mxu0 0.0
    %763 = vmatprep.subr.mxu0 0.0
    %764 = vmatpush1.msra.mxu0 0.0
    %765 = vmatprep.subr.mxu0 0.0
    %766 = vmatpush1.msra.mxu0 0.0
    %767 = vmatprep.subr.mxu0 0.0
    %768 = vmatpush1.msra.mxu0 0.0
    %769 = vmatprep.subr.mxu0 0.0
    %770 = vmatpush1.msra.mxu0 0.0
    %771 = vmatprep.mubr.f32.mxu0 0.0
    %772 = vmatmul.mubr.f32.gmra.mrb[0].mxu0 %v705
    %v773 = vpop.f32.mrb[0].mxu0
    %v774 = vadd.f32 0.0, %v773
    %v775 = vpop.f32.mrb[0].mxu0
    %776 = vdwg.mxu0
    %v777 = vadd.f32 %v254, %v774
    %v778 = vxor.u32 %v777, 2147483648
    %v779 = vmul.f32 %v778, 1.442695
    %v780 = vpow.pop %v779
    %v781 = vadd.f32 %v780, 1.0
    %v782 = vrcp.pop %v781
    %v783 = vmul.f32 1.0, %v782
    %v784 = vtanh.pop %v777
    %v785 = vmul.f32 %v783, %v591
    %787 = vrot.lane.b32.xlu0 %v784, 32
    %v788 = vpop.permute.xlu0 %787
    %v790 = vmul.f32 %v783, %v788
    %792 = vrot.lane.b32.xlu0 %v790, 32
    %v793 = vpop.permute.xlu0 %792
    %v795 = vadd.f32 %v785, %v793
    %v796 = vtanh.pop %v795
    %798 = vrot.lane.b32.xlu0 %v796, 32
    %v799 = vpop.permute.xlu0 %798
    %v801 = vmul.f32 %v783, %v799
    %v802 = vsel %vm297, %v702, 0
    %804 = vmatprep.subr.mxu0 0.0
    %805 = vmatpush1.msra.mxu0 %v293
    %806 = vmatprep.subr.mxu0 0.0
    %807 = vmatpush1.msra.mxu0 %v294
    %808 = vmatprep.subr.mxu0 0.0
    %809 = vmatpush1.msra.mxu0 %v295
    %810 = vmatprep.subr.mxu0 0.0
    %811 = vmatpush1.msra.mxu0 %v296
    %812 = vmatprep.subr.mxu0 0.0
    %813 = vmatpush1.msra.mxu0 0.0
    %814 = vmatprep.subr.mxu0 0.0
    %815 = vmatpush1.msra.mxu0 0.0
    %816 = vmatprep.subr.mxu0 0.0
    %817 = vmatpush1.msra.mxu0 0.0
    %818 = vmatprep.subr.mxu0 0.0
    %819 = vmatpush1.msra.mxu0 0.0
    %820 = vmatprep.subr.mxu0 0.0
    %821 = vmatpush1.msra.mxu0 0.0
    %822 = vmatprep.subr.mxu0 0.0
    %823 = vmatpush1.msra.mxu0 0.0
    %824 = vmatprep.subr.mxu0 0.0
    %825 = vmatpush1.msra.mxu0 0.0
    %826 = vmatprep.subr.mxu0 0.0
    %827 = vmatpush1.msra.mxu0 0.0
    %828 = vmatprep.subr.mxu0 0.0
    %829 = vmatpush1.msra.mxu0 0.0
    %830 = vmatprep.subr.mxu0 0.0
    %831 = vmatpush1.msra.mxu0 0.0
    %832 = vmatprep.subr.mxu0 0.0
    %833 = vmatpush1.msra.mxu0 0.0
    %834 = vmatprep.subr.mxu0 0.0
    %835 = vmatpush1.msra.mxu0 0.0
    %836 = vmatprep.subr.mxu0 0.0
    %837 = vmatpush1.msra.mxu0 0.0
    %838 = vmatprep.subr.mxu0 0.0
    %839 = vmatpush1.msra.mxu0 0.0
    %840 = vmatprep.subr.mxu0 0.0
    %841 = vmatpush1.msra.mxu0 0.0
    %842 = vmatprep.subr.mxu0 0.0
    %843 = vmatpush1.msra.mxu0 0.0
    %844 = vmatprep.subr.mxu0 0.0
    %845 = vmatpush1.msra.mxu0 0.0
    %846 = vmatprep.subr.mxu0 0.0
    %847 = vmatpush1.msra.mxu0 0.0
    %848 = vmatprep.subr.mxu0 0.0
    %849 = vmatpush1.msra.mxu0 0.0
    %850 = vmatprep.subr.mxu0 0.0
    %851 = vmatpush1.msra.mxu0 0.0
    %852 = vmatprep.subr.mxu0 0.0
    %853 = vmatpush1.msra.mxu0 0.0
    %854 = vmatprep.subr.mxu0 0.0
    %855 = vmatpush1.msra.mxu0 0.0
    %856 = vmatprep.subr.mxu0 0.0
    %857 = vmatpush1.msra.mxu0 0.0
    %858 = vmatprep.subr.mxu0 0.0
    %859 = vmatpush1.msra.mxu0 0.0
    %860 = vmatprep.subr.mxu0 0.0
    %861 = vmatpush1.msra.mxu0 0.0
    %862 = vmatprep.subr.mxu0 0.0
    %863 = vmatpush1.msra.mxu0 0.0
    %864 = vmatprep.subr.mxu0 0.0
    %865 = vmatpush1.msra.mxu0 0.0
    %866 = vmatprep.subr.mxu0 0.0
    %867 = vmatpush1.msra.mxu0 0.0
    %868 = vmatprep.mubr.f32.mxu0 0.0
    %869 = vmatmul.mubr.f32.gmra.mrb[0].mxu0 %v802
    %v870 = vpop.f32.mrb[0].mxu0
    %v871 = vadd.f32 0.0, %v870
    %v872 = vpop.f32.mrb[0].mxu0
    %873 = vdwg.mxu0
    %v874 = vadd.f32 %v274, %v871
    %v875 = vxor.u32 %v874, 2147483648
    %v876 = vmul.f32 %v875, 1.442695
    %v877 = vpow.pop %v876
    %v878 = vadd.f32 %v877, 1.0
    %v879 = vrcp.pop %v878
    %v880 = vmul.f32 1.0, %v879
    %v881 = vtanh.pop %v874
    %v882 = vmul.f32 %v880, %v688
    %884 = vrot.lane.b32.xlu0 %v881, 32
    %v885 = vpop.permute.xlu0 %884
    %v887 = vmul.f32 %v880, %v885
    %889 = vrot.lane.b32.xlu0 %v887, 32
    %v890 = vpop.permute.xlu0 %889
    %v892 = vadd.f32 %v882, %v890
    %v893 = vtanh.pop %v892
    %895 = vrot.lane.b32.xlu0 %v893, 32
    %v896 = vpop.permute.xlu0 %895
    %v898 = vmul.f32 %v880, %v896
    %900 = vrot.lane.b32.xlu0 %v801, 64
    %v901 = vpop.permute.xlu0 %900
    %903 = vst.msk [vmem:[#allocation2 + $0x10] sm:$0xff] %vm297, %v901
    %905 = vrot.lane.b32.xlu0 %v898, 64
    %v906 = vpop.permute.xlu0 %905
    %908 = vst.msk [vmem:[#allocation3 + $0x28] sm:$0xff] %vm297, %v906
    %v909 = vsel %vm297, %v901, 0
    %911 = vmatprep.subr.mxu0 0.0
    %912 = vmatpush1.msra.mxu0 %v288
    %913 = vmatprep.subr.mxu0 0.0
    %914 = vmatpush1.msra.mxu0 %v289
    %915 = vmatprep.subr.mxu0 0.0
    %916 = vmatpush1.msra.mxu0 %v290
    %917 = vmatprep.subr.mxu0 0.0
    %918 = vmatpush1.msra.mxu0 %v291
    %919 = vmatprep.subr.mxu0 0.0
    %920 = vmatpush1.msra.mxu0 0.0
    %921 = vmatprep.subr.mxu0 0.0
    %922 = vmatpush1.msra.mxu0 0.0
    %923 = vmatprep.subr.mxu0 0.0
    %924 = vmatpush1.msra.mxu0 0.0
    %925 = vmatprep.subr.mxu0 0.0
    %926 = vmatpush1.msra.mxu0 0.0
    %927 = vmatprep.subr.mxu0 0.0
    %928 = vmatpush1.msra.mxu0 0.0
    %929 = vmatprep.subr.mxu0 0.0
    %930 = vmatpush1.msra.mxu0 0.0
    %931 = vmatprep.subr.mxu0 0.0
    %932 = vmatpush1.msra.mxu0 0.0
    %933 = vmatprep.subr.mxu0 0.0
    %934 = vmatpush1.msra.mxu0 0.0
    %935 = vmatprep.subr.mxu0 0.0
    %936 = vmatpush1.msra.mxu0 0.0
    %937 = vmatprep.subr.mxu0 0.0
    %938 = vmatpush1.msra.mxu0 0.0
    %939 = vmatprep.subr.mxu0 0.0
    %940 = vmatpush1.msra.mxu0 0.0
    %941 = vmatprep.subr.mxu0 0.0
    %942 = vmatpush1.msra.mxu0 0.0
    %943 = vmatprep.subr.mxu0 0.0
    %944 = vmatpush1.msra.mxu0 0.0
    %945 = vmatprep.subr.mxu0 0.0
    %946 = vmatpush1.msra.mxu0 0.0
    %947 = vmatprep.subr.mxu0 0.0
    %948 = vmatpush1.msra.mxu0 0.0
    %949 = vmatprep.subr.mxu0 0.0
    %950 = vmatpush1.msra.mxu0 0.0
    %951 = vmatprep.subr.mxu0 0.0
    %952 = vmatpush1.msra.mxu0 0.0
    %953 = vmatprep.subr.mxu0 0.0
    %954 = vmatpush1.msra.mxu0 0.0
    %955 = vmatprep.subr.mxu0 0.0
    %956 = vmatpush1.msra.mxu0 0.0
    %957 = vmatprep.subr.mxu0 0.0
    %958 = vmatpush1.msra.mxu0 0.0
    %959 = vmatprep.subr.mxu0 0.0
    %960 = vmatpush1.msra.mxu0 0.0
    %961 = vmatprep.subr.mxu0 0.0
    %962 = vmatpush1.msra.mxu0 0.0
    %963 = vmatprep.subr.mxu0 0.0
    %964 = vmatpush1.msra.mxu0 0.0
    %965 = vmatprep.subr.mxu0 0.0
    %966 = vmatpush1.msra.mxu0 0.0
    %967 = vmatprep.subr.mxu0 0.0
    %968 = vmatpush1.msra.mxu0 0.0
    %969 = vmatprep.subr.mxu0 0.0
    %970 = vmatpush1.msra.mxu0 0.0
    %971 = vmatprep.subr.mxu0 0.0
    %972 = vmatpush1.msra.mxu0 0.0
    %973 = vmatprep.subr.mxu0 0.0
    %974 = vmatpush1.msra.mxu0 0.0
    %975 = vmatprep.mubr.f32.mxu0 0.0
    %976 = vmatmul.mubr.f32.gmra.mrb[0].mxu0 %v909
    %v977 = vpop.f32.mrb[0].mxu0
    %v978 = vadd.f32 0.0, %v977
    %v979 = vpop.f32.mrb[0].mxu0
    %980 = vdwg.mxu0
    %v981 = vadd.f32 %v260, %v978
    %v982 = vxor.u32 %v981, 2147483648
    %v983 = vmul.f32 %v982, 1.442695
    %v984 = vpow.pop %v983
    %v985 = vadd.f32 %v984, 1.0
    %v986 = vrcp.pop %v985
    %v987 = vmul.f32 1.0, %v986
    %v988 = vtanh.pop %v981
    %v989 = vmul.f32 %v987, %v795
    %991 = vrot.lane.b32.xlu0 %v988, 32
    %v992 = vpop.permute.xlu0 %991
    %v994 = vmul.f32 %v987, %v992
    %996 = vrot.lane.b32.xlu0 %v994, 32
    %v997 = vpop.permute.xlu0 %996
    %v999 = vadd.f32 %v989, %v997
    %v1000 = vtanh.pop %v999
    %1002 = vrot.lane.b32.xlu0 %v1000, 32
    %v1003 = vpop.permute.xlu0 %1002
    %v1005 = vmul.f32 %v987, %v1003
    %v1006 = vsel %vm297, %v906, 0
    %1008 = vmatprep.subr.mxu0 0.0
    %1009 = vmatpush1.msra.mxu0 %v293
    %1010 = vmatprep.subr.mxu0 0.0
    %1011 = vmatpush1.msra.mxu0 %v294
    %1012 = vmatprep.subr.mxu0 0.0
    %1013 = vmatpush1.msra.mxu0 %v295
    %1014 = vmatprep.subr.mxu0 0.0
    %1015 = vmatpush1.msra.mxu0 %v296
    %1016 = vmatprep.subr.mxu0 0.0
    %1017 = vmatpush1.msra.mxu0 0.0
    %1018 = vmatprep.subr.mxu0 0.0
    %1019 = vmatpush1.msra.mxu0 0.0
    %1020 = vmatprep.subr.mxu0 0.0
    %1021 = vmatpush1.msra.mxu0 0.0
    %1022 = vmatprep.subr.mxu0 0.0
    %1023 = vmatpush1.msra.mxu0 0.0
    %1024 = vmatprep.subr.mxu0 0.0
    %1025 = vmatpush1.msra.mxu0 0.0
    %1026 = vmatprep.subr.mxu0 0.0
    %1027 = vmatpush1.msra.mxu0 0.0
    %1028 = vmatprep.subr.mxu0 0.0
    %1029 = vmatpush1.msra.mxu0 0.0
    %1030 = vmatprep.subr.mxu0 0.0
    %1031 = vmatpush1.msra.mxu0 0.0
    %1032 = vmatprep.subr.mxu0 0.0
    %1033 = vmatpush1.msra.mxu0 0.0
    %1034 = vmatprep.subr.mxu0 0.0
    %1035 = vmatpush1.msra.mxu0 0.0
    %1036 = vmatprep.subr.mxu0 0.0
    %1037 = vmatpush1.msra.mxu0 0.0
    %1038 = vmatprep.subr.mxu0 0.0
    %1039 = vmatpush1.msra.mxu0 0.0
    %1040 = vmatprep.subr.mxu0 0.0
    %1041 = vmatpush1.msra.mxu0 0.0
    %1042 = vmatprep.subr.mxu0 0.0
    %1043 = vmatpush1.msra.mxu0 0.0
    %1044 = vmatprep.subr.mxu0 0.0
    %1045 = vmatpush1.msra.mxu0 0.0
    %1046 = vmatprep.subr.mxu0 0.0
    %1047 = vmatpush1.msra.mxu0 0.0
    %1048 = vmatprep.subr.mxu0 0.0
    %1049 = vmatpush1.msra.mxu0 0.0
    %1050 = vmatprep.subr.mxu0 0.0
    %1051 = vmatpush1.msra.mxu0 0.0
    %1052 = vmatprep.subr.mxu0 0.0
    %1053 = vmatpush1.msra.mxu0 0.0
    %1054 = vmatprep.subr.mxu0 0.0
    %1055 = vmatpush1.msra.mxu0 0.0
    %1056 = vmatprep.subr.mxu0 0.0
    %1057 = vmatpush1.msra.mxu0 0.0
    %1058 = vmatprep.subr.mxu0 0.0
    %1059 = vmatpush1.msra.mxu0 0.0
    %1060 = vmatprep.subr.mxu0 0.0
    %1061 = vmatpush1.msra.mxu0 0.0
    %1062 = vmatprep.subr.mxu0 0.0
    %1063 = vmatpush1.msra.mxu0 0.0
    %1064 = vmatprep.subr.mxu0 0.0
    %1065 = vmatpush1.msra.mxu0 0.0
    %1066 = vmatprep.subr.mxu0 0.0
    %1067 = vmatpush1.msra.mxu0 0.0
    %1068 = vmatprep.subr.mxu0 0.0
    %1069 = vmatpush1.msra.mxu0 0.0
    %1070 = vmatprep.subr.mxu0 0.0
    %1071 = vmatpush1.msra.mxu0 0.0
    %1072 = vmatprep.mubr.f32.mxu0 0.0
    %1073 = vmatmul.mubr.f32.gmra.mrb[0].mxu0 %v1006
    %v1074 = vpop.f32.mrb[0].mxu0
    %v1075 = vadd.f32 0.0, %v1074
    %v1076 = vpop.f32.mrb[0].mxu0
    %1077 = vdwg.mxu0
    %v1078 = vadd.f32 %v268, %v1075
    %v1079 = vxor.u32 %v1078, 2147483648
    %v1080 = vmul.f32 %v1079, 1.442695
    %v1081 = vpow.pop %v1080
    %v1082 = vadd.f32 %v1081, 1.0
    %v1083 = vrcp.pop %v1082
    %v1084 = vmul.f32 1.0, %v1083
    %v1085 = vtanh.pop %v1078
    %v1086 = vmul.f32 %v1084, %v892
    %1088 = vrot.lane.b32.xlu0 %v1085, 32
    %v1089 = vpop.permute.xlu0 %1088
    %v1091 = vmul.f32 %v1084, %v1089
    %1093 = vrot.lane.b32.xlu0 %v1091, 32
    %v1094 = vpop.permute.xlu0 %1093
    %v1096 = vadd.f32 %v1086, %v1094
    %v1097 = vtanh.pop %v1096
    %1099 = vrot.lane.b32.xlu0 %v1097, 32
    %v1100 = vpop.permute.xlu0 %1099
    %v1102 = vmul.f32 %v1084, %v1100
    %1104 = vrot.lane.b32.xlu0 %v1005, 64
    %v1105 = vpop.permute.xlu0 %1104
    %1107 = vst.msk [vmem:[#allocation2 + $0x18] sm:$0xff] %vm297, %v1105
    %1109 = vrot.lane.b32.xlu0 %v1102, 64
    %v1110 = vpop.permute.xlu0 %1109
    %1112 = vst.msk [vmem:[#allocation3 + $0x20] sm:$0xff] %vm297, %v1110
    %v1113 = vsel %vm297, %v1105, 0
    %1115 = vmatprep.subr.mxu0 0.0
    %1116 = vmatpush1.msra.mxu0 %v288
    %1117 = vmatprep.subr.mxu0 0.0
    %1118 = vmatpush1.msra.mxu0 %v289
    %1119 = vmatprep.subr.mxu0 0.0
    %1120 = vmatpush1.msra.mxu0 %v290
    %1121 = vmatprep.subr.mxu0 0.0
    %1122 = vmatpush1.msra.mxu0 %v291
    %1123 = vmatprep.subr.mxu0 0.0
    %1124 = vmatpush1.msra.mxu0 0.0
    %1125 = vmatprep.subr.mxu0 0.0
    %1126 = vmatpush1.msra.mxu0 0.0
    %1127 = vmatprep.subr.mxu0 0.0
    %1128 = vmatpush1.msra.mxu0 0.0
    %1129 = vmatprep.subr.mxu0 0.0
    %1130 = vmatpush1.msra.mxu0 0.0
    %1131 = vmatprep.subr.mxu0 0.0
    %1132 = vmatpush1.msra.mxu0 0.0
    %1133 = vmatprep.subr.mxu0 0.0
    %1134 = vmatpush1.msra.mxu0 0.0
    %1135 = vmatprep.subr.mxu0 0.0
    %1136 = vmatpush1.msra.mxu0 0.0
    %1137 = vmatprep.subr.mxu0 0.0
    %1138 = vmatpush1.msra.mxu0 0.0
    %1139 = vmatprep.subr.mxu0 0.0
    %1140 = vmatpush1.msra.mxu0 0.0
    %1141 = vmatprep.subr.mxu0 0.0
    %1142 = vmatpush1.msra.mxu0 0.0
    %1143 = vmatprep.subr.mxu0 0.0
    %1144 = vmatpush1.msra.mxu0 0.0
    %1145 = vmatprep.subr.mxu0 0.0
    %1146 = vmatpush1.msra.mxu0 0.0
    %1147 = vmatprep.subr.mxu0 0.0
    %1148 = vmatpush1.msra.mxu0 0.0
    %1149 = vmatprep.subr.mxu0 0.0
    %1150 = vmatpush1.msra.mxu0 0.0
    %1151 = vmatprep.subr.mxu0 0.0
    %1152 = vmatpush1.msra.mxu0 0.0
    %1153 = vmatprep.subr.mxu0 0.0
    %1154 = vmatpush1.msra.mxu0 0.0
    %1155 = vmatprep.subr.mxu0 0.0
    %1156 = vmatpush1.msra.mxu0 0.0
    %1157 = vmatprep.subr.mxu0 0.0
    %1158 = vmatpush1.msra.mxu0 0.0
    %1159 = vmatprep.subr.mxu0 0.0
    %1160 = vmatpush1.msra.mxu0 0.0
    %1161 = vmatprep.subr.mxu0 0.0
    %1162 = vmatpush1.msra.mxu0 0.0
    %1163 = vmatprep.subr.mxu0 0.0
    %1164 = vmatpush1.msra.mxu0 0.0
    %1165 = vmatprep.subr.mxu0 0.0
    %1166 = vmatpush1.msra.mxu0 0.0
    %1167 = vmatprep.subr.mxu0 0.0
    %1168 = vmatpush1.msra.mxu0 0.0
    %1169 = vmatprep.subr.mxu0 0.0
    %1170 = vmatpush1.msra.mxu0 0.0
    %1171 = vmatprep.subr.mxu0 0.0
    %1172 = vmatpush1.msra.mxu0 0.0
    %1173 = vmatprep.subr.mxu0 0.0
    %1174 = vmatpush1.msra.mxu0 0.0
    %1175 = vmatprep.subr.mxu0 0.0
    %1176 = vmatpush1.msra.mxu0 0.0
    %1177 = vmatprep.subr.mxu0 0.0
    %1178 = vmatpush1.msra.mxu0 0.0
    %1179 = vmatprep.mubr.f32.mxu0 0.0
    %1180 = vmatmul.mubr.f32.gmra.mrb[0].mxu0 %v1113
    %v1181 = vpop.f32.mrb[0].mxu0
    %v1182 = vadd.f32 0.0, %v1181
    %v1183 = vpop.f32.mrb[0].mxu0
    %1184 = vdwg.mxu0
    %v1185 = vadd.f32 %v266, %v1182
    %v1186 = vxor.u32 %v1185, 2147483648
    %v1187 = vmul.f32 %v1186, 1.442695
    %v1188 = vpow.pop %v1187
    %v1189 = vadd.f32 %v1188, 1.0
    %v1190 = vrcp.pop %v1189
    %v1191 = vmul.f32 1.0, %v1190
    %v1192 = vtanh.pop %v1185
    %v1193 = vmul.f32 %v1191, %v999
    %1195 = vrot.lane.b32.xlu0 %v1192, 32
    %v1196 = vpop.permute.xlu0 %1195
    %v1198 = vmul.f32 %v1191, %v1196
    %1200 = vrot.lane.b32.xlu0 %v1198, 32
    %v1201 = vpop.permute.xlu0 %1200
    %v1203 = vadd.f32 %v1193, %v1201
    %v1204 = vtanh.pop %v1203
    %1206 = vrot.lane.b32.xlu0 %v1204, 32
    %v1207 = vpop.permute.xlu0 %1206
    %v1209 = vmul.f32 %v1191, %v1207
    %v1210 = vsel %vm297, %v1110, 0
    %1212 = vmatprep.subr.mxu0 0.0
    %1213 = vmatpush1.msra.mxu0 %v293
    %1214 = vmatprep.subr.mxu0 0.0
    %1215 = vmatpush1.msra.mxu0 %v294
    %1216 = vmatprep.subr.mxu0 0.0
    %1217 = vmatpush1.msra.mxu0 %v295
    %1218 = vmatprep.subr.mxu0 0.0
    %1219 = vmatpush1.msra.mxu0 %v296
    %1220 = vmatprep.subr.mxu0 0.0
    %1221 = vmatpush1.msra.mxu0 0.0
    %1222 = vmatprep.subr.mxu0 0.0
    %1223 = vmatpush1.msra.mxu0 0.0
    %1224 = vmatprep.subr.mxu0 0.0
    %1225 = vmatpush1.msra.mxu0 0.0
    %1226 = vmatprep.subr.mxu0 0.0
    %1227 = vmatpush1.msra.mxu0 0.0
    %1228 = vmatprep.subr.mxu0 0.0
    %1229 = vmatpush1.msra.mxu0 0.0
    %1230 = vmatprep.subr.mxu0 0.0
    %1231 = vmatpush1.msra.mxu0 0.0
    %1232 = vmatprep.subr.mxu0 0.0
    %1233 = vmatpush1.msra.mxu0 0.0
    %1234 = vmatprep.subr.mxu0 0.0
    %1235 = vmatpush1.msra.mxu0 0.0
    %1236 = vmatprep.subr.mxu0 0.0
    %1237 = vmatpush1.msra.mxu0 0.0
    %1238 = vmatprep.subr.mxu0 0.0
    %1239 = vmatpush1.msra.mxu0 0.0
    %1240 = vmatprep.subr.mxu0 0.0
    %1241 = vmatpush1.msra.mxu0 0.0
    %1242 = vmatprep.subr.mxu0 0.0
    %1243 = vmatpush1.msra.mxu0 0.0
    %1244 = vmatprep.subr.mxu0 0.0
    %1245 = vmatpush1.msra.mxu0 0.0
    %1246 = vmatprep.subr.mxu0 0.0
    %1247 = vmatpush1.msra.mxu0 0.0
    %1248 = vmatprep.subr.mxu0 0.0
    %1249 = vmatpush1.msra.mxu0 0.0
    %1250 = vmatprep.subr.mxu0 0.0
    %1251 = vmatpush1.msra.mxu0 0.0
    %1252 = vmatprep.subr.mxu0 0.0
    %1253 = vmatpush1.msra.mxu0 0.0
    %1254 = vmatprep.subr.mxu0 0.0
    %1255 = vmatpush1.msra.mxu0 0.0
    %1256 = vmatprep.subr.mxu0 0.0
    %1257 = vmatpush1.msra.mxu0 0.0
    %1258 = vmatprep.subr.mxu0 0.0
    %1259 = vmatpush1.msra.mxu0 0.0
    %1260 = vmatprep.subr.mxu0 0.0
    %1261 = vmatpush1.msra.mxu0 0.0
    %1262 = vmatprep.subr.mxu0 0.0
    %1263 = vmatpush1.msra.mxu0 0.0
    %1264 = vmatprep.subr.mxu0 0.0
    %1265 = vmatpush1.msra.mxu0 0.0
    %1266 = vmatprep.subr.mxu0 0.0
    %1267 = vmatpush1.msra.mxu0 0.0
    %1268 = vmatprep.subr.mxu0 0.0
    %1269 = vmatpush1.msra.mxu0 0.0
    %1270 = vmatprep.subr.mxu0 0.0
    %1271 = vmatpush1.msra.mxu0 0.0
    %1272 = vmatprep.subr.mxu0 0.0
    %1273 = vmatpush1.msra.mxu0 0.0
    %1274 = vmatprep.subr.mxu0 0.0
    %1275 = vmatpush1.msra.mxu0 0.0
    %1276 = vmatprep.mubr.f32.mxu0 0.0
    %1277 = vmatmul.mubr.f32.gmra.mrb[0].mxu0 %v1210
    %v1278 = vpop.f32.mrb[0].mxu0
    %v1279 = vadd.f32 0.0, %v1278
    %v1280 = vpop.f32.mrb[0].mxu0
    %1281 = vdwg.mxu0
    %v1282 = vadd.f32 %v262, %v1279
    %v1283 = vxor.u32 %v1282, 2147483648
    %v1284 = vmul.f32 %v1283, 1.442695
    %v1285 = vpow.pop %v1284
    %v1286 = vadd.f32 %v1285, 1.0
    %v1287 = vrcp.pop %v1286
    %v1288 = vmul.f32 1.0, %v1287
    %v1289 = vtanh.pop %v1282
    %v1290 = vmul.f32 %v1288, %v1096
    %1292 = vrot.lane.b32.xlu0 %v1289, 32
    %v1293 = vpop.permute.xlu0 %1292
    %v1295 = vmul.f32 %v1288, %v1293
    %1297 = vrot.lane.b32.xlu0 %v1295, 32
    %v1298 = vpop.permute.xlu0 %1297
    %v1300 = vadd.f32 %v1290, %v1298
    %v1301 = vtanh.pop %v1300
    %1303 = vrot.lane.b32.xlu0 %v1301, 32
    %v1304 = vpop.permute.xlu0 %1303
    %v1306 = vmul.f32 %v1288, %v1304
    %1308 = vrot.lane.b32.xlu0 %v1209, 64
    %v1309 = vpop.permute.xlu0 %1308
    %1311 = vst.msk [vmem:[#allocation2 + $0x20] sm:$0xff] %vm297, %v1309
    %1313 = vrot.lane.b32.xlu0 %v1306, 64
    %v1314 = vpop.permute.xlu0 %1313
    %1316 = vst.msk [vmem:[#allocation3 + $0x18] sm:$0xff] %vm297, %v1314
    %v1317 = vsel %vm297, %v1309, 0
    %1319 = vmatprep.subr.mxu0 0.0
    %1320 = vmatpush1.msra.mxu0 %v288
    %1321 = vmatprep.subr.mxu0 0.0
    %1322 = vmatpush1.msra.mxu0 %v289
    %1323 = vmatprep.subr.mxu0 0.0
    %1324 = vmatpush1.msra.mxu0 %v290
    %1325 = vmatprep.subr.mxu0 0.0
    %1326 = vmatpush1.msra.mxu0 %v291
    %1327 = vmatprep.subr.mxu0 0.0
    %1328 = vmatpush1.msra.mxu0 0.0
    %1329 = vmatprep.subr.mxu0 0.0
    %1330 = vmatpush1.msra.mxu0 0.0
    %1331 = vmatprep.subr.mxu0 0.0
    %1332 = vmatpush1.msra.mxu0 0.0
    %1333 = vmatprep.subr.mxu0 0.0
    %1334 = vmatpush1.msra.mxu0 0.0
    %1335 = vmatprep.subr.mxu0 0.0
    %1336 = vmatpush1.msra.mxu0 0.0
    %1337 = vmatprep.subr.mxu0 0.0
    %1338 = vmatpush1.msra.mxu0 0.0
    %1339 = vmatprep.subr.mxu0 0.0
    %1340 = vmatpush1.msra.mxu0 0.0
    %1341 = vmatprep.subr.mxu0 0.0
    %1342 = vmatpush1.msra.mxu0 0.0
    %1343 = vmatprep.subr.mxu0 0.0
    %1344 = vmatpush1.msra.mxu0 0.0
    %1345 = vmatprep.subr.mxu0 0.0
    %1346 = vmatpush1.msra.mxu0 0.0
    %1347 = vmatprep.subr.mxu0 0.0
    %1348 = vmatpush1.msra.mxu0 0.0
    %1349 = vmatprep.subr.mxu0 0.0
    %1350 = vmatpush1.msra.mxu0 0.0
    %1351 = vmatprep.subr.mxu0 0.0
    %1352 = vmatpush1.msra.mxu0 0.0
    %1353 = vmatprep.subr.mxu0 0.0
    %1354 = vmatpush1.msra.mxu0 0.0
    %1355 = vmatprep.subr.mxu0 0.0
    %1356 = vmatpush1.msra.mxu0 0.0
    %1357 = vmatprep.subr.mxu0 0.0
    %1358 = vmatpush1.msra.mxu0 0.0
    %1359 = vmatprep.subr.mxu0 0.0
    %1360 = vmatpush1.msra.mxu0 0.0
    %1361 = vmatprep.subr.mxu0 0.0
    %1362 = vmatpush1.msra.mxu0 0.0
    %1363 = vmatprep.subr.mxu0 0.0
    %1364 = vmatpush1.msra.mxu0 0.0
    %1365 = vmatprep.subr.mxu0 0.0
    %1366 = vmatpush1.msra.mxu0 0.0
    %1367 = vmatprep.subr.mxu0 0.0
    %1368 = vmatpush1.msra.mxu0 0.0
    %1369 = vmatprep.subr.mxu0 0.0
    %1370 = vmatpush1.msra.mxu0 0.0
    %1371 = vmatprep.subr.mxu0 0.0
    %1372 = vmatpush1.msra.mxu0 0.0
    %1373 = vmatprep.subr.mxu0 0.0
    %1374 = vmatpush1.msra.mxu0 0.0
    %1375 = vmatprep.subr.mxu0 0.0
    %1376 = vmatpush1.msra.mxu0 0.0
    %1377 = vmatprep.subr.mxu0 0.0
    %1378 = vmatpush1.msra.mxu0 0.0
    %1379 = vmatprep.subr.mxu0 0.0
    %1380 = vmatpush1.msra.mxu0 0.0
    %1381 = vmatprep.subr.mxu0 0.0
    %1382 = vmatpush1.msra.mxu0 0.0
    %1383 = vmatprep.mubr.f32.mxu0 0.0
    %1384 = vmatmul.mubr.f32.gmra.mrb[0].mxu0 %v1317
    %v1385 = vpop.f32.mrb[0].mxu0
    %v1386 = vadd.f32 0.0, %v1385
    %v1387 = vpop.f32.mrb[0].mxu0
    %1388 = vdwg.mxu0
    %v1389 = vadd.f32 %v272, %v1386
    %v1390 = vxor.u32 %v1389, 2147483648
    %v1391 = vmul.f32 %v1390, 1.442695
    %v1392 = vpow.pop %v1391
    %v1393 = vadd.f32 %v1392, 1.0
    %v1394 = vrcp.pop %v1393
    %v1395 = vmul.f32 1.0, %v1394
    %v1396 = vtanh.pop %v1389
    %v1397 = vmul.f32 %v1395, %v1203
    %1399 = vrot.lane.b32.xlu0 %v1396, 32
    %v1400 = vpop.permute.xlu0 %1399
    %v1402 = vmul.f32 %v1395, %v1400
    %1404 = vrot.lane.b32.xlu0 %v1402, 32
    %v1405 = vpop.permute.xlu0 %1404
    %v1407 = vadd.f32 %v1397, %v1405
    %v1408 = vtanh.pop %v1407
    %1410 = vrot.lane.b32.xlu0 %v1408, 32
    %v1411 = vpop.permute.xlu0 %1410
    %v1413 = vmul.f32 %v1395, %v1411
    %v1414 = vsel %vm297, %v1314, 0
    %1416 = vmatprep.subr.mxu0 0.0
    %1417 = vmatpush1.msra.mxu0 %v293
    %1418 = vmatprep.subr.mxu0 0.0
    %1419 = vmatpush1.msra.mxu0 %v294
    %1420 = vmatprep.subr.mxu0 0.0
    %1421 = vmatpush1.msra.mxu0 %v295
    %1422 = vmatprep.subr.mxu0 0.0
    %1423 = vmatpush1.msra.mxu0 %v296
    %1424 = vmatprep.subr.mxu0 0.0
    %1425 = vmatpush1.msra.mxu0 0.0
    %1426 = vmatprep.subr.mxu0 0.0
    %1427 = vmatpush1.msra.mxu0 0.0
    %1428 = vmatprep.subr.mxu0 0.0
    %1429 = vmatpush1.msra.mxu0 0.0
    %1430 = vmatprep.subr.mxu0 0.0
    %1431 = vmatpush1.msra.mxu0 0.0
    %1432 = vmatprep.subr.mxu0 0.0
    %1433 = vmatpush1.msra.mxu0 0.0
    %1434 = vmatprep.subr.mxu0 0.0
    %1435 = vmatpush1.msra.mxu0 0.0
    %1436 = vmatprep.subr.mxu0 0.0
    %1437 = vmatpush1.msra.mxu0 0.0
    %1438 = vmatprep.subr.mxu0 0.0
    %1439 = vmatpush1.msra.mxu0 0.0
    %1440 = vmatprep.subr.mxu0 0.0
    %1441 = vmatpush1.msra.mxu0 0.0
    %1442 = vmatprep.subr.mxu0 0.0
    %1443 = vmatpush1.msra.mxu0 0.0
    %1444 = vmatprep.subr.mxu0 0.0
    %1445 = vmatpush1.msra.mxu0 0.0
    %1446 = vmatprep.subr.mxu0 0.0
    %1447 = vmatpush1.msra.mxu0 0.0
    %1448 = vmatprep.subr.mxu0 0.0
    %1449 = vmatpush1.msra.mxu0 0.0
    %1450 = vmatprep.subr.mxu0 0.0
    %1451 = vmatpush1.msra.mxu0 0.0
    %1452 = vmatprep.subr.mxu0 0.0
    %1453 = vmatpush1.msra.mxu0 0.0
    %1454 = vmatprep.subr.mxu0 0.0
    %1455 = vmatpush1.msra.mxu0 0.0
    %1456 = vmatprep.subr.mxu0 0.0
    %1457 = vmatpush1.msra.mxu0 0.0
    %1458 = vmatprep.subr.mxu0 0.0
    %1459 = vmatpush1.msra.mxu0 0.0
    %1460 = vmatprep.subr.mxu0 0.0
    %1461 = vmatpush1.msra.mxu0 0.0
    %1462 = vmatprep.subr.mxu0 0.0
    %1463 = vmatpush1.msra.mxu0 0.0
    %1464 = vmatprep.subr.mxu0 0.0
    %1465 = vmatpush1.msra.mxu0 0.0
    %1466 = vmatprep.subr.mxu0 0.0
    %1467 = vmatpush1.msra.mxu0 0.0
    %1468 = vmatprep.subr.mxu0 0.0
    %1469 = vmatpush1.msra.mxu0 0.0
    %1470 = vmatprep.subr.mxu0 0.0
    %1471 = vmatpush1.msra.mxu0 0.0
    %1472 = vmatprep.subr.mxu0 0.0
    %1473 = vmatpush1.msra.mxu0 0.0
    %1474 = vmatprep.subr.mxu0 0.0
    %1475 = vmatpush1.msra.mxu0 0.0
    %1476 = vmatprep.subr.mxu0 0.0
    %1477 = vmatpush1.msra.mxu0 0.0
    %1478 = vmatprep.subr.mxu0 0.0
    %1479 = vmatpush1.msra.mxu0 0.0
    %1480 = vmatprep.mubr.f32.mxu0 0.0
    %1481 = vmatmul.mubr.f32.gmra.mrb[0].mxu0 %v1414
    %v1482 = vpop.f32.mrb[0].mxu0
    %v1483 = vadd.f32 0.0, %v1482
    %v1484 = vpop.f32.mrb[0].mxu0
    %1485 = vdwg.mxu0
    %v1486 = vadd.f32 %v256, %v1483
    %v1487 = vxor.u32 %v1486, 2147483648
    %v1488 = vmul.f32 %v1487, 1.442695
    %v1489 = vpow.pop %v1488
    %v1490 = vadd.f32 %v1489, 1.0
    %v1491 = vrcp.pop %v1490
    %v1492 = vmul.f32 1.0, %v1491
    %v1493 = vtanh.pop %v1486
    %v1494 = vmul.f32 %v1492, %v1300
    %1496 = vrot.lane.b32.xlu0 %v1493, 32
    %v1497 = vpop.permute.xlu0 %1496
    %v1499 = vmul.f32 %v1492, %v1497
    %1501 = vrot.lane.b32.xlu0 %v1499, 32
    %v1502 = vpop.permute.xlu0 %1501
    %v1504 = vadd.f32 %v1494, %v1502
    %v1505 = vtanh.pop %v1504
    %1507 = vrot.lane.b32.xlu0 %v1505, 32
    %v1508 = vpop.permute.xlu0 %1507
    %v1510 = vmul.f32 %v1492, %v1508
    %1512 = vrot.lane.b32.xlu0 %v1413, 64
    %v1513 = vpop.permute.xlu0 %1512
    %1515 = vst.msk [vmem:[#allocation2 + $0x28] sm:$0xff] %vm297, %v1513
    %1517 = vrot.lane.b32.xlu0 %v1510, 64
    %v1518 = vpop.permute.xlu0 %1517
    %1520 = vst.msk [vmem:[#allocation3 + $0x10] sm:$0xff] %vm297, %v1518
    %v1521 = vsel %vm297, %v1513, 0
    %1523 = vmatprep.subr.mxu0 0.0
    %1524 = vmatpush1.msra.mxu0 %v288
    %1525 = vmatprep.subr.mxu0 0.0
    %1526 = vmatpush1.msra.mxu0 %v289
    %1527 = vmatprep.subr.mxu0 0.0
    %1528 = vmatpush1.msra.mxu0 %v290
    %1529 = vmatprep.subr.mxu0 0.0
    %1530 = vmatpush1.msra.mxu0 %v291
    %1531 = vmatprep.subr.mxu0 0.0
    %1532 = vmatpush1.msra.mxu0 0.0
    %1533 = vmatprep.subr.mxu0 0.0
    %1534 = vmatpush1.msra.mxu0 0.0
    %1535 = vmatprep.subr.mxu0 0.0
    %1536 = vmatpush1.msra.mxu0 0.0
    %1537 = vmatprep.subr.mxu0 0.0
    %1538 = vmatpush1.msra.mxu0 0.0
    %1539 = vmatprep.subr.mxu0 0.0
    %1540 = vmatpush1.msra.mxu0 0.0
    %1541 = vmatprep.subr.mxu0 0.0
    %1542 = vmatpush1.msra.mxu0 0.0
    %1543 = vmatprep.subr.mxu0 0.0
    %1544 = vmatpush1.msra.mxu0 0.0
    %1545 = vmatprep.subr.mxu0 0.0
    %1546 = vmatpush1.msra.mxu0 0.0
    %1547 = vmatprep.subr.mxu0 0.0
    %1548 = vmatpush1.msra.mxu0 0.0
    %1549 = vmatprep.subr.mxu0 0.0
    %1550 = vmatpush1.msra.mxu0 0.0
    %1551 = vmatprep.subr.mxu0 0.0
    %1552 = vmatpush1.msra.mxu0 0.0
    %1553 = vmatprep.subr.mxu0 0.0
    %1554 = vmatpush1.msra.mxu0 0.0
    %1555 = vmatprep.subr.mxu0 0.0
    %1556 = vmatpush1.msra.mxu0 0.0
    %1557 = vmatprep.subr.mxu0 0.0
    %1558 = vmatpush1.msra.mxu0 0.0
    %1559 = vmatprep.subr.mxu0 0.0
    %1560 = vmatpush1.msra.mxu0 0.0
    %1561 = vmatprep.subr.mxu0 0.0
    %1562 = vmatpush1.msra.mxu0 0.0
    %1563 = vmatprep.subr.mxu0 0.0
    %1564 = vmatpush1.msra.mxu0 0.0
    %1565 = vmatprep.subr.mxu0 0.0
    %1566 = vmatpush1.msra.mxu0 0.0
    %1567 = vmatprep.subr.mxu0 0.0
    %1568 = vmatpush1.msra.mxu0 0.0
    %1569 = vmatprep.subr.mxu0 0.0
    %1570 = vmatpush1.msra.mxu0 0.0
    %1571 = vmatprep.subr.mxu0 0.0
    %1572 = vmatpush1.msra.mxu0 0.0
    %1573 = vmatprep.subr.mxu0 0.0
    %1574 = vmatpush1.msra.mxu0 0.0
    %1575 = vmatprep.subr.mxu0 0.0
    %1576 = vmatpush1.msra.mxu0 0.0
    %1577 = vmatprep.subr.mxu0 0.0
    %1578 = vmatpush1.msra.mxu0 0.0
    %1579 = vmatprep.subr.mxu0 0.0
    %1580 = vmatpush1.msra.mxu0 0.0
    %1581 = vmatprep.subr.mxu0 0.0
    %1582 = vmatpush1.msra.mxu0 0.0
    %1583 = vmatprep.subr.mxu0 0.0
    %1584 = vmatpush1.msra.mxu0 0.0
    %1585 = vmatprep.subr.mxu0 0.0
    %1586 = vmatpush1.msra.mxu0 0.0
    %1587 = vmatprep.mubr.f32.mxu0 0.0
    %1588 = vmatmul.mubr.f32.gmra.mrb[0].mxu0 %v1521
    %v1589 = vpop.f32.mrb[0].mxu0
    %v1590 = vadd.f32 0.0, %v1589
    %v1591 = vpop.f32.mrb[0].mxu0
    %1592 = vdwg.mxu0
    %v1593 = vadd.f32 %v278, %v1590
    %v1594 = vxor.u32 %v1593, 2147483648
    %v1595 = vmul.f32 %v1594, 1.442695
    %v1596 = vpow.pop %v1595
    %v1597 = vadd.f32 %v1596, 1.0
    %v1598 = vrcp.pop %v1597
    %v1599 = vmul.f32 1.0, %v1598
    %v1600 = vtanh.pop %v1593
    %v1601 = vmul.f32 %v1599, %v1407
    %1603 = vrot.lane.b32.xlu0 %v1600, 32
    %v1604 = vpop.permute.xlu0 %1603
    %v1606 = vmul.f32 %v1599, %v1604
    %1608 = vrot.lane.b32.xlu0 %v1606, 32
    %v1609 = vpop.permute.xlu0 %1608
    %v1611 = vadd.f32 %v1601, %v1609
    %v1612 = vtanh.pop %v1611
    %1614 = vrot.lane.b32.xlu0 %v1612, 32
    %v1615 = vpop.permute.xlu0 %1614
    %v1617 = vmul.f32 %v1599, %v1615
    %v1618 = vsel %vm297, %v1518, 0
    %1620 = vmatprep.subr.mxu0 0.0
    %1621 = vmatpush1.msra.mxu0 %v293
    %1622 = vmatprep.subr.mxu0 0.0
    %1623 = vmatpush1.msra.mxu0 %v294
    %1624 = vmatprep.subr.mxu0 0.0
    %1625 = vmatpush1.msra.mxu0 %v295
    %1626 = vmatprep.subr.mxu0 0.0
    %1627 = vmatpush1.msra.mxu0 %v296
    %1628 = vmatprep.subr.mxu0 0.0
    %1629 = vmatpush1.msra.mxu0 0.0
    %1630 = vmatprep.subr.mxu0 0.0
    %1631 = vmatpush1.msra.mxu0 0.0
    %1632 = vmatprep.subr.mxu0 0.0
    %1633 = vmatpush1.msra.mxu0 0.0
    %1634 = vmatprep.subr.mxu0 0.0
    %1635 = vmatpush1.msra.mxu0 0.0
    %1636 = vmatprep.subr.mxu0 0.0
    %1637 = vmatpush1.msra.mxu0 0.0
    %1638 = vmatprep.subr.mxu0 0.0
    %1639 = vmatpush1.msra.mxu0 0.0
    %1640 = vmatprep.subr.mxu0 0.0
    %1641 = vmatpush1.msra.mxu0 0.0
    %1642 = vmatprep.subr.mxu0 0.0
    %1643 = vmatpush1.msra.mxu0 0.0
    %1644 = vmatprep.subr.mxu0 0.0
    %1645 = vmatpush1.msra.mxu0 0.0
    %1646 = vmatprep.subr.mxu0 0.0
    %1647 = vmatpush1.msra.mxu0 0.0
    %1648 = vmatprep.subr.mxu0 0.0
    %1649 = vmatpush1.msra.mxu0 0.0
    %1650 = vmatprep.subr.mxu0 0.0
    %1651 = vmatpush1.msra.mxu0 0.0
    %1652 = vmatprep.subr.mxu0 0.0
    %1653 = vmatpush1.msra.mxu0 0.0
    %1654 = vmatprep.subr.mxu0 0.0
    %1655 = vmatpush1.msra.mxu0 0.0
    %1656 = vmatprep.subr.mxu0 0.0
    %1657 = vmatpush1.msra.mxu0 0.0
    %1658 = vmatprep.subr.mxu0 0.0
    %1659 = vmatpush1.msra.mxu0 0.0
    %1660 = vmatprep.subr.mxu0 0.0
    %1661 = vmatpush1.msra.mxu0 0.0
    %1662 = vmatprep.subr.mxu0 0.0
    %1663 = vmatpush1.msra.mxu0 0.0
    %1664 = vmatprep.subr.mxu0 0.0
    %1665 = vmatpush1.msra.mxu0 0.0
    %1666 = vmatprep.subr.mxu0 0.0
    %1667 = vmatpush1.msra.mxu0 0.0
    %1668 = vmatprep.subr.mxu0 0.0
    %1669 = vmatpush1.msra.mxu0 0.0
    %1670 = vmatprep.subr.mxu0 0.0
    %1671 = vmatpush1.msra.mxu0 0.0
    %1672 = vmatprep.subr.mxu0 0.0
    %1673 = vmatpush1.msra.mxu0 0.0
    %1674 = vmatprep.subr.mxu0 0.0
    %1675 = vmatpush1.msra.mxu0 0.0
    %1676 = vmatprep.subr.mxu0 0.0
    %1677 = vmatpush1.msra.mxu0 0.0
    %1678 = vmatprep.subr.mxu0 0.0
    %1679 = vmatpush1.msra.mxu0 0.0
    %1680 = vmatprep.subr.mxu0 0.0
    %1681 = vmatpush1.msra.mxu0 0.0
    %1682 = vmatprep.subr.mxu0 0.0
    %1683 = vmatpush1.msra.mxu0 0.0
    %1684 = vmatprep.mubr.f32.mxu0 0.0
    %1685 = vmatmul.mubr.f32.gmra.mrb[0].mxu0 %v1618
    %v1686 = vpop.f32.mrb[0].mxu0
    %v1687 = vadd.f32 0.0, %v1686
    %v1688 = vpop.f32.mrb[0].mxu0
    %1689 = vdwg.mxu0
    %v1690 = vadd.f32 %v250, %v1687
    %v1691 = vxor.u32 %v1690, 2147483648
    %v1692 = vmul.f32 %v1691, 1.442695
    %v1693 = vpow.pop %v1692
    %v1694 = vadd.f32 %v1693, 1.0
    %v1695 = vrcp.pop %v1694
    %v1696 = vmul.f32 1.0, %v1695
    %v1697 = vtanh.pop %v1690
    %v1698 = vmul.f32 %v1696, %v1504
    %1700 = vrot.lane.b32.xlu0 %v1697, 32
    %v1701 = vpop.permute.xlu0 %1700
    %v1703 = vmul.f32 %v1696, %v1701
    %1705 = vrot.lane.b32.xlu0 %v1703, 32
    %v1706 = vpop.permute.xlu0 %1705
    %v1708 = vadd.f32 %v1698, %v1706
    %v1709 = vtanh.pop %v1708
    %1711 = vrot.lane.b32.xlu0 %v1709, 32
    %v1712 = vpop.permute.xlu0 %1711
    %v1714 = vmul.f32 %v1696, %v1712
    %1716 = vrot.lane.b32.xlu0 %v1617, 64
    %v1717 = vpop.permute.xlu0 %1716
    %1719 = vst.msk [vmem:[#allocation2 + $0x30] sm:$0xff] %vm297, %v1717
    %1721 = vrot.lane.b32.xlu0 %v1714, 64
    %v1722 = vpop.permute.xlu0 %1721
    %1724 = vst.msk [vmem:[#allocation3 + $0x8] sm:$0xff] %vm297, %v1722
    %v1725 = vsel %vm297, %v1717, 0
    %1727 = vmatprep.subr.mxu0 0.0
    %1728 = vmatpush1.msra.mxu0 %v288
    %1729 = vmatprep.subr.mxu0 0.0
    %1730 = vmatpush1.msra.mxu0 %v289
    %1731 = vmatprep.subr.mxu0 0.0
    %1732 = vmatpush1.msra.mxu0 %v290
    %1733 = vmatprep.subr.mxu0 0.0
    %1734 = vmatpush1.msra.mxu0 %v291
    %1735 = vmatprep.subr.mxu0 0.0
    %1736 = vmatpush1.msra.mxu0 0.0
    %1737 = vmatprep.subr.mxu0 0.0
    %1738 = vmatpush1.msra.mxu0 0.0
    %1739 = vmatprep.subr.mxu0 0.0
    %1740 = vmatpush1.msra.mxu0 0.0
    %1741 = vmatprep.subr.mxu0 0.0
    %1742 = vmatpush1.msra.mxu0 0.0
    %1743 = vmatprep.subr.mxu0 0.0
    %1744 = vmatpush1.msra.mxu0 0.0
    %1745 = vmatprep.subr.mxu0 0.0
    %1746 = vmatpush1.msra.mxu0 0.0
    %1747 = vmatprep.subr.mxu0 0.0
    %1748 = vmatpush1.msra.mxu0 0.0
    %1749 = vmatprep.subr.mxu0 0.0
    %1750 = vmatpush1.msra.mxu0 0.0
    %1751 = vmatprep.subr.mxu0 0.0
    %1752 = vmatpush1.msra.mxu0 0.0
    %1753 = vmatprep.subr.mxu0 0.0
    %1754 = vmatpush1.msra.mxu0 0.0
    %1755 = vmatprep.subr.mxu0 0.0
    %1756 = vmatpush1.msra.mxu0 0.0
    %1757 = vmatprep.subr.mxu0 0.0
    %1758 = vmatpush1.msra.mxu0 0.0
    %1759 = vmatprep.subr.mxu0 0.0
    %1760 = vmatpush1.msra.mxu0 0.0
    %1761 = vmatprep.subr.mxu0 0.0
    %1762 = vmatpush1.msra.mxu0 0.0
    %1763 = vmatprep.subr.mxu0 0.0
    %1764 = vmatpush1.msra.mxu0 0.0
    %1765 = vmatprep.subr.mxu0 0.0
    %1766 = vmatpush1.msra.mxu0 0.0
    %1767 = vmatprep.subr.mxu0 0.0
    %1768 = vmatpush1.msra.mxu0 0.0
    %1769 = vmatprep.subr.mxu0 0.0
    %1770 = vmatpush1.msra.mxu0 0.0
    %1771 = vmatprep.subr.mxu0 0.0
    %1772 = vmatpush1.msra.mxu0 0.0
    %1773 = vmatprep.subr.mxu0 0.0
    %1774 = vmatpush1.msra.mxu0 0.0
    %1775 = vmatprep.subr.mxu0 0.0
    %1776 = vmatpush1.msra.mxu0 0.0
    %1777 = vmatprep.subr.mxu0 0.0
    %1778 = vmatpush1.msra.mxu0 0.0
    %1779 = vmatprep.subr.mxu0 0.0
    %1780 = vmatpush1.msra.mxu0 0.0
    %1781 = vmatprep.subr.mxu0 0.0
    %1782 = vmatpush1.msra.mxu0 0.0
    %1783 = vmatprep.subr.mxu0 0.0
    %1784 = vmatpush1.msra.mxu0 0.0
    %1785 = vmatprep.subr.mxu0 0.0
    %1786 = vmatpush1.msra.mxu0 0.0
    %1787 = vmatprep.subr.mxu0 0.0
    %1788 = vmatpush1.msra.mxu0 0.0
    %1789 = vmatprep.subr.mxu0 0.0
    %1790 = vmatpush1.msra.mxu0 0.0
    %1791 = vmatprep.mubr.f32.mxu0 0.0
    %1792 = vmatmul.mubr.f32.gmra.mrb[0].mxu0 %v1725
    %v1793 = vpop.f32.mrb[0].mxu0
    %v1794 = vadd.f32 0.0, %v1793
    %v1795 = vpop.f32.mrb[0].mxu0
    %1796 = vdwg.mxu0
    %v1797 = vadd.f32 %v284, %v1794
    %v1798 = vxor.u32 %v1797, 2147483648
    %v1799 = vmul.f32 %v1798, 1.442695
    %v1800 = vpow.pop %v1799
    %v1801 = vadd.f32 %v1800, 1.0
    %v1802 = vrcp.pop %v1801
    %v1803 = vmul.f32 1.0, %v1802
    %v1804 = vtanh.pop %v1797
    %v1805 = vmul.f32 %v1803, %v1611
    %1807 = vrot.lane.b32.xlu0 %v1804, 32
    %v1808 = vpop.permute.xlu0 %1807
    %v1810 = vmul.f32 %v1803, %v1808
    %1812 = vrot.lane.b32.xlu0 %v1810, 32
    %v1813 = vpop.permute.xlu0 %1812
    %v1815 = vadd.f32 %v1805, %v1813
    %v1816 = vtanh.pop %v1815
    %1818 = vrot.lane.b32.xlu0 %v1816, 32
    %v1819 = vpop.permute.xlu0 %1818
    %v1821 = vmul.f32 %v1803, %v1819
    %v1822 = vsel %vm297, %v1722, 0
    %1824 = vmatprep.subr.mxu0 0.0
    %1825 = vmatpush1.msra.mxu0 %v293
    %1826 = vmatprep.subr.mxu0 0.0
    %1827 = vmatpush1.msra.mxu0 %v294
    %1828 = vmatprep.subr.mxu0 0.0
    %1829 = vmatpush1.msra.mxu0 %v295
    %1830 = vmatprep.subr.mxu0 0.0
    %1831 = vmatpush1.msra.mxu0 %v296
    %1832 = vmatprep.subr.mxu0 0.0
    %1833 = vmatpush1.msra.mxu0 0.0
    %1834 = vmatprep.subr.mxu0 0.0
    %1835 = vmatpush1.msra.mxu0 0.0
    %1836 = vmatprep.subr.mxu0 0.0
    %1837 = vmatpush1.msra.mxu0 0.0
    %1838 = vmatprep.subr.mxu0 0.0
    %1839 = vmatpush1.msra.mxu0 0.0
    %1840 = vmatprep.subr.mxu0 0.0
    %1841 = vmatpush1.msra.mxu0 0.0
    %1842 = vmatprep.subr.mxu0 0.0
    %1843 = vmatpush1.msra.mxu0 0.0
    %1844 = vmatprep.subr.mxu0 0.0
    %1845 = vmatpush1.msra.mxu0 0.0
    %1846 = vmatprep.subr.mxu0 0.0
    %1847 = vmatpush1.msra.mxu0 0.0
    %1848 = vmatprep.subr.mxu0 0.0
    %1849 = vmatpush1.msra.mxu0 0.0
    %1850 = vmatprep.subr.mxu0 0.0
    %1851 = vmatpush1.msra.mxu0 0.0
    %1852 = vmatprep.subr.mxu0 0.0
    %1853 = vmatpush1.msra.mxu0 0.0
    %1854 = vmatprep.subr.mxu0 0.0
    %1855 = vmatpush1.msra.mxu0 0.0
    %1856 = vmatprep.subr.mxu0 0.0
    %1857 = vmatpush1.msra.mxu0 0.0
    %1858 = vmatprep.subr.mxu0 0.0
    %1859 = vmatpush1.msra.mxu0 0.0
    %1860 = vmatprep.subr.mxu0 0.0
    %1861 = vmatpush1.msra.mxu0 0.0
    %1862 = vmatprep.subr.mxu0 0.0
    %1863 = vmatpush1.msra.mxu0 0.0
    %1864 = vmatprep.subr.mxu0 0.0
    %1865 = vmatpush1.msra.mxu0 0.0
    %1866 = vmatprep.subr.mxu0 0.0
    %1867 = vmatpush1.msra.mxu0 0.0
    %1868 = vmatprep.subr.mxu0 0.0
    %1869 = vmatpush1.msra.mxu0 0.0
    %1870 = vmatprep.subr.mxu0 0.0
    %1871 = vmatpush1.msra.mxu0 0.0
    %1872 = vmatprep.subr.mxu0 0.0
    %1873 = vmatpush1.msra.mxu0 0.0
    %1874 = vmatprep.subr.mxu0 0.0
    %1875 = vmatpush1.msra.mxu0 0.0
    %1876 = vmatprep.subr.mxu0 0.0
    %1877 = vmatpush1.msra.mxu0 0.0
    %1878 = vmatprep.subr.mxu0 0.0
    %1879 = vmatpush1.msra.mxu0 0.0
    %1880 = vmatprep.subr.mxu0 0.0
    %1881 = vmatpush1.msra.mxu0 0.0
    %1882 = vmatprep.subr.mxu0 0.0
    %1883 = vmatpush1.msra.mxu0 0.0
    %1884 = vmatprep.subr.mxu0 0.0
    %1885 = vmatpush1.msra.mxu0 0.0
    %1886 = vmatprep.subr.mxu0 0.0
    %1887 = vmatpush1.msra.mxu0 0.0
    %1888 = vmatprep.mubr.f32.mxu0 0.0
    %1889 = vmatmul.mubr.f32.gmra.mrb[0].mxu0 %v1822
    %v1890 = vpop.f32.mrb[0].mxu0
    %v1891 = vadd.f32 0.0, %v1890
    %v1892 = vpop.f32.mrb[0].mxu0
    %1893 = vdwg.mxu0
    %v1894 = vadd.f32 %v244, %v1891
    %v1895 = vxor.u32 %v1894, 2147483648
    %v1896 = vmul.f32 %v1895, 1.442695
    %v1897 = vpow.pop %v1896
    %v1898 = vadd.f32 %v1897, 1.0
    %v1899 = vrcp.pop %v1898
    %v1900 = vmul.f32 1.0, %v1899
    %v1901 = vtanh.pop %v1894
    %v1902 = vmul.f32 %v1900, %v1708
    %1904 = vrot.lane.b32.xlu0 %v1901, 32
    %v1905 = vpop.permute.xlu0 %1904
    %v1907 = vmul.f32 %v1900, %v1905
    %1909 = vrot.lane.b32.xlu0 %v1907, 32
    %v1910 = vpop.permute.xlu0 %1909
    %v1912 = vadd.f32 %v1902, %v1910
    %v1913 = vtanh.pop %v1912
    %1915 = vrot.lane.b32.xlu0 %v1913, 32
    %v1916 = vpop.permute.xlu0 %1915
    %v1918 = vmul.f32 %v1900, %v1916
    %1920 = vrot.lane.b32.xlu0 %v1821, 64
    %v1921 = vpop.permute.xlu0 %1920
    %1923 = vst.msk [vmem:[#allocation2 + $0x38] sm:$0xff] %vm297, %v1921
    %1925 = vrot.lane.b32.xlu0 %v1918, 64
    %v1926 = vpop.permute.xlu0 %1925
    %1928 = vst.msk [vmem:[#allocation3] sm:$0xff] %vm297, %v1926
    %v1929 = vld [vmem:[#allocation2] sm:$0xff]
    %v1930 = vld [vmem:[#allocation2 + $0x8] sm:$0xff]
    %v1931 = vld [vmem:[#allocation2 + $0x10] sm:$0xff]
    %v1932 = vld [vmem:[#allocation2 + $0x18] sm:$0xff]
    %v1933 = vld [vmem:[#allocation2 + $0x20] sm:$0xff]
    %v1934 = vld [vmem:[#allocation2 + $0x28] sm:$0xff]
    %v1935 = vld [vmem:[#allocation2 + $0x30] sm:$0xff]
    %v1936 = vld [vmem:[#allocation2 + $0x38] sm:$0xff]
    %v1937 = vld [vmem:[%s4] sm:$0xff]
    %v1938 = vld [vmem:[%s4 + $0x8] sm:$0xff]
    %v1939 = vld [vmem:[%s4 + $0x10] sm:$0xff]
    %v1940 = vld [vmem:[%s4 + $0x18] sm:$0xff]
    %v1941 = vld [vmem:[%s4 + $0x20] sm:$0xff]
    %v1942 = vld [vmem:[%s4 + $0x28] sm:$0xff]
    %v1943 = vld [vmem:[%s4 + $0x30] sm:$0xff]
    %v1944 = vld [vmem:[%s4 + $0x38] sm:$0xff]
    %v1945 = vld [vmem:[#allocation3] sm:$0xff]
    %v1946 = vld [vmem:[#allocation3 + $0x8] sm:$0xff]
    %v1947 = vld [vmem:[#allocation3 + $0x10] sm:$0xff]
    %v1948 = vld [vmem:[#allocation3 + $0x18] sm:$0xff]
    %v1949 = vld [vmem:[#allocation3 + $0x20] sm:$0xff]
    %v1950 = vld [vmem:[#allocation3 + $0x28] sm:$0xff]
    %v1951 = vld [vmem:[#allocation3 + $0x30] sm:$0xff]
    %v1952 = vld [vmem:[#allocation3 + $0x38] sm:$0xff]
    %v1953 = vld [vmem:[%s5] sm:$0xff]
    %v1954 = vld [vmem:[%s5 + $0x8] sm:$0xff]
    %v1955 = vld [vmem:[%s5 + $0x10] sm:$0xff]
    %v1956 = vld [vmem:[%s5 + $0x18] sm:$0xff]
    %v1957 = vld [vmem:[%s5 + $0x20] sm:$0xff]
    %v1958 = vld [vmem:[%s5 + $0x28] sm:$0xff]
    %v1959 = vld [vmem:[%s5 + $0x30] sm:$0xff]
    %v1960 = vld [vmem:[%s5 + $0x38] sm:$0xff]
    %v1962 = vsel %vm297, %v1945, 0
    %v1965 = vsel %vm297, %v1946, 0
    %v1968 = vsel %vm297, %v1947, 0
    %v1971 = vsel %vm297, %v1948, 0
    %v1974 = vsel %vm297, %v1949, 0
    %v1977 = vsel %vm297, %v1950, 0
    %v1980 = vsel %vm297, %v1951, 0
    %v1983 = vsel %vm297, %v1952, 0
    %1985 = vmatprep.subr.mxu0 %v1954
    %1986 = vmatpush1.msra.mxu0 %v1953
    %1987 = vmatprep.subr.mxu0 %v1956
    %1988 = vmatpush1.msra.mxu0 %v1955
    %1989 = vmatprep.subr.mxu0 %v1958
    %1990 = vmatpush1.msra.mxu0 %v1957
    %1991 = vmatprep.subr.mxu0 %v1960
    %1992 = vmatpush1.msra.mxu0 %v1959
    %1993 = vmatprep.subr.mxu0 0.0
    %1994 = vmatpush1.msra.mxu0 0.0
    %1995 = vmatprep.subr.mxu0 0.0
    %1996 = vmatpush1.msra.mxu0 0.0
    %1997 = vmatprep.subr.mxu0 0.0
    %1998 = vmatpush1.msra.mxu0 0.0
    %1999 = vmatprep.subr.mxu0 0.0
    %2000 = vmatpush1.msra.mxu0 0.0
    %2001 = vmatprep.subr.mxu0 0.0
    %2002 = vmatpush1.msra.mxu0 0.0
    %2003 = vmatprep.subr.mxu0 0.0
    %2004 = vmatpush1.msra.mxu0 0.0
    %2005 = vmatprep.subr.mxu0 0.0
    %2006 = vmatpush1.msra.mxu0 0.0
    %2007 = vmatprep.subr.mxu0 0.0
    %2008 = vmatpush1.msra.mxu0 0.0
    %2009 = vmatprep.subr.mxu0 0.0
    %2010 = vmatpush1.msra.mxu0 0.0
    %2011 = vmatprep.subr.mxu0 0.0
    %2012 = vmatpush1.msra.mxu0 0.0
    %2013 = vmatprep.subr.mxu0 0.0
    %2014 = vmatpush1.msra.mxu0 0.0
    %2015 = vmatprep.subr.mxu0 0.0
    %2016 = vmatpush1.msra.mxu0 0.0
    %2017 = vmatprep.subr.mxu0 0.0
    %2018 = vmatpush1.msra.mxu0 0.0
    %2019 = vmatprep.subr.mxu0 0.0
    %2020 = vmatpush1.msra.mxu0 0.0
    %2021 = vmatprep.subr.mxu0 0.0
    %2022 = vmatpush1.msra.mxu0 0.0
    %2023 = vmatprep.subr.mxu0 0.0
    %2024 = vmatpush1.msra.mxu0 0.0
    %2025 = vmatprep.subr.mxu0 0.0
    %2026 = vmatpush1.msra.mxu0 0.0
    %2027 = vmatprep.subr.mxu0 0.0
    %2028 = vmatpush1.msra.mxu0 0.0
    %2029 = vmatprep.subr.mxu0 0.0
    %2030 = vmatpush1.msra.mxu0 0.0
    %2031 = vmatprep.subr.mxu0 0.0
    %2032 = vmatpush1.msra.mxu0 0.0
    %2033 = vmatprep.subr.mxu0 0.0
    %2034 = vmatpush1.msra.mxu0 0.0
    %2035 = vmatprep.subr.mxu0 0.0
    %2036 = vmatpush1.msra.mxu0 0.0
    %2037 = vmatprep.subr.mxu0 0.0
    %2038 = vmatpush1.msra.mxu0 0.0
    %2039 = vmatprep.subr.mxu0 0.0
    %2040 = vmatpush1.msra.mxu0 0.0
    %2041 = vmatprep.subr.mxu0 0.0
    %2042 = vmatpush1.msra.mxu0 0.0
    %2043 = vmatprep.subr.mxu0 0.0
    %2044 = vmatpush1.msra.mxu0 0.0
    %2045 = vmatprep.subr.mxu0 0.0
    %2046 = vmatpush1.msra.mxu0 0.0
    %2047 = vmatprep.subr.mxu0 0.0
    %2048 = vmatpush1.msra.mxu0 0.0
    %2049 = vmatprep.mubr.f32.mxu0 0.0
    %2050 = vmatmul.mubr.f32.gmra.mrb[0].mxu0 %v1962
    %v2051 = vpop.f32.mrb[0].mxu0
    %v2052 = vadd.f32 0.0, %v2051
    %v2053 = vpop.f32.mrb[0].mxu0
    %v2054 = vadd.f32 0.0, %v2053
    %2055 = vmatprep.mubr.f32.mxu0 0.0
    %2056 = vmatmul.mubr.f32.gmra.mrb[0].mxu0 %v1965
    %v2057 = vpop.f32.mrb[0].mxu0
    %v2058 = vadd.f32 0.0, %v2057
    %v2059 = vpop.f32.mrb[0].mxu0
    %v2060 = vadd.f32 0.0, %v2059
    %2061 = vmatprep.mubr.f32.mxu0 0.0
    %2062 = vmatmul.mubr.f32.gmra.mrb[0].mxu0 %v1968
    %v2063 = vpop.f32.mrb[0].mxu0
    %v2064 = vadd.f32 0.0, %v2063
    %v2065 = vpop.f32.mrb[0].mxu0
    %v2066 = vadd.f32 0.0, %v2065
    %2067 = vmatprep.mubr.f32.mxu0 0.0
    %2068 = vmatmul.mubr.f32.gmra.mrb[0].mxu0 %v1971
    %v2069 = vpop.f32.mrb[0].mxu0
    %v2070 = vadd.f32 0.0, %v2069
    %v2071 = vpop.f32.mrb[0].mxu0
    %v2072 = vadd.f32 0.0, %v2071
    %2073 = vmatprep.mubr.f32.mxu0 0.0
    %2074 = vmatmul.mubr.f32.gmra.mrb[0].mxu0 %v1974
    %v2075 = vpop.f32.mrb[0].mxu0
    %v2076 = vadd.f32 0.0, %v2075
    %v2077 = vpop.f32.mrb[0].mxu0
    %v2078 = vadd.f32 0.0, %v2077
    %2079 = vmatprep.mubr.f32.mxu0 0.0
    %2080 = vmatmul.mubr.f32.gmra.mrb[0].mxu0 %v1977
    %v2081 = vpop.f32.mrb[0].mxu0
    %v2082 = vadd.f32 0.0, %v2081
    %v2083 = vpop.f32.mrb[0].mxu0
    %v2084 = vadd.f32 0.0, %v2083
    %2085 = vmatprep.mubr.f32.mxu0 0.0
    %2086 = vmatmul.mubr.f32.gmra.mrb[0].mxu0 %v1980
    %v2087 = vpop.f32.mrb[0].mxu0
    %v2088 = vadd.f32 0.0, %v2087
    %v2089 = vpop.f32.mrb[0].mxu0
    %v2090 = vadd.f32 0.0, %v2089
    %2091 = vmatprep.mubr.f32.mxu0 0.0
    %2092 = vmatmul.mubr.f32.gmra.mrb[0].mxu0 %v1983
    %v2093 = vpop.f32.mrb[0].mxu0
    %v2094 = vadd.f32 0.0, %v2093
    %v2095 = vpop.f32.mrb[0].mxu0
    %v2096 = vadd.f32 0.0, %v2095
    %2097 = vdwg.mxu0
    %v2099 = vsel %vm297, %v1929, 0
    %v2102 = vsel %vm297, %v1930, 0
    %v2105 = vsel %vm297, %v1931, 0
    %v2108 = vsel %vm297, %v1932, 0
    %v2111 = vsel %vm297, %v1933, 0
    %v2114 = vsel %vm297, %v1934, 0
    %v2117 = vsel %vm297, %v1935, 0
    %v2120 = vsel %vm297, %v1936, 0
    %2122 = vmatprep.subr.mxu0 %v1938
    %2123 = vmatpush1.msra.mxu0 %v1937
    %2124 = vmatprep.subr.mxu0 %v1940
    %2125 = vmatpush1.msra.mxu0 %v1939
    %2126 = vmatprep.subr.mxu0 %v1942
    %2127 = vmatpush1.msra.mxu0 %v1941
    %2128 = vmatprep.subr.mxu0 %v1944
    %2129 = vmatpush1.msra.mxu0 %v1943
    %2130 = vmatprep.subr.mxu0 0.0
    %2131 = vmatpush1.msra.mxu0 0.0
    %2132 = vmatprep.subr.mxu0 0.0
    %2133 = vmatpush1.msra.mxu0 0.0
    %2134 = vmatprep.subr.mxu0 0.0
    %2135 = vmatpush1.msra.mxu0 0.0
    %2136 = vmatprep.subr.mxu0 0.0
    %2137 = vmatpush1.msra.mxu0 0.0
    %2138 = vmatprep.subr.mxu0 0.0
    %2139 = vmatpush1.msra.mxu0 0.0
    %2140 = vmatprep.subr.mxu0 0.0
    %2141 = vmatpush1.msra.mxu0 0.0
    %2142 = vmatprep.subr.mxu0 0.0
    %2143 = vmatpush1.msra.mxu0 0.0
    %2144 = vmatprep.subr.mxu0 0.0
    %2145 = vmatpush1.msra.mxu0 0.0
    %2146 = vmatprep.subr.mxu0 0.0
    %2147 = vmatpush1.msra.mxu0 0.0
    %2148 = vmatprep.subr.mxu0 0.0
    %2149 = vmatpush1.msra.mxu0 0.0
    %2150 = vmatprep.subr.mxu0 0.0
    %2151 = vmatpush1.msra.mxu0 0.0
    %2152 = vmatprep.subr.mxu0 0.0
    %2153 = vmatpush1.msra.mxu0 0.0
    %2154 = vmatprep.subr.mxu0 0.0
    %2155 = vmatpush1.msra.mxu0 0.0
    %2156 = vmatprep.subr.mxu0 0.0
    %2157 = vmatpush1.msra.mxu0 0.0
    %2158 = vmatprep.subr.mxu0 0.0
    %2159 = vmatpush1.msra.mxu0 0.0
    %2160 = vmatprep.subr.mxu0 0.0
    %2161 = vmatpush1.msra.mxu0 0.0
    %2162 = vmatprep.subr.mxu0 0.0
    %2163 = vmatpush1.msra.mxu0 0.0
    %2164 = vmatprep.subr.mxu0 0.0
    %2165 = vmatpush1.msra.mxu0 0.0
    %2166 = vmatprep.subr.mxu0 0.0
    %2167 = vmatpush1.msra.mxu0 0.0
    %2168 = vmatprep.subr.mxu0 0.0
    %2169 = vmatpush1.msra.mxu0 0.0
    %2170 = vmatprep.subr.mxu0 0.0
    %2171 = vmatpush1.msra.mxu0 0.0
    %2172 = vmatprep.subr.mxu0 0.0
    %2173 = vmatpush1.msra.mxu0 0.0
    %2174 = vmatprep.subr.mxu0 0.0
    %2175 = vmatpush1.msra.mxu0 0.0
    %2176 = vmatprep.subr.mxu0 0.0
    %2177 = vmatpush1.msra.mxu0 0.0
    %2178 = vmatprep.subr.mxu0 0.0
    %2179 = vmatpush1.msra.mxu0 0.0
    %2180 = vmatprep.subr.mxu0 0.0
    %2181 = vmatpush1.msra.mxu0 0.0
    %2182 = vmatprep.subr.mxu0 0.0
    %2183 = vmatpush1.msra.mxu0 0.0
    %2184 = vmatprep.subr.mxu0 0.0
    %2185 = vmatpush1.msra.mxu0 0.0
    %2186 = vmatprep.mubr.f32.mxu0 0.0
    %2187 = vmatmul.mubr.f32.gmra.mrb[0].mxu0 %v2099
    %v2188 = vpop.f32.mrb[0].mxu0
    %v2189 = vadd.f32 %v2052, %v2188
    %v2190 = vpop.f32.mrb[0].mxu0
    %v2191 = vadd.f32 %v2054, %v2190
    %2192 = vmatprep.mubr.f32.mxu0 0.0
    %2193 = vmatmul.mubr.f32.gmra.mrb[0].mxu0 %v2102
    %v2194 = vpop.f32.mrb[0].mxu0
    %v2195 = vadd.f32 %v2058, %v2194
    %v2196 = vpop.f32.mrb[0].mxu0
    %v2197 = vadd.f32 %v2060, %v2196
    %2198 = vmatprep.mubr.f32.mxu0 0.0
    %2199 = vmatmul.mubr.f32.gmra.mrb[0].mxu0 %v2105
    %v2200 = vpop.f32.mrb[0].mxu0
    %v2201 = vadd.f32 %v2064, %v2200
    %v2202 = vpop.f32.mrb[0].mxu0
    %v2203 = vadd.f32 %v2066, %v2202
    %2204 = vmatprep.mubr.f32.mxu0 0.0
    %2205 = vmatmul.mubr.f32.gmra.mrb[0].mxu0 %v2108
    %v2206 = vpop.f32.mrb[0].mxu0
    %v2207 = vadd.f32 %v2070, %v2206
    %v2208 = vpop.f32.mrb[0].mxu0
    %v2209 = vadd.f32 %v2072, %v2208
    %2210 = vmatprep.mubr.f32.mxu0 0.0
    %2211 = vmatmul.mubr.f32.gmra.mrb[0].mxu0 %v2111
    %v2212 = vpop.f32.mrb[0].mxu0
    %v2213 = vadd.f32 %v2076, %v2212
    %v2214 = vpop.f32.mrb[0].mxu0
    %v2215 = vadd.f32 %v2078, %v2214
    %2216 = vmatprep.mubr.f32.mxu0 0.0
    %2217 = vmatmul.mubr.f32.gmra.mrb[0].mxu0 %v2114
    %v2218 = vpop.f32.mrb[0].mxu0
    %v2219 = vadd.f32 %v2082, %v2218
    %v2220 = vpop.f32.mrb[0].mxu0
    %v2221 = vadd.f32 %v2084, %v2220
    %2222 = vmatprep.mubr.f32.mxu0 0.0
    %2223 = vmatmul.mubr.f32.gmra.mrb[0].mxu0 %v2117
    %v2224 = vpop.f32.mrb[0].mxu0
    %v2225 = vadd.f32 %v2088, %v2224
    %v2226 = vpop.f32.mrb[0].mxu0
    %v2227 = vadd.f32 %v2090, %v2226
    %2228 = vmatprep.mubr.f32.mxu0 0.0
    %2229 = vmatmul.mubr.f32.gmra.mrb[0].mxu0 %v2120
    %v2230 = vpop.f32.mrb[0].mxu0
    %v2231 = vadd.f32 %v2094, %v2230
    %v2232 = vpop.f32.mrb[0].mxu0
    %v2233 = vadd.f32 %v2096, %v2232
    %2234 = vdwg.mxu0
    %v2235 = vld [vmem:[%s7] sm:$0x3]
    %v2237 = vlaneseq
    %v2238 = vshrl.u32 %v2237, 7
    %v2239 = vsub.s32 0, %v2238
    %v2240 = vrot.slane %v2235, %v2239
    %v2241 = vlaneseq
    %v2242 = vshrl.u32 %v2241, 7
    %v2243 = vsub.s32 1, %v2242
    %v2244 = vrot.slane %v2235, %v2243
    %v2247 = vadd.f32 %v2189, %v2240
    %v2248 = vadd.f32 %v2191, %v2244
    %v2249 = vadd.f32 %v2195, %v2240
    %v2250 = vadd.f32 %v2197, %v2244
    %v2251 = vadd.f32 %v2201, %v2240
    %v2252 = vadd.f32 %v2203, %v2244
    %v2253 = vadd.f32 %v2207, %v2240
    %v2254 = vadd.f32 %v2209, %v2244
    %v2255 = vadd.f32 %v2213, %v2240
    %v2256 = vadd.f32 %v2215, %v2244
    %v2257 = vadd.f32 %v2219, %v2240
    %v2258 = vadd.f32 %v2221, %v2244
    %v2259 = vadd.f32 %v2225, %v2240
    %v2260 = vadd.f32 %v2227, %v2244
    %v2261 = vadd.f32 %v2231, %v2240
    %v2262 = vadd.f32 %v2233, %v2244
    %v2263 = vld [vmem:[#allocation7] sm:$0xff]
    %v2264 = vld [vmem:[#allocation7 + $0x8] sm:$0xff]
    %v2265 = vld [vmem:[#allocation7 + $0x10] sm:$0xff]
    %v2266 = vld [vmem:[#allocation7 + $0x18] sm:$0xff]
    %s2267 = scalar_lea.vmem [#allocation7], 32
    %v2268 = vld [vmem:[%s2267] sm:$0xff]
    %v2269 = vld [vmem:[%s2267 + $0x8] sm:$0xff]
    %v2270 = vld [vmem:[%s2267 + $0x10] sm:$0xff]
    %v2271 = vld [vmem:[%s2267 + $0x18] sm:$0xff]
    %2272 = vmatprep.subr.mxu0 0.0
    %2273 = vmatpush1.msra.mxu0 %v2263
    %2274 = vmatprep.subr.mxu0 0.0
    %2275 = vmatpush1.msra.mxu0 %v2264
    %2276 = vmatprep.subr.mxu0 0.0
    %2277 = vmatpush1.msra.mxu0 %v2265
    %2278 = vmatprep.subr.mxu0 0.0
    %2279 = vmatpush1.msra.mxu0 %v2266
    %2280 = vmatprep.subr.mxu0 0.0
    %2281 = vmatpush1.msra.mxu0 0.0
    %2282 = vmatprep.subr.mxu0 0.0
    %2283 = vmatpush1.msra.mxu0 0.0
    %2284 = vmatprep.subr.mxu0 0.0
    %2285 = vmatpush1.msra.mxu0 0.0
    %2286 = vmatprep.subr.mxu0 0.0
    %2287 = vmatpush1.msra.mxu0 0.0
    %2288 = vmatprep.subr.mxu0 0.0
    %2289 = vmatpush1.msra.mxu0 0.0
    %2290 = vmatprep.subr.mxu0 0.0
    %2291 = vmatpush1.msra.mxu0 0.0
    %2292 = vmatprep.subr.mxu0 0.0
    %2293 = vmatpush1.msra.mxu0 0.0
    %2294 = vmatprep.subr.mxu0 0.0
    %2295 = vmatpush1.msra.mxu0 0.0
    %2296 = vmatprep.subr.mxu0 0.0
    %2297 = vmatpush1.msra.mxu0 0.0
    %2298 = vmatprep.subr.mxu0 0.0
    %2299 = vmatpush1.msra.mxu0 0.0
    %2300 = vmatprep.subr.mxu0 0.0
    %2301 = vmatpush1.msra.mxu0 0.0
    %2302 = vmatprep.subr.mxu0 0.0
    %2303 = vmatpush1.msra.mxu0 0.0
    %2304 = vmatprep.subr.mxu0 0.0
    %2305 = vmatpush1.msra.mxu0 0.0
    %2306 = vmatprep.subr.mxu0 0.0
    %2307 = vmatpush1.msra.mxu0 0.0
    %2308 = vmatprep.subr.mxu0 0.0
    %2309 = vmatpush1.msra.mxu0 0.0
    %2310 = vmatprep.subr.mxu0 0.0
    %2311 = vmatpush1.msra.mxu0 0.0
    %2312 = vmatprep.subr.mxu0 0.0
    %2313 = vmatpush1.msra.mxu0 0.0
    %2314 = vmatprep.subr.mxu0 0.0
    %2315 = vmatpush1.msra.mxu0 0.0
    %2316 = vmatprep.subr.mxu0 0.0
    %2317 = vmatpush1.msra.mxu0 0.0
    %2318 = vmatprep.subr.mxu0 0.0
    %2319 = vmatpush1.msra.mxu0 0.0
    %2320 = vmatprep.subr.mxu0 0.0
    %2321 = vmatpush1.msra.mxu0 0.0
    %2322 = vmatprep.subr.mxu0 0.0
    %2323 = vmatpush1.msra.mxu0 0.0
    %2324 = vmatprep.subr.mxu0 0.0
    %2325 = vmatpush1.msra.mxu0 0.0
    %2326 = vmatprep.subr.mxu0 0.0
    %2327 = vmatpush1.msra.mxu0 0.0
    %2328 = vmatprep.subr.mxu0 0.0
    %2329 = vmatpush1.msra.mxu0 0.0
    %2330 = vmatprep.subr.mxu0 0.0
    %2331 = vmatpush1.msra.mxu0 0.0
    %2332 = vmatprep.subr.mxu0 0.0
    %2333 = vmatpush1.msra.mxu0 0.0
    %2334 = vmatprep.subr.mxu0 0.0
    %2335 = vmatpush1.msra.mxu0 0.0
    %2336 = vmatprep.mubr.f32.mxu0 0.0
    %2337 = vmatmul.mubr.f32.gmra.mrb[0].mxu0 %v299
    %v2338 = vpop.f32.mrb[0].mxu0
    %v2339 = vadd.f32 0.0, %v2338
    %v2340 = vpop.f32.mrb[0].mxu0
    %2341 = vdwg.mxu0
    %v2342 = vadd.f32 %v2247, %v2339
    %v2343 = vxor.u32 %v2342, 2147483648
    %v2344 = vmul.f32 %v2343, 1.442695
    %v2345 = vpow.pop %v2344
    %v2346 = vadd.f32 %v2345, 1.0
    %v2347 = vrcp.pop %v2346
    %v2348 = vmul.f32 1.0, %v2347
    %v2349 = vtanh.pop %v2342
    %v2350 = vmul.f32 %v2348, 0.0
    %2352 = vrot.lane.b32.xlu0 %v2349, 32
    %v2353 = vpop.permute.xlu0 %2352
    %v2355 = vmul.f32 %v2348, %v2353
    %2357 = vrot.lane.b32.xlu0 %v2355, 32
    %v2358 = vpop.permute.xlu0 %2357
    %v2360 = vadd.f32 %v2350, %v2358
    %v2361 = vtanh.pop %v2360
    %2363 = vrot.lane.b32.xlu0 %v2361, 32
    %v2364 = vpop.permute.xlu0 %2363
    %v2366 = vmul.f32 %v2348, %v2364
    %2367 = vmatprep.subr.mxu0 0.0
    %2368 = vmatpush1.msra.mxu0 %v2268
    %2369 = vmatprep.subr.mxu0 0.0
    %2370 = vmatpush1.msra.mxu0 %v2269
    %2371 = vmatprep.subr.mxu0 0.0
    %2372 = vmatpush1.msra.mxu0 %v2270
    %2373 = vmatprep.subr.mxu0 0.0
    %2374 = vmatpush1.msra.mxu0 %v2271
    %2375 = vmatprep.subr.mxu0 0.0
    %2376 = vmatpush1.msra.mxu0 0.0
    %2377 = vmatprep.subr.mxu0 0.0
    %2378 = vmatpush1.msra.mxu0 0.0
    %2379 = vmatprep.subr.mxu0 0.0
    %2380 = vmatpush1.msra.mxu0 0.0
    %2381 = vmatprep.subr.mxu0 0.0
    %2382 = vmatpush1.msra.mxu0 0.0
    %2383 = vmatprep.subr.mxu0 0.0
    %2384 = vmatpush1.msra.mxu0 0.0
    %2385 = vmatprep.subr.mxu0 0.0
    %2386 = vmatpush1.msra.mxu0 0.0
    %2387 = vmatprep.subr.mxu0 0.0
    %2388 = vmatpush1.msra.mxu0 0.0
    %2389 = vmatprep.subr.mxu0 0.0
    %2390 = vmatpush1.msra.mxu0 0.0
    %2391 = vmatprep.subr.mxu0 0.0
    %2392 = vmatpush1.msra.mxu0 0.0
    %2393 = vmatprep.subr.mxu0 0.0
    %2394 = vmatpush1.msra.mxu0 0.0
    %2395 = vmatprep.subr.mxu0 0.0
    %2396 = vmatpush1.msra.mxu0 0.0
    %2397 = vmatprep.subr.mxu0 0.0
    %2398 = vmatpush1.msra.mxu0 0.0
    %2399 = vmatprep.subr.mxu0 0.0
    %2400 = vmatpush1.msra.mxu0 0.0
    %2401 = vmatprep.subr.mxu0 0.0
    %2402 = vmatpush1.msra.mxu0 0.0
    %2403 = vmatprep.subr.mxu0 0.0
    %2404 = vmatpush1.msra.mxu0 0.0
    %2405 = vmatprep.subr.mxu0 0.0
    %2406 = vmatpush1.msra.mxu0 0.0
    %2407 = vmatprep.subr.mxu0 0.0
    %2408 = vmatpush1.msra.mxu0 0.0
    %2409 = vmatprep.subr.mxu0 0.0
    %2410 = vmatpush1.msra.mxu0 0.0
    %2411 = vmatprep.subr.mxu0 0.0
    %2412 = vmatpush1.msra.mxu0 0.0
    %2413 = vmatprep.subr.mxu0 0.0
    %2414 = vmatpush1.msra.mxu0 0.0
    %2415 = vmatprep.subr.mxu0 0.0
    %2416 = vmatpush1.msra.mxu0 0.0
    %2417 = vmatprep.subr.mxu0 0.0
    %2418 = vmatpush1.msra.mxu0 0.0
    %2419 = vmatprep.subr.mxu0 0.0
    %2420 = vmatpush1.msra.mxu0 0.0
    %2421 = vmatprep.subr.mxu0 0.0
    %2422 = vmatpush1.msra.mxu0 0.0
    %2423 = vmatprep.subr.mxu0 0.0
    %2424 = vmatpush1.msra.mxu0 0.0
    %2425 = vmatprep.subr.mxu0 0.0
    %2426 = vmatpush1.msra.mxu0 0.0
    %2427 = vmatprep.subr.mxu0 0.0
    %2428 = vmatpush1.msra.mxu0 0.0
    %2429 = vmatprep.subr.mxu0 0.0
    %2430 = vmatpush1.msra.mxu0 0.0
    %2431 = vmatprep.mubr.f32.mxu0 0.0
    %2432 = vmatmul.mubr.f32.gmra.mrb[0].mxu0 %v299
    %v2433 = vpop.f32.mrb[0].mxu0
    %v2434 = vadd.f32 0.0, %v2433
    %v2435 = vpop.f32.mrb[0].mxu0
    %2436 = vdwg.mxu0
    %v2437 = vadd.f32 %v2262, %v2434
    %v2438 = vxor.u32 %v2437, 2147483648
    %v2439 = vmul.f32 %v2438, 1.442695
    %v2440 = vpow.pop %v2439
    %v2441 = vadd.f32 %v2440, 1.0
    %v2442 = vrcp.pop %v2441
    %v2443 = vmul.f32 1.0, %v2442
    %v2444 = vtanh.pop %v2437
    %v2445 = vmul.f32 %v2443, 0.0
    %2447 = vrot.lane.b32.xlu0 %v2444, 32
    %v2448 = vpop.permute.xlu0 %2447
    %v2450 = vmul.f32 %v2443, %v2448
    %2452 = vrot.lane.b32.xlu0 %v2450, 32
    %v2453 = vpop.permute.xlu0 %2452
    %v2455 = vadd.f32 %v2445, %v2453
    %v2456 = vtanh.pop %v2455
    %2458 = vrot.lane.b32.xlu0 %v2456, 32
    %v2459 = vpop.permute.xlu0 %2458
    %v2461 = vmul.f32 %v2443, %v2459
    %v2462 = vadd.f32 %v2366, 0.0
    %v2463 = vadd.f32 %v2461, 0.0
    %2465 = vrot.lane.b32.xlu0 %v2366, 64
    %v2466 = vpop.permute.xlu0 %2465
    %v2467 = vsel %vm297, %v2466, 0
    %2469 = vmatprep.subr.mxu0 0.0
    %2470 = vmatpush1.msra.mxu0 %v2263
    %2471 = vmatprep.subr.mxu0 0.0
    %2472 = vmatpush1.msra.mxu0 %v2264
    %2473 = vmatprep.subr.mxu0 0.0
    %2474 = vmatpush1.msra.mxu0 %v2265
    %2475 = vmatprep.subr.mxu0 0.0
    %2476 = vmatpush1.msra.mxu0 %v2266
    %2477 = vmatprep.subr.mxu0 0.0
    %2478 = vmatpush1.msra.mxu0 0.0
    %2479 = vmatprep.subr.mxu0 0.0
    %2480 = vmatpush1.msra.mxu0 0.0
    %2481 = vmatprep.subr.mxu0 0.0
    %2482 = vmatpush1.msra.mxu0 0.0
    %2483 = vmatprep.subr.mxu0 0.0
    %2484 = vmatpush1.msra.mxu0 0.0
    %2485 = vmatprep.subr.mxu0 0.0
    %2486 = vmatpush1.msra.mxu0 0.0
    %2487 = vmatprep.subr.mxu0 0.0
    %2488 = vmatpush1.msra.mxu0 0.0
    %2489 = vmatprep.subr.mxu0 0.0
    %2490 = vmatpush1.msra.mxu0 0.0
    %2491 = vmatprep.subr.mxu0 0.0
    %2492 = vmatpush1.msra.mxu0 0.0
    %2493 = vmatprep.subr.mxu0 0.0
    %2494 = vmatpush1.msra.mxu0 0.0
    %2495 = vmatprep.subr.mxu0 0.0
    %2496 = vmatpush1.msra.mxu0 0.0
    %2497 = vmatprep.subr.mxu0 0.0
    %2498 = vmatpush1.msra.mxu0 0.0
    %2499 = vmatprep.subr.mxu0 0.0
    %2500 = vmatpush1.msra.mxu0 0.0
    %2501 = vmatprep.subr.mxu0 0.0
    %2502 = vmatpush1.msra.mxu0 0.0
    %2503 = vmatprep.subr.mxu0 0.0
    %2504 = vmatpush1.msra.mxu0 0.0
    %2505 = vmatprep.subr.mxu0 0.0
    %2506 = vmatpush1.msra.mxu0 0.0
    %2507 = vmatprep.subr.mxu0 0.0
    %2508 = vmatpush1.msra.mxu0 0.0
    %2509 = vmatprep.subr.mxu0 0.0
    %2510 = vmatpush1.msra.mxu0 0.0
    %2511 = vmatprep.subr.mxu0 0.0
    %2512 = vmatpush1.msra.mxu0 0.0
    %2513 = vmatprep.subr.mxu0 0.0
    %2514 = vmatpush1.msra.mxu0 0.0
    %2515 = vmatprep.subr.mxu0 0.0
    %2516 = vmatpush1.msra.mxu0 0.0
    %2517 = vmatprep.subr.mxu0 0.0
    %2518 = vmatpush1.msra.mxu0 0.0
    %2519 = vmatprep.subr.mxu0 0.0
    %2520 = vmatpush1.msra.mxu0 0.0
    %2521 = vmatprep.subr.mxu0 0.0
    %2522 = vmatpush1.msra.mxu0 0.0
    %2523 = vmatprep.subr.mxu0 0.0
    %2524 = vmatpush1.msra.mxu0 0.0
    %2525 = vmatprep.subr.mxu0 0.0
    %2526 = vmatpush1.msra.mxu0 0.0
    %2527 = vmatprep.subr.mxu0 0.0
    %2528 = vmatpush1.msra.mxu0 0.0
    %2529 = vmatprep.subr.mxu0 0.0
    %2530 = vmatpush1.msra.mxu0 0.0
    %2531 = vmatprep.subr.mxu0 0.0
    %2532 = vmatpush1.msra.mxu0 0.0
    %2533 = vmatprep.mubr.f32.mxu0 0.0
    %2534 = vmatmul.mubr.f32.gmra.mrb[0].mxu0 %v2467
    %v2535 = vpop.f32.mrb[0].mxu0
    %v2536 = vadd.f32 0.0, %v2535
    %v2537 = vpop.f32.mrb[0].mxu0
    %2538 = vdwg.mxu0
    %v2539 = vadd.f32 %v2249, %v2536
    %v2540 = vxor.u32 %v2539, 2147483648
    %v2541 = vmul.f32 %v2540, 1.442695
    %v2542 = vpow.pop %v2541
    %v2543 = vadd.f32 %v2542, 1.0
    %v2544 = vrcp.pop %v2543
    %v2545 = vmul.f32 1.0, %v2544
    %v2546 = vtanh.pop %v2539
    %v2547 = vmul.f32 %v2545, %v2360
    %2549 = vrot.lane.b32.xlu0 %v2546, 32
    %v2550 = vpop.permute.xlu0 %2549
    %v2552 = vmul.f32 %v2545, %v2550
    %2554 = vrot.lane.b32.xlu0 %v2552, 32
    %v2555 = vpop.permute.xlu0 %2554
    %v2557 = vadd.f32 %v2547, %v2555
    %v2558 = vtanh.pop %v2557
    %2560 = vrot.lane.b32.xlu0 %v2558, 32
    %v2561 = vpop.permute.xlu0 %2560
    %v2563 = vmul.f32 %v2545, %v2561
    %2565 = vrot.lane.b32.xlu0 %v2461, 64
    %v2566 = vpop.permute.xlu0 %2565
    %v2567 = vsel %vm297, %v2566, 0
    %2569 = vmatprep.subr.mxu0 0.0
    %2570 = vmatpush1.msra.mxu0 %v2268
    %2571 = vmatprep.subr.mxu0 0.0
    %2572 = vmatpush1.msra.mxu0 %v2269
    %2573 = vmatprep.subr.mxu0 0.0
    %2574 = vmatpush1.msra.mxu0 %v2270
    %2575 = vmatprep.subr.mxu0 0.0
    %2576 = vmatpush1.msra.mxu0 %v2271
    %2577 = vmatprep.subr.mxu0 0.0
    %2578 = vmatpush1.msra.mxu0 0.0
    %2579 = vmatprep.subr.mxu0 0.0
    %2580 = vmatpush1.msra.mxu0 0.0
    %2581 = vmatprep.subr.mxu0 0.0
    %2582 = vmatpush1.msra.mxu0 0.0
    %2583 = vmatprep.subr.mxu0 0.0
    %2584 = vmatpush1.msra.mxu0 0.0
    %2585 = vmatprep.subr.mxu0 0.0
    %2586 = vmatpush1.msra.mxu0 0.0
    %2587 = vmatprep.subr.mxu0 0.0
    %2588 = vmatpush1.msra.mxu0 0.0
    %2589 = vmatprep.subr.mxu0 0.0
    %2590 = vmatpush1.msra.mxu0 0.0
    %2591 = vmatprep.subr.mxu0 0.0
    %2592 = vmatpush1.msra.mxu0 0.0
    %2593 = vmatprep.subr.mxu0 0.0
    %2594 = vmatpush1.msra.mxu0 0.0
    %2595 = vmatprep.subr.mxu0 0.0
    %2596 = vmatpush1.msra.mxu0 0.0
    %2597 = vmatprep.subr.mxu0 0.0
    %2598 = vmatpush1.msra.mxu0 0.0
    %2599 = vmatprep.subr.mxu0 0.0
    %2600 = vmatpush1.msra.mxu0 0.0
    %2601 = vmatprep.subr.mxu0 0.0
    %2602 = vmatpush1.msra.mxu0 0.0
    %2603 = vmatprep.subr.mxu0 0.0
    %2604 = vmatpush1.msra.mxu0 0.0
    %2605 = vmatprep.subr.mxu0 0.0
    %2606 = vmatpush1.msra.mxu0 0.0
    %2607 = vmatprep.subr.mxu0 0.0
    %2608 = vmatpush1.msra.mxu0 0.0
    %2609 = vmatprep.subr.mxu0 0.0
    %2610 = vmatpush1.msra.mxu0 0.0
    %2611 = vmatprep.subr.mxu0 0.0
    %2612 = vmatpush1.msra.mxu0 0.0
    %2613 = vmatprep.subr.mxu0 0.0
    %2614 = vmatpush1.msra.mxu0 0.0
    %2615 = vmatprep.subr.mxu0 0.0
    %2616 = vmatpush1.msra.mxu0 0.0
    %2617 = vmatprep.subr.mxu0 0.0
    %2618 = vmatpush1.msra.mxu0 0.0
    %2619 = vmatprep.subr.mxu0 0.0
    %2620 = vmatpush1.msra.mxu0 0.0
    %2621 = vmatprep.subr.mxu0 0.0
    %2622 = vmatpush1.msra.mxu0 0.0
    %2623 = vmatprep.subr.mxu0 0.0
    %2624 = vmatpush1.msra.mxu0 0.0
    %2625 = vmatprep.subr.mxu0 0.0
    %2626 = vmatpush1.msra.mxu0 0.0
    %2627 = vmatprep.subr.mxu0 0.0
    %2628 = vmatpush1.msra.mxu0 0.0
    %2629 = vmatprep.subr.mxu0 0.0
    %2630 = vmatpush1.msra.mxu0 0.0
    %2631 = vmatprep.subr.mxu0 0.0
    %2632 = vmatpush1.msra.mxu0 0.0
    %2633 = vmatprep.mubr.f32.mxu0 0.0
    %2634 = vmatmul.mubr.f32.gmra.mrb[0].mxu0 %v2567
    %v2635 = vpop.f32.mrb[0].mxu0
    %v2636 = vadd.f32 0.0, %v2635
    %v2637 = vpop.f32.mrb[0].mxu0
    %2638 = vdwg.mxu0
    %v2639 = vadd.f32 %v2260, %v2636
    %v2640 = vxor.u32 %v2639, 2147483648
    %v2641 = vmul.f32 %v2640, 1.442695
    %v2642 = vpow.pop %v2641
    %v2643 = vadd.f32 %v2642, 1.0
    %v2644 = vrcp.pop %v2643
    %v2645 = vmul.f32 1.0, %v2644
    %v2646 = vtanh.pop %v2639
    %v2647 = vmul.f32 %v2645, %v2455
    %2649 = vrot.lane.b32.xlu0 %v2646, 32
    %v2650 = vpop.permute.xlu0 %2649
    %v2652 = vmul.f32 %v2645, %v2650
    %2654 = vrot.lane.b32.xlu0 %v2652, 32
    %v2655 = vpop.permute.xlu0 %2654
    %v2657 = vadd.f32 %v2647, %v2655
    %v2658 = vtanh.pop %v2657
    %2660 = vrot.lane.b32.xlu0 %v2658, 32
    %v2661 = vpop.permute.xlu0 %2660
    %v2663 = vmul.f32 %v2645, %v2661
    %v2664 = vadd.f32 %v2462, %v2563
    %v2665 = vadd.f32 %v2463, %v2663
    %2667 = vrot.lane.b32.xlu0 %v2563, 64
    %v2668 = vpop.permute.xlu0 %2667
    %v2669 = vsel %vm297, %v2668, 0
    %2671 = vmatprep.subr.mxu0 0.0
    %2672 = vmatpush1.msra.mxu0 %v2263
    %2673 = vmatprep.subr.mxu0 0.0
    %2674 = vmatpush1.msra.mxu0 %v2264
    %2675 = vmatprep.subr.mxu0 0.0
    %2676 = vmatpush1.msra.mxu0 %v2265
    %2677 = vmatprep.subr.mxu0 0.0
    %2678 = vmatpush1.msra.mxu0 %v2266
    %2679 = vmatprep.subr.mxu0 0.0
    %2680 = vmatpush1.msra.mxu0 0.0
    %2681 = vmatprep.subr.mxu0 0.0
    %2682 = vmatpush1.msra.mxu0 0.0
    %2683 = vmatprep.subr.mxu0 0.0
    %2684 = vmatpush1.msra.mxu0 0.0
    %2685 = vmatprep.subr.mxu0 0.0
    %2686 = vmatpush1.msra.mxu0 0.0
    %2687 = vmatprep.subr.mxu0 0.0
    %2688 = vmatpush1.msra.mxu0 0.0
    %2689 = vmatprep.subr.mxu0 0.0
    %2690 = vmatpush1.msra.mxu0 0.0
    %2691 = vmatprep.subr.mxu0 0.0
    %2692 = vmatpush1.msra.mxu0 0.0
    %2693 = vmatprep.subr.mxu0 0.0
    %2694 = vmatpush1.msra.mxu0 0.0
    %2695 = vmatprep.subr.mxu0 0.0
    %2696 = vmatpush1.msra.mxu0 0.0
    %2697 = vmatprep.subr.mxu0 0.0
    %2698 = vmatpush1.msra.mxu0 0.0
    %2699 = vmatprep.subr.mxu0 0.0
    %2700 = vmatpush1.msra.mxu0 0.0
    %2701 = vmatprep.subr.mxu0 0.0
    %2702 = vmatpush1.msra.mxu0 0.0
    %2703 = vmatprep.subr.mxu0 0.0
    %2704 = vmatpush1.msra.mxu0 0.0
    %2705 = vmatprep.subr.mxu0 0.0
    %2706 = vmatpush1.msra.mxu0 0.0
    %2707 = vmatprep.subr.mxu0 0.0
    %2708 = vmatpush1.msra.mxu0 0.0
    %2709 = vmatprep.subr.mxu0 0.0
    %2710 = vmatpush1.msra.mxu0 0.0
    %2711 = vmatprep.subr.mxu0 0.0
    %2712 = vmatpush1.msra.mxu0 0.0
    %2713 = vmatprep.subr.mxu0 0.0
    %2714 = vmatpush1.msra.mxu0 0.0
    %2715 = vmatprep.subr.mxu0 0.0
    %2716 = vmatpush1.msra.mxu0 0.0
    %2717 = vmatprep.subr.mxu0 0.0
    %2718 = vmatpush1.msra.mxu0 0.0
    %2719 = vmatprep.subr.mxu0 0.0
    %2720 = vmatpush1.msra.mxu0 0.0
    %2721 = vmatprep.subr.mxu0 0.0
    %2722 = vmatpush1.msra.mxu0 0.0
    %2723 = vmatprep.subr.mxu0 0.0
    %2724 = vmatpush1.msra.mxu0 0.0
    %2725 = vmatprep.subr.mxu0 0.0
    %2726 = vmatpush1.msra.mxu0 0.0
    %2727 = vmatprep.subr.mxu0 0.0
    %2728 = vmatpush1.msra.mxu0 0.0
    %2729 = vmatprep.subr.mxu0 0.0
    %2730 = vmatpush1.msra.mxu0 0.0
    %2731 = vmatprep.subr.mxu0 0.0
    %2732 = vmatpush1.msra.mxu0 0.0
    %2733 = vmatprep.subr.mxu0 0.0
    %2734 = vmatpush1.msra.mxu0 0.0
    %2735 = vmatprep.mubr.f32.mxu0 0.0
    %2736 = vmatmul.mubr.f32.gmra.mrb[0].mxu0 %v2669
    %v2737 = vpop.f32.mrb[0].mxu0
    %v2738 = vadd.f32 0.0, %v2737
    %v2739 = vpop.f32.mrb[0].mxu0
    %2740 = vdwg.mxu0
    %v2741 = vadd.f32 %v2251, %v2738
    %v2742 = vxor.u32 %v2741, 2147483648
    %v2743 = vmul.f32 %v2742, 1.442695
    %v2744 = vpow.pop %v2743
    %v2745 = vadd.f32 %v2744, 1.0
    %v2746 = vrcp.pop %v2745
    %v2747 = vmul.f32 1.0, %v2746
    %v2748 = vtanh.pop %v2741
    %v2749 = vmul.f32 %v2747, %v2557
    %2751 = vrot.lane.b32.xlu0 %v2748, 32
    %v2752 = vpop.permute.xlu0 %2751
    %v2754 = vmul.f32 %v2747, %v2752
    %2756 = vrot.lane.b32.xlu0 %v2754, 32
    %v2757 = vpop.permute.xlu0 %2756
    %v2759 = vadd.f32 %v2749, %v2757
    %v2760 = vtanh.pop %v2759
    %2762 = vrot.lane.b32.xlu0 %v2760, 32
    %v2763 = vpop.permute.xlu0 %2762
    %v2765 = vmul.f32 %v2747, %v2763
    %2767 = vrot.lane.b32.xlu0 %v2663, 64
    %v2768 = vpop.permute.xlu0 %2767
    %v2769 = vsel %vm297, %v2768, 0
    %2771 = vmatprep.subr.mxu0 0.0
    %2772 = vmatpush1.msra.mxu0 %v2268
    %2773 = vmatprep.subr.mxu0 0.0
    %2774 = vmatpush1.msra.mxu0 %v2269
    %2775 = vmatprep.subr.mxu0 0.0
    %2776 = vmatpush1.msra.mxu0 %v2270
    %2777 = vmatprep.subr.mxu0 0.0
    %2778 = vmatpush1.msra.mxu0 %v2271
    %2779 = vmatprep.subr.mxu0 0.0
    %2780 = vmatpush1.msra.mxu0 0.0
    %2781 = vmatprep.subr.mxu0 0.0
    %2782 = vmatpush1.msra.mxu0 0.0
    %2783 = vmatprep.subr.mxu0 0.0
    %2784 = vmatpush1.msra.mxu0 0.0
    %2785 = vmatprep.subr.mxu0 0.0
    %2786 = vmatpush1.msra.mxu0 0.0
    %2787 = vmatprep.subr.mxu0 0.0
    %2788 = vmatpush1.msra.mxu0 0.0
    %2789 = vmatprep.subr.mxu0 0.0
    %2790 = vmatpush1.msra.mxu0 0.0
    %2791 = vmatprep.subr.mxu0 0.0
    %2792 = vmatpush1.msra.mxu0 0.0
    %2793 = vmatprep.subr.mxu0 0.0
    %2794 = vmatpush1.msra.mxu0 0.0
    %2795 = vmatprep.subr.mxu0 0.0
    %2796 = vmatpush1.msra.mxu0 0.0
    %2797 = vmatprep.subr.mxu0 0.0
    %2798 = vmatpush1.msra.mxu0 0.0
    %2799 = vmatprep.subr.mxu0 0.0
    %2800 = vmatpush1.msra.mxu0 0.0
    %2801 = vmatprep.subr.mxu0 0.0
    %2802 = vmatpush1.msra.mxu0 0.0
    %2803 = vmatprep.subr.mxu0 0.0
    %2804 = vmatpush1.msra.mxu0 0.0
    %2805 = vmatprep.subr.mxu0 0.0
    %2806 = vmatpush1.msra.mxu0 0.0
    %2807 = vmatprep.subr.mxu0 0.0
    %2808 = vmatpush1.msra.mxu0 0.0
    %2809 = vmatprep.subr.mxu0 0.0
    %2810 = vmatpush1.msra.mxu0 0.0
    %2811 = vmatprep.subr.mxu0 0.0
    %2812 = vmatpush1.msra.mxu0 0.0
    %2813 = vmatprep.subr.mxu0 0.0
    %2814 = vmatpush1.msra.mxu0 0.0
    %2815 = vmatprep.subr.mxu0 0.0
    %2816 = vmatpush1.msra.mxu0 0.0
    %2817 = vmatprep.subr.mxu0 0.0
    %2818 = vmatpush1.msra.mxu0 0.0
    %2819 = vmatprep.subr.mxu0 0.0
    %2820 = vmatpush1.msra.mxu0 0.0
    %2821 = vmatprep.subr.mxu0 0.0
    %2822 = vmatpush1.msra.mxu0 0.0
    %2823 = vmatprep.subr.mxu0 0.0
    %2824 = vmatpush1.msra.mxu0 0.0
    %2825 = vmatprep.subr.mxu0 0.0
    %2826 = vmatpush1.msra.mxu0 0.0
    %2827 = vmatprep.subr.mxu0 0.0
    %2828 = vmatpush1.msra.mxu0 0.0
    %2829 = vmatprep.subr.mxu0 0.0
    %2830 = vmatpush1.msra.mxu0 0.0
    %2831 = vmatprep.subr.mxu0 0.0
    %2832 = vmatpush1.msra.mxu0 0.0
    %2833 = vmatprep.subr.mxu0 0.0
    %2834 = vmatpush1.msra.mxu0 0.0
    %2835 = vmatprep.mubr.f32.mxu0 0.0
    %2836 = vmatmul.mubr.f32.gmra.mrb[0].mxu0 %v2769
    %v2837 = vpop.f32.mrb[0].mxu0
    %v2838 = vadd.f32 0.0, %v2837
    %v2839 = vpop.f32.mrb[0].mxu0
    %2840 = vdwg.mxu0
    %v2841 = vadd.f32 %v2258, %v2838
    %v2842 = vxor.u32 %v2841, 2147483648
    %v2843 = vmul.f32 %v2842, 1.442695
    %v2844 = vpow.pop %v2843
    %v2845 = vadd.f32 %v2844, 1.0
    %v2846 = vrcp.pop %v2845
    %v2847 = vmul.f32 1.0, %v2846
    %v2848 = vtanh.pop %v2841
    %v2849 = vmul.f32 %v2847, %v2657
    %2851 = vrot.lane.b32.xlu0 %v2848, 32
    %v2852 = vpop.permute.xlu0 %2851
    %v2854 = vmul.f32 %v2847, %v2852
    %2856 = vrot.lane.b32.xlu0 %v2854, 32
    %v2857 = vpop.permute.xlu0 %2856
    %v2859 = vadd.f32 %v2849, %v2857
    %v2860 = vtanh.pop %v2859
    %2862 = vrot.lane.b32.xlu0 %v2860, 32
    %v2863 = vpop.permute.xlu0 %2862
    %v2865 = vmul.f32 %v2847, %v2863
    %v2866 = vadd.f32 %v2664, %v2765
    %v2867 = vadd.f32 %v2665, %v2865
    %2869 = vrot.lane.b32.xlu0 %v2765, 64
    %v2870 = vpop.permute.xlu0 %2869
    %v2871 = vsel %vm297, %v2870, 0
    %2873 = vmatprep.subr.mxu0 0.0
    %2874 = vmatpush1.msra.mxu0 %v2263
    %2875 = vmatprep.subr.mxu0 0.0
    %2876 = vmatpush1.msra.mxu0 %v2264
    %2877 = vmatprep.subr.mxu0 0.0
    %2878 = vmatpush1.msra.mxu0 %v2265
    %2879 = vmatprep.subr.mxu0 0.0
    %2880 = vmatpush1.msra.mxu0 %v2266
    %2881 = vmatprep.subr.mxu0 0.0
    %2882 = vmatpush1.msra.mxu0 0.0
    %2883 = vmatprep.subr.mxu0 0.0
    %2884 = vmatpush1.msra.mxu0 0.0
    %2885 = vmatprep.subr.mxu0 0.0
    %2886 = vmatpush1.msra.mxu0 0.0
    %2887 = vmatprep.subr.mxu0 0.0
    %2888 = vmatpush1.msra.mxu0 0.0
    %2889 = vmatprep.subr.mxu0 0.0
    %2890 = vmatpush1.msra.mxu0 0.0
    %2891 = vmatprep.subr.mxu0 0.0
    %2892 = vmatpush1.msra.mxu0 0.0
    %2893 = vmatprep.subr.mxu0 0.0
    %2894 = vmatpush1.msra.mxu0 0.0
    %2895 = vmatprep.subr.mxu0 0.0
    %2896 = vmatpush1.msra.mxu0 0.0
    %2897 = vmatprep.subr.mxu0 0.0
    %2898 = vmatpush1.msra.mxu0 0.0
    %2899 = vmatprep.subr.mxu0 0.0
    %2900 = vmatpush1.msra.mxu0 0.0
    %2901 = vmatprep.subr.mxu0 0.0
    %2902 = vmatpush1.msra.mxu0 0.0
    %2903 = vmatprep.subr.mxu0 0.0
    %2904 = vmatpush1.msra.mxu0 0.0
    %2905 = vmatprep.subr.mxu0 0.0
    %2906 = vmatpush1.msra.mxu0 0.0
    %2907 = vmatprep.subr.mxu0 0.0
    %2908 = vmatpush1.msra.mxu0 0.0
    %2909 = vmatprep.subr.mxu0 0.0
    %2910 = vmatpush1.msra.mxu0 0.0
    %2911 = vmatprep.subr.mxu0 0.0
    %2912 = vmatpush1.msra.mxu0 0.0
    %2913 = vmatprep.subr.mxu0 0.0
    %2914 = vmatpush1.msra.mxu0 0.0
    %2915 = vmatprep.subr.mxu0 0.0
    %2916 = vmatpush1.msra.mxu0 0.0
    %2917 = vmatprep.subr.mxu0 0.0
    %2918 = vmatpush1.msra.mxu0 0.0
    %2919 = vmatprep.subr.mxu0 0.0
    %2920 = vmatpush1.msra.mxu0 0.0
    %2921 = vmatprep.subr.mxu0 0.0
    %2922 = vmatpush1.msra.mxu0 0.0
    %2923 = vmatprep.subr.mxu0 0.0
    %2924 = vmatpush1.msra.mxu0 0.0
    %2925 = vmatprep.subr.mxu0 0.0
    %2926 = vmatpush1.msra.mxu0 0.0
    %2927 = vmatprep.subr.mxu0 0.0
    %2928 = vmatpush1.msra.mxu0 0.0
    %2929 = vmatprep.subr.mxu0 0.0
    %2930 = vmatpush1.msra.mxu0 0.0
    %2931 = vmatprep.subr.mxu0 0.0
    %2932 = vmatpush1.msra.mxu0 0.0
    %2933 = vmatprep.subr.mxu0 0.0
    %2934 = vmatpush1.msra.mxu0 0.0
    %2935 = vmatprep.subr.mxu0 0.0
    %2936 = vmatpush1.msra.mxu0 0.0
    %2937 = vmatprep.mubr.f32.mxu0 0.0
    %2938 = vmatmul.mubr.f32.gmra.mrb[0].mxu0 %v2871
    %v2939 = vpop.f32.mrb[0].mxu0
    %v2940 = vadd.f32 0.0, %v2939
    %v2941 = vpop.f32.mrb[0].mxu0
    %2942 = vdwg.mxu0
    %v2943 = vadd.f32 %v2253, %v2940
    %v2944 = vxor.u32 %v2943, 2147483648
    %v2945 = vmul.f32 %v2944, 1.442695
    %v2946 = vpow.pop %v2945
    %v2947 = vadd.f32 %v2946, 1.0
    %v2948 = vrcp.pop %v2947
    %v2949 = vmul.f32 1.0, %v2948
    %v2950 = vtanh.pop %v2943
    %v2951 = vmul.f32 %v2949, %v2759
    %2953 = vrot.lane.b32.xlu0 %v2950, 32
    %v2954 = vpop.permute.xlu0 %2953
    %v2956 = vmul.f32 %v2949, %v2954
    %2958 = vrot.lane.b32.xlu0 %v2956, 32
    %v2959 = vpop.permute.xlu0 %2958
    %v2961 = vadd.f32 %v2951, %v2959
    %v2962 = vtanh.pop %v2961
    %2964 = vrot.lane.b32.xlu0 %v2962, 32
    %v2965 = vpop.permute.xlu0 %2964
    %v2967 = vmul.f32 %v2949, %v2965
    %2969 = vrot.lane.b32.xlu0 %v2865, 64
    %v2970 = vpop.permute.xlu0 %2969
    %v2971 = vsel %vm297, %v2970, 0
    %2973 = vmatprep.subr.mxu0 0.0
    %2974 = vmatpush1.msra.mxu0 %v2268
    %2975 = vmatprep.subr.mxu0 0.0
    %2976 = vmatpush1.msra.mxu0 %v2269
    %2977 = vmatprep.subr.mxu0 0.0
    %2978 = vmatpush1.msra.mxu0 %v2270
    %2979 = vmatprep.subr.mxu0 0.0
    %2980 = vmatpush1.msra.mxu0 %v2271
    %2981 = vmatprep.subr.mxu0 0.0
    %2982 = vmatpush1.msra.mxu0 0.0
    %2983 = vmatprep.subr.mxu0 0.0
    %2984 = vmatpush1.msra.mxu0 0.0
    %2985 = vmatprep.subr.mxu0 0.0
    %2986 = vmatpush1.msra.mxu0 0.0
    %2987 = vmatprep.subr.mxu0 0.0
    %2988 = vmatpush1.msra.mxu0 0.0
    %2989 = vmatprep.subr.mxu0 0.0
    %2990 = vmatpush1.msra.mxu0 0.0
    %2991 = vmatprep.subr.mxu0 0.0
    %2992 = vmatpush1.msra.mxu0 0.0
    %2993 = vmatprep.subr.mxu0 0.0
    %2994 = vmatpush1.msra.mxu0 0.0
    %2995 = vmatprep.subr.mxu0 0.0
    %2996 = vmatpush1.msra.mxu0 0.0
    %2997 = vmatprep.subr.mxu0 0.0
    %2998 = vmatpush1.msra.mxu0 0.0
    %2999 = vmatprep.subr.mxu0 0.0
    %3000 = vmatpush1.msra.mxu0 0.0
    %3001 = vmatprep.subr.mxu0 0.0
    %3002 = vmatpush1.msra.mxu0 0.0
    %3003 = vmatprep.subr.mxu0 0.0
    %3004 = vmatpush1.msra.mxu0 0.0
    %3005 = vmatprep.subr.mxu0 0.0
    %3006 = vmatpush1.msra.mxu0 0.0
    %3007 = vmatprep.subr.mxu0 0.0
    %3008 = vmatpush1.msra.mxu0 0.0
    %3009 = vmatprep.subr.mxu0 0.0
    %3010 = vmatpush1.msra.mxu0 0.0
    %3011 = vmatprep.subr.mxu0 0.0
    %3012 = vmatpush1.msra.mxu0 0.0
    %3013 = vmatprep.subr.mxu0 0.0
    %3014 = vmatpush1.msra.mxu0 0.0
    %3015 = vmatprep.subr.mxu0 0.0
    %3016 = vmatpush1.msra.mxu0 0.0
    %3017 = vmatprep.subr.mxu0 0.0
    %3018 = vmatpush1.msra.mxu0 0.0
    %3019 = vmatprep.subr.mxu0 0.0
    %3020 = vmatpush1.msra.mxu0 0.0
    %3021 = vmatprep.subr.mxu0 0.0
    %3022 = vmatpush1.msra.mxu0 0.0
    %3023 = vmatprep.subr.mxu0 0.0
    %3024 = vmatpush1.msra.mxu0 0.0
    %3025 = vmatprep.subr.mxu0 0.0
    %3026 = vmatpush1.msra.mxu0 0.0
    %3027 = vmatprep.subr.mxu0 0.0
    %3028 = vmatpush1.msra.mxu0 0.0
    %3029 = vmatprep.subr.mxu0 0.0
    %3030 = vmatpush1.msra.mxu0 0.0
    %3031 = vmatprep.subr.mxu0 0.0
    %3032 = vmatpush1.msra.mxu0 0.0
    %3033 = vmatprep.subr.mxu0 0.0
    %3034 = vmatpush1.msra.mxu0 0.0
    %3035 = vmatprep.subr.mxu0 0.0
    %3036 = vmatpush1.msra.mxu0 0.0
    %3037 = vmatprep.mubr.f32.mxu0 0.0
    %3038 = vmatmul.mubr.f32.gmra.mrb[0].mxu0 %v2971
    %v3039 = vpop.f32.mrb[0].mxu0
    %v3040 = vadd.f32 0.0, %v3039
    %v3041 = vpop.f32.mrb[0].mxu0
    %3042 = vdwg.mxu0
    %v3043 = vadd.f32 %v2256, %v3040
    %v3044 = vxor.u32 %v3043, 2147483648
    %v3045 = vmul.f32 %v3044, 1.442695
    %v3046 = vpow.pop %v3045
    %v3047 = vadd.f32 %v3046, 1.0
    %v3048 = vrcp.pop %v3047
    %v3049 = vmul.f32 1.0, %v3048
    %v3050 = vtanh.pop %v3043
    %v3051 = vmul.f32 %v3049, %v2859
    %3053 = vrot.lane.b32.xlu0 %v3050, 32
    %v3054 = vpop.permute.xlu0 %3053
    %v3056 = vmul.f32 %v3049, %v3054
    %3058 = vrot.lane.b32.xlu0 %v3056, 32
    %v3059 = vpop.permute.xlu0 %3058
    %v3061 = vadd.f32 %v3051, %v3059
    %v3062 = vtanh.pop %v3061
    %3064 = vrot.lane.b32.xlu0 %v3062, 32
    %v3065 = vpop.permute.xlu0 %3064
    %v3067 = vmul.f32 %v3049, %v3065
    %v3068 = vadd.f32 %v2866, %v2967
    %v3069 = vadd.f32 %v2867, %v3067
    %3071 = vrot.lane.b32.xlu0 %v2967, 64
    %v3072 = vpop.permute.xlu0 %3071
    %v3073 = vsel %vm297, %v3072, 0
    %3075 = vmatprep.subr.mxu0 0.0
    %3076 = vmatpush1.msra.mxu0 %v2263
    %3077 = vmatprep.subr.mxu0 0.0
    %3078 = vmatpush1.msra.mxu0 %v2264
    %3079 = vmatprep.subr.mxu0 0.0
    %3080 = vmatpush1.msra.mxu0 %v2265
    %3081 = vmatprep.subr.mxu0 0.0
    %3082 = vmatpush1.msra.mxu0 %v2266
    %3083 = vmatprep.subr.mxu0 0.0
    %3084 = vmatpush1.msra.mxu0 0.0
    %3085 = vmatprep.subr.mxu0 0.0
    %3086 = vmatpush1.msra.mxu0 0.0
    %3087 = vmatprep.subr.mxu0 0.0
    %3088 = vmatpush1.msra.mxu0 0.0
    %3089 = vmatprep.subr.mxu0 0.0
    %3090 = vmatpush1.msra.mxu0 0.0
    %3091 = vmatprep.subr.mxu0 0.0
    %3092 = vmatpush1.msra.mxu0 0.0
    %3093 = vmatprep.subr.mxu0 0.0
    %3094 = vmatpush1.msra.mxu0 0.0
    %3095 = vmatprep.subr.mxu0 0.0
    %3096 = vmatpush1.msra.mxu0 0.0
    %3097 = vmatprep.subr.mxu0 0.0
    %3098 = vmatpush1.msra.mxu0 0.0
    %3099 = vmatprep.subr.mxu0 0.0
    %3100 = vmatpush1.msra.mxu0 0.0
    %3101 = vmatprep.subr.mxu0 0.0
    %3102 = vmatpush1.msra.mxu0 0.0
    %3103 = vmatprep.subr.mxu0 0.0
    %3104 = vmatpush1.msra.mxu0 0.0
    %3105 = vmatprep.subr.mxu0 0.0
    %3106 = vmatpush1.msra.mxu0 0.0
    %3107 = vmatprep.subr.mxu0 0.0
    %3108 = vmatpush1.msra.mxu0 0.0
    %3109 = vmatprep.subr.mxu0 0.0
    %3110 = vmatpush1.msra.mxu0 0.0
    %3111 = vmatprep.subr.mxu0 0.0
    %3112 = vmatpush1.msra.mxu0 0.0
    %3113 = vmatprep.subr.mxu0 0.0
    %3114 = vmatpush1.msra.mxu0 0.0
    %3115 = vmatprep.subr.mxu0 0.0
    %3116 = vmatpush1.msra.mxu0 0.0
    %3117 = vmatprep.subr.mxu0 0.0
    %3118 = vmatpush1.msra.mxu0 0.0
    %3119 = vmatprep.subr.mxu0 0.0
    %3120 = vmatpush1.msra.mxu0 0.0
    %3121 = vmatprep.subr.mxu0 0.0
    %3122 = vmatpush1.msra.mxu0 0.0
    %3123 = vmatprep.subr.mxu0 0.0
    %3124 = vmatpush1.msra.mxu0 0.0
    %3125 = vmatprep.subr.mxu0 0.0
    %3126 = vmatpush1.msra.mxu0 0.0
    %3127 = vmatprep.subr.mxu0 0.0
    %3128 = vmatpush1.msra.mxu0 0.0
    %3129 = vmatprep.subr.mxu0 0.0
    %3130 = vmatpush1.msra.mxu0 0.0
    %3131 = vmatprep.subr.mxu0 0.0
    %3132 = vmatpush1.msra.mxu0 0.0
    %3133 = vmatprep.subr.mxu0 0.0
    %3134 = vmatpush1.msra.mxu0 0.0
    %3135 = vmatprep.subr.mxu0 0.0
    %3136 = vmatpush1.msra.mxu0 0.0
    %3137 = vmatprep.subr.mxu0 0.0
    %3138 = vmatpush1.msra.mxu0 0.0
    %3139 = vmatprep.mubr.f32.mxu0 0.0
    %3140 = vmatmul.mubr.f32.gmra.mrb[0].mxu0 %v3073
    %v3141 = vpop.f32.mrb[0].mxu0
    %v3142 = vadd.f32 0.0, %v3141
    %v3143 = vpop.f32.mrb[0].mxu0
    %3144 = vdwg.mxu0
    %v3145 = vadd.f32 %v2255, %v3142
    %v3146 = vxor.u32 %v3145, 2147483648
    %v3147 = vmul.f32 %v3146, 1.442695
    %v3148 = vpow.pop %v3147
    %v3149 = vadd.f32 %v3148, 1.0
    %v3150 = vrcp.pop %v3149
    %v3151 = vmul.f32 1.0, %v3150
    %v3152 = vtanh.pop %v3145
    %v3153 = vmul.f32 %v3151, %v2961
    %3155 = vrot.lane.b32.xlu0 %v3152, 32
    %v3156 = vpop.permute.xlu0 %3155
    %v3158 = vmul.f32 %v3151, %v3156
    %3160 = vrot.lane.b32.xlu0 %v3158, 32
    %v3161 = vpop.permute.xlu0 %3160
    %v3163 = vadd.f32 %v3153, %v3161
    %v3164 = vtanh.pop %v3163
    %3166 = vrot.lane.b32.xlu0 %v3164, 32
    %v3167 = vpop.permute.xlu0 %3166
    %v3169 = vmul.f32 %v3151, %v3167
    %3171 = vrot.lane.b32.xlu0 %v3067, 64
    %v3172 = vpop.permute.xlu0 %3171
    %v3173 = vsel %vm297, %v3172, 0
    %3175 = vmatprep.subr.mxu0 0.0
    %3176 = vmatpush1.msra.mxu0 %v2268
    %3177 = vmatprep.subr.mxu0 0.0
    %3178 = vmatpush1.msra.mxu0 %v2269
    %3179 = vmatprep.subr.mxu0 0.0
    %3180 = vmatpush1.msra.mxu0 %v2270
    %3181 = vmatprep.subr.mxu0 0.0
    %3182 = vmatpush1.msra.mxu0 %v2271
    %3183 = vmatprep.subr.mxu0 0.0
    %3184 = vmatpush1.msra.mxu0 0.0
    %3185 = vmatprep.subr.mxu0 0.0
    %3186 = vmatpush1.msra.mxu0 0.0
    %3187 = vmatprep.subr.mxu0 0.0
    %3188 = vmatpush1.msra.mxu0 0.0
    %3189 = vmatprep.subr.mxu0 0.0
    %3190 = vmatpush1.msra.mxu0 0.0
    %3191 = vmatprep.subr.mxu0 0.0
    %3192 = vmatpush1.msra.mxu0 0.0
    %3193 = vmatprep.subr.mxu0 0.0
    %3194 = vmatpush1.msra.mxu0 0.0
    %3195 = vmatprep.subr.mxu0 0.0
    %3196 = vmatpush1.msra.mxu0 0.0
    %3197 = vmatprep.subr.mxu0 0.0
    %3198 = vmatpush1.msra.mxu0 0.0
    %3199 = vmatprep.subr.mxu0 0.0
    %3200 = vmatpush1.msra.mxu0 0.0
    %3201 = vmatprep.subr.mxu0 0.0
    %3202 = vmatpush1.msra.mxu0 0.0
    %3203 = vmatprep.subr.mxu0 0.0
    %3204 = vmatpush1.msra.mxu0 0.0
    %3205 = vmatprep.subr.mxu0 0.0
    %3206 = vmatpush1.msra.mxu0 0.0
    %3207 = vmatprep.subr.mxu0 0.0
    %3208 = vmatpush1.msra.mxu0 0.0
    %3209 = vmatprep.subr.mxu0 0.0
    %3210 = vmatpush1.msra.mxu0 0.0
    %3211 = vmatprep.subr.mxu0 0.0
    %3212 = vmatpush1.msra.mxu0 0.0
    %3213 = vmatprep.subr.mxu0 0.0
    %3214 = vmatpush1.msra.mxu0 0.0
    %3215 = vmatprep.subr.mxu0 0.0
    %3216 = vmatpush1.msra.mxu0 0.0
    %3217 = vmatprep.subr.mxu0 0.0
    %3218 = vmatpush1.msra.mxu0 0.0
    %3219 = vmatprep.subr.mxu0 0.0
    %3220 = vmatpush1.msra.mxu0 0.0
    %3221 = vmatprep.subr.mxu0 0.0
    %3222 = vmatpush1.msra.mxu0 0.0
    %3223 = vmatprep.subr.mxu0 0.0
    %3224 = vmatpush1.msra.mxu0 0.0
    %3225 = vmatprep.subr.mxu0 0.0
    %3226 = vmatpush1.msra.mxu0 0.0
    %3227 = vmatprep.subr.mxu0 0.0
    %3228 = vmatpush1.msra.mxu0 0.0
    %3229 = vmatprep.subr.mxu0 0.0
    %3230 = vmatpush1.msra.mxu0 0.0
    %3231 = vmatprep.subr.mxu0 0.0
    %3232 = vmatpush1.msra.mxu0 0.0
    %3233 = vmatprep.subr.mxu0 0.0
    %3234 = vmatpush1.msra.mxu0 0.0
    %3235 = vmatprep.subr.mxu0 0.0
    %3236 = vmatpush1.msra.mxu0 0.0
    %3237 = vmatprep.subr.mxu0 0.0
    %3238 = vmatpush1.msra.mxu0 0.0
    %3239 = vmatprep.mubr.f32.mxu0 0.0
    %3240 = vmatmul.mubr.f32.gmra.mrb[0].mxu0 %v3173
    %v3241 = vpop.f32.mrb[0].mxu0
    %v3242 = vadd.f32 0.0, %v3241
    %v3243 = vpop.f32.mrb[0].mxu0
    %3244 = vdwg.mxu0
    %v3245 = vadd.f32 %v2254, %v3242
    %v3246 = vxor.u32 %v3245, 2147483648
    %v3247 = vmul.f32 %v3246, 1.442695
    %v3248 = vpow.pop %v3247
    %v3249 = vadd.f32 %v3248, 1.0
    %v3250 = vrcp.pop %v3249
    %v3251 = vmul.f32 1.0, %v3250
    %v3252 = vtanh.pop %v3245
    %v3253 = vmul.f32 %v3251, %v3061
    %3255 = vrot.lane.b32.xlu0 %v3252, 32
    %v3256 = vpop.permute.xlu0 %3255
    %v3258 = vmul.f32 %v3251, %v3256
    %3260 = vrot.lane.b32.xlu0 %v3258, 32
    %v3261 = vpop.permute.xlu0 %3260
    %v3263 = vadd.f32 %v3253, %v3261
    %v3264 = vtanh.pop %v3263
    %3266 = vrot.lane.b32.xlu0 %v3264, 32
    %v3267 = vpop.permute.xlu0 %3266
    %v3269 = vmul.f32 %v3251, %v3267
    %v3270 = vadd.f32 %v3068, %v3169
    %v3271 = vadd.f32 %v3069, %v3269
    %3273 = vrot.lane.b32.xlu0 %v3169, 64
    %v3274 = vpop.permute.xlu0 %3273
    %v3275 = vsel %vm297, %v3274, 0
    %3277 = vmatprep.subr.mxu0 0.0
    %3278 = vmatpush1.msra.mxu0 %v2263
    %3279 = vmatprep.subr.mxu0 0.0
    %3280 = vmatpush1.msra.mxu0 %v2264
    %3281 = vmatprep.subr.mxu0 0.0
    %3282 = vmatpush1.msra.mxu0 %v2265
    %3283 = vmatprep.subr.mxu0 0.0
    %3284 = vmatpush1.msra.mxu0 %v2266
    %3285 = vmatprep.subr.mxu0 0.0
    %3286 = vmatpush1.msra.mxu0 0.0
    %3287 = vmatprep.subr.mxu0 0.0
    %3288 = vmatpush1.msra.mxu0 0.0
    %3289 = vmatprep.subr.mxu0 0.0
    %3290 = vmatpush1.msra.mxu0 0.0
    %3291 = vmatprep.subr.mxu0 0.0
    %3292 = vmatpush1.msra.mxu0 0.0
    %3293 = vmatprep.subr.mxu0 0.0
    %3294 = vmatpush1.msra.mxu0 0.0
    %3295 = vmatprep.subr.mxu0 0.0
    %3296 = vmatpush1.msra.mxu0 0.0
    %3297 = vmatprep.subr.mxu0 0.0
    %3298 = vmatpush1.msra.mxu0 0.0
    %3299 = vmatprep.subr.mxu0 0.0
    %3300 = vmatpush1.msra.mxu0 0.0
    %3301 = vmatprep.subr.mxu0 0.0
    %3302 = vmatpush1.msra.mxu0 0.0
    %3303 = vmatprep.subr.mxu0 0.0
    %3304 = vmatpush1.msra.mxu0 0.0
    %3305 = vmatprep.subr.mxu0 0.0
    %3306 = vmatpush1.msra.mxu0 0.0
    %3307 = vmatprep.subr.mxu0 0.0
    %3308 = vmatpush1.msra.mxu0 0.0
    %3309 = vmatprep.subr.mxu0 0.0
    %3310 = vmatpush1.msra.mxu0 0.0
    %3311 = vmatprep.subr.mxu0 0.0
    %3312 = vmatpush1.msra.mxu0 0.0
    %3313 = vmatprep.subr.mxu0 0.0
    %3314 = vmatpush1.msra.mxu0 0.0
    %3315 = vmatprep.subr.mxu0 0.0
    %3316 = vmatpush1.msra.mxu0 0.0
    %3317 = vmatprep.subr.mxu0 0.0
    %3318 = vmatpush1.msra.mxu0 0.0
    %3319 = vmatprep.subr.mxu0 0.0
    %3320 = vmatpush1.msra.mxu0 0.0
    %3321 = vmatprep.subr.mxu0 0.0
    %3322 = vmatpush1.msra.mxu0 0.0
    %3323 = vmatprep.subr.mxu0 0.0
    %3324 = vmatpush1.msra.mxu0 0.0
    %3325 = vmatprep.subr.mxu0 0.0
    %3326 = vmatpush1.msra.mxu0 0.0
    %3327 = vmatprep.subr.mxu0 0.0
    %3328 = vmatpush1.msra.mxu0 0.0
    %3329 = vmatprep.subr.mxu0 0.0
    %3330 = vmatpush1.msra.mxu0 0.0
    %3331 = vmatprep.subr.mxu0 0.0
    %3332 = vmatpush1.msra.mxu0 0.0
    %3333 = vmatprep.subr.mxu0 0.0
    %3334 = vmatpush1.msra.mxu0 0.0
    %3335 = vmatprep.subr.mxu0 0.0
    %3336 = vmatpush1.msra.mxu0 0.0
    %3337 = vmatprep.subr.mxu0 0.0
    %3338 = vmatpush1.msra.mxu0 0.0
    %3339 = vmatprep.subr.mxu0 0.0
    %3340 = vmatpush1.msra.mxu0 0.0
    %3341 = vmatprep.mubr.f32.mxu0 0.0
    %3342 = vmatmul.mubr.f32.gmra.mrb[0].mxu0 %v3275
    %v3343 = vpop.f32.mrb[0].mxu0
    %v3344 = vadd.f32 0.0, %v3343
    %v3345 = vpop.f32.mrb[0].mxu0
    %3346 = vdwg.mxu0
    %v3347 = vadd.f32 %v2257, %v3344
    %v3348 = vxor.u32 %v3347, 2147483648
    %v3349 = vmul.f32 %v3348, 1.442695
    %v3350 = vpow.pop %v3349
    %v3351 = vadd.f32 %v3350, 1.0
    %v3352 = vrcp.pop %v3351
    %v3353 = vmul.f32 1.0, %v3352
    %v3354 = vtanh.pop %v3347
    %v3355 = vmul.f32 %v3353, %v3163
    %3357 = vrot.lane.b32.xlu0 %v3354, 32
    %v3358 = vpop.permute.xlu0 %3357
    %v3360 = vmul.f32 %v3353, %v3358
    %3362 = vrot.lane.b32.xlu0 %v3360, 32
    %v3363 = vpop.permute.xlu0 %3362
    %v3365 = vadd.f32 %v3355, %v3363
    %v3366 = vtanh.pop %v3365
    %3368 = vrot.lane.b32.xlu0 %v3366, 32
    %v3369 = vpop.permute.xlu0 %3368
    %v3371 = vmul.f32 %v3353, %v3369
    %3373 = vrot.lane.b32.xlu0 %v3269, 64
    %v3374 = vpop.permute.xlu0 %3373
    %v3375 = vsel %vm297, %v3374, 0
    %3377 = vmatprep.subr.mxu0 0.0
    %3378 = vmatpush1.msra.mxu0 %v2268
    %3379 = vmatprep.subr.mxu0 0.0
    %3380 = vmatpush1.msra.mxu0 %v2269
    %3381 = vmatprep.subr.mxu0 0.0
    %3382 = vmatpush1.msra.mxu0 %v2270
    %3383 = vmatprep.subr.mxu0 0.0
    %3384 = vmatpush1.msra.mxu0 %v2271
    %3385 = vmatprep.subr.mxu0 0.0
    %3386 = vmatpush1.msra.mxu0 0.0
    %3387 = vmatprep.subr.mxu0 0.0
    %3388 = vmatpush1.msra.mxu0 0.0
    %3389 = vmatprep.subr.mxu0 0.0
    %3390 = vmatpush1.msra.mxu0 0.0
    %3391 = vmatprep.subr.mxu0 0.0
    %3392 = vmatpush1.msra.mxu0 0.0
    %3393 = vmatprep.subr.mxu0 0.0
    %3394 = vmatpush1.msra.mxu0 0.0
    %3395 = vmatprep.subr.mxu0 0.0
    %3396 = vmatpush1.msra.mxu0 0.0
    %3397 = vmatprep.subr.mxu0 0.0
    %3398 = vmatpush1.msra.mxu0 0.0
    %3399 = vmatprep.subr.mxu0 0.0
    %3400 = vmatpush1.msra.mxu0 0.0
    %3401 = vmatprep.subr.mxu0 0.0
    %3402 = vmatpush1.msra.mxu0 0.0
    %3403 = vmatprep.subr.mxu0 0.0
    %3404 = vmatpush1.msra.mxu0 0.0
    %3405 = vmatprep.subr.mxu0 0.0
    %3406 = vmatpush1.msra.mxu0 0.0
    %3407 = vmatprep.subr.mxu0 0.0
    %3408 = vmatpush1.msra.mxu0 0.0
    %3409 = vmatprep.subr.mxu0 0.0
    %3410 = vmatpush1.msra.mxu0 0.0
    %3411 = vmatprep.subr.mxu0 0.0
    %3412 = vmatpush1.msra.mxu0 0.0
    %3413 = vmatprep.subr.mxu0 0.0
    %3414 = vmatpush1.msra.mxu0 0.0
    %3415 = vmatprep.subr.mxu0 0.0
    %3416 = vmatpush1.msra.mxu0 0.0
    %3417 = vmatprep.subr.mxu0 0.0
    %3418 = vmatpush1.msra.mxu0 0.0
    %3419 = vmatprep.subr.mxu0 0.0
    %3420 = vmatpush1.msra.mxu0 0.0
    %3421 = vmatprep.subr.mxu0 0.0
    %3422 = vmatpush1.msra.mxu0 0.0
    %3423 = vmatprep.subr.mxu0 0.0
    %3424 = vmatpush1.msra.mxu0 0.0
    %3425 = vmatprep.subr.mxu0 0.0
    %3426 = vmatpush1.msra.mxu0 0.0
    %3427 = vmatprep.subr.mxu0 0.0
    %3428 = vmatpush1.msra.mxu0 0.0
    %3429 = vmatprep.subr.mxu0 0.0
    %3430 = vmatpush1.msra.mxu0 0.0
    %3431 = vmatprep.subr.mxu0 0.0
    %3432 = vmatpush1.msra.mxu0 0.0
    %3433 = vmatprep.subr.mxu0 0.0
    %3434 = vmatpush1.msra.mxu0 0.0
    %3435 = vmatprep.subr.mxu0 0.0
    %3436 = vmatpush1.msra.mxu0 0.0
    %3437 = vmatprep.subr.mxu0 0.0
    %3438 = vmatpush1.msra.mxu0 0.0
    %3439 = vmatprep.subr.mxu0 0.0
    %3440 = vmatpush1.msra.mxu0 0.0
    %3441 = vmatprep.mubr.f32.mxu0 0.0
    %3442 = vmatmul.mubr.f32.gmra.mrb[0].mxu0 %v3375
    %v3443 = vpop.f32.mrb[0].mxu0
    %v3444 = vadd.f32 0.0, %v3443
    %v3445 = vpop.f32.mrb[0].mxu0
    %3446 = vdwg.mxu0
    %v3447 = vadd.f32 %v2252, %v3444
    %v3448 = vxor.u32 %v3447, 2147483648
    %v3449 = vmul.f32 %v3448, 1.442695
    %v3450 = vpow.pop %v3449
    %v3451 = vadd.f32 %v3450, 1.0
    %v3452 = vrcp.pop %v3451
    %v3453 = vmul.f32 1.0, %v3452
    %v3454 = vtanh.pop %v3447
    %v3455 = vmul.f32 %v3453, %v3263
    %3457 = vrot.lane.b32.xlu0 %v3454, 32
    %v3458 = vpop.permute.xlu0 %3457
    %v3460 = vmul.f32 %v3453, %v3458
    %3462 = vrot.lane.b32.xlu0 %v3460, 32
    %v3463 = vpop.permute.xlu0 %3462
    %v3465 = vadd.f32 %v3455, %v3463
    %v3466 = vtanh.pop %v3465
    %3468 = vrot.lane.b32.xlu0 %v3466, 32
    %v3469 = vpop.permute.xlu0 %3468
    %v3471 = vmul.f32 %v3453, %v3469
    %v3472 = vadd.f32 %v3270, %v3371
    %v3473 = vadd.f32 %v3271, %v3471
    %3475 = vrot.lane.b32.xlu0 %v3371, 64
    %v3476 = vpop.permute.xlu0 %3475
    %v3477 = vsel %vm297, %v3476, 0
    %3479 = vmatprep.subr.mxu0 0.0
    %3480 = vmatpush1.msra.mxu0 %v2263
    %3481 = vmatprep.subr.mxu0 0.0
    %3482 = vmatpush1.msra.mxu0 %v2264
    %3483 = vmatprep.subr.mxu0 0.0
    %3484 = vmatpush1.msra.mxu0 %v2265
    %3485 = vmatprep.subr.mxu0 0.0
    %3486 = vmatpush1.msra.mxu0 %v2266
    %3487 = vmatprep.subr.mxu0 0.0
    %3488 = vmatpush1.msra.mxu0 0.0
    %3489 = vmatprep.subr.mxu0 0.0
    %3490 = vmatpush1.msra.mxu0 0.0
    %3491 = vmatprep.subr.mxu0 0.0
    %3492 = vmatpush1.msra.mxu0 0.0
    %3493 = vmatprep.subr.mxu0 0.0
    %3494 = vmatpush1.msra.mxu0 0.0
    %3495 = vmatprep.subr.mxu0 0.0
    %3496 = vmatpush1.msra.mxu0 0.0
    %3497 = vmatprep.subr.mxu0 0.0
    %3498 = vmatpush1.msra.mxu0 0.0
    %3499 = vmatprep.subr.mxu0 0.0
    %3500 = vmatpush1.msra.mxu0 0.0
    %3501 = vmatprep.subr.mxu0 0.0
    %3502 = vmatpush1.msra.mxu0 0.0
    %3503 = vmatprep.subr.mxu0 0.0
    %3504 = vmatpush1.msra.mxu0 0.0
    %3505 = vmatprep.subr.mxu0 0.0
    %3506 = vmatpush1.msra.mxu0 0.0
    %3507 = vmatprep.subr.mxu0 0.0
    %3508 = vmatpush1.msra.mxu0 0.0
    %3509 = vmatprep.subr.mxu0 0.0
    %3510 = vmatpush1.msra.mxu0 0.0
    %3511 = vmatprep.subr.mxu0 0.0
    %3512 = vmatpush1.msra.mxu0 0.0
    %3513 = vmatprep.subr.mxu0 0.0
    %3514 = vmatpush1.msra.mxu0 0.0
    %3515 = vmatprep.subr.mxu0 0.0
    %3516 = vmatpush1.msra.mxu0 0.0
    %3517 = vmatprep.subr.mxu0 0.0
    %3518 = vmatpush1.msra.mxu0 0.0
    %3519 = vmatprep.subr.mxu0 0.0
    %3520 = vmatpush1.msra.mxu0 0.0
    %3521 = vmatprep.subr.mxu0 0.0
    %3522 = vmatpush1.msra.mxu0 0.0
    %3523 = vmatprep.subr.mxu0 0.0
    %3524 = vmatpush1.msra.mxu0 0.0
    %3525 = vmatprep.subr.mxu0 0.0
    %3526 = vmatpush1.msra.mxu0 0.0
    %3527 = vmatprep.subr.mxu0 0.0
    %3528 = vmatpush1.msra.mxu0 0.0
    %3529 = vmatprep.subr.mxu0 0.0
    %3530 = vmatpush1.msra.mxu0 0.0
    %3531 = vmatprep.subr.mxu0 0.0
    %3532 = vmatpush1.msra.mxu0 0.0
    %3533 = vmatprep.subr.mxu0 0.0
    %3534 = vmatpush1.msra.mxu0 0.0
    %3535 = vmatprep.subr.mxu0 0.0
    %3536 = vmatpush1.msra.mxu0 0.0
    %3537 = vmatprep.subr.mxu0 0.0
    %3538 = vmatpush1.msra.mxu0 0.0
    %3539 = vmatprep.subr.mxu0 0.0
    %3540 = vmatpush1.msra.mxu0 0.0
    %3541 = vmatprep.subr.mxu0 0.0
    %3542 = vmatpush1.msra.mxu0 0.0
    %3543 = vmatprep.mubr.f32.mxu0 0.0
    %3544 = vmatmul.mubr.f32.gmra.mrb[0].mxu0 %v3477
    %v3545 = vpop.f32.mrb[0].mxu0
    %v3546 = vadd.f32 0.0, %v3545
    %v3547 = vpop.f32.mrb[0].mxu0
    %3548 = vdwg.mxu0
    %v3549 = vadd.f32 %v2259, %v3546
    %v3550 = vxor.u32 %v3549, 2147483648
    %v3551 = vmul.f32 %v3550, 1.442695
    %v3552 = vpow.pop %v3551
    %v3553 = vadd.f32 %v3552, 1.0
    %v3554 = vrcp.pop %v3553
    %v3555 = vmul.f32 1.0, %v3554
    %v3556 = vtanh.pop %v3549
    %v3557 = vmul.f32 %v3555, %v3365
    %3559 = vrot.lane.b32.xlu0 %v3556, 32
    %v3560 = vpop.permute.xlu0 %3559
    %v3562 = vmul.f32 %v3555, %v3560
    %3564 = vrot.lane.b32.xlu0 %v3562, 32
    %v3565 = vpop.permute.xlu0 %3564
    %v3567 = vadd.f32 %v3557, %v3565
    %v3568 = vtanh.pop %v3567
    %3570 = vrot.lane.b32.xlu0 %v3568, 32
    %v3571 = vpop.permute.xlu0 %3570
    %v3573 = vmul.f32 %v3555, %v3571
    %3575 = vrot.lane.b32.xlu0 %v3471, 64
    %v3576 = vpop.permute.xlu0 %3575
    %v3577 = vsel %vm297, %v3576, 0
    %3579 = vmatprep.subr.mxu0 0.0
    %3580 = vmatpush1.msra.mxu0 %v2268
    %3581 = vmatprep.subr.mxu0 0.0
    %3582 = vmatpush1.msra.mxu0 %v2269
    %3583 = vmatprep.subr.mxu0 0.0
    %3584 = vmatpush1.msra.mxu0 %v2270
    %3585 = vmatprep.subr.mxu0 0.0
    %3586 = vmatpush1.msra.mxu0 %v2271
    %3587 = vmatprep.subr.mxu0 0.0
    %3588 = vmatpush1.msra.mxu0 0.0
    %3589 = vmatprep.subr.mxu0 0.0
    %3590 = vmatpush1.msra.mxu0 0.0
    %3591 = vmatprep.subr.mxu0 0.0
    %3592 = vmatpush1.msra.mxu0 0.0
    %3593 = vmatprep.subr.mxu0 0.0
    %3594 = vmatpush1.msra.mxu0 0.0
    %3595 = vmatprep.subr.mxu0 0.0
    %3596 = vmatpush1.msra.mxu0 0.0
    %3597 = vmatprep.subr.mxu0 0.0
    %3598 = vmatpush1.msra.mxu0 0.0
    %3599 = vmatprep.subr.mxu0 0.0
    %3600 = vmatpush1.msra.mxu0 0.0
    %3601 = vmatprep.subr.mxu0 0.0
    %3602 = vmatpush1.msra.mxu0 0.0
    %3603 = vmatprep.subr.mxu0 0.0
    %3604 = vmatpush1.msra.mxu0 0.0
    %3605 = vmatprep.subr.mxu0 0.0
    %3606 = vmatpush1.msra.mxu0 0.0
    %3607 = vmatprep.subr.mxu0 0.0
    %3608 = vmatpush1.msra.mxu0 0.0
    %3609 = vmatprep.subr.mxu0 0.0
    %3610 = vmatpush1.msra.mxu0 0.0
    %3611 = vmatprep.subr.mxu0 0.0
    %3612 = vmatpush1.msra.mxu0 0.0
    %3613 = vmatprep.subr.mxu0 0.0
    %3614 = vmatpush1.msra.mxu0 0.0
    %3615 = vmatprep.subr.mxu0 0.0
    %3616 = vmatpush1.msra.mxu0 0.0
    %3617 = vmatprep.subr.mxu0 0.0
    %3618 = vmatpush1.msra.mxu0 0.0
    %3619 = vmatprep.subr.mxu0 0.0
    %3620 = vmatpush1.msra.mxu0 0.0
    %3621 = vmatprep.subr.mxu0 0.0
    %3622 = vmatpush1.msra.mxu0 0.0
    %3623 = vmatprep.subr.mxu0 0.0
    %3624 = vmatpush1.msra.mxu0 0.0
    %3625 = vmatprep.subr.mxu0 0.0
    %3626 = vmatpush1.msra.mxu0 0.0
    %3627 = vmatprep.subr.mxu0 0.0
    %3628 = vmatpush1.msra.mxu0 0.0
    %3629 = vmatprep.subr.mxu0 0.0
    %3630 = vmatpush1.msra.mxu0 0.0
    %3631 = vmatprep.subr.mxu0 0.0
    %3632 = vmatpush1.msra.mxu0 0.0
    %3633 = vmatprep.subr.mxu0 0.0
    %3634 = vmatpush1.msra.mxu0 0.0
    %3635 = vmatprep.subr.mxu0 0.0
    %3636 = vmatpush1.msra.mxu0 0.0
    %3637 = vmatprep.subr.mxu0 0.0
    %3638 = vmatpush1.msra.mxu0 0.0
    %3639 = vmatprep.subr.mxu0 0.0
    %3640 = vmatpush1.msra.mxu0 0.0
    %3641 = vmatprep.subr.mxu0 0.0
    %3642 = vmatpush1.msra.mxu0 0.0
    %3643 = vmatprep.mubr.f32.mxu0 0.0
    %3644 = vmatmul.mubr.f32.gmra.mrb[0].mxu0 %v3577
    %v3645 = vpop.f32.mrb[0].mxu0
    %v3646 = vadd.f32 0.0, %v3645
    %v3647 = vpop.f32.mrb[0].mxu0
    %3648 = vdwg.mxu0
    %v3649 = vadd.f32 %v2250, %v3646
    %v3650 = vxor.u32 %v3649, 2147483648
    %v3651 = vmul.f32 %v3650, 1.442695
    %v3652 = vpow.pop %v3651
    %v3653 = vadd.f32 %v3652, 1.0
    %v3654 = vrcp.pop %v3653
    %v3655 = vmul.f32 1.0, %v3654
    %v3656 = vtanh.pop %v3649
    %v3657 = vmul.f32 %v3655, %v3465
    %3659 = vrot.lane.b32.xlu0 %v3656, 32
    %v3660 = vpop.permute.xlu0 %3659
    %v3662 = vmul.f32 %v3655, %v3660
    %3664 = vrot.lane.b32.xlu0 %v3662, 32
    %v3665 = vpop.permute.xlu0 %3664
    %v3667 = vadd.f32 %v3657, %v3665
    %v3668 = vtanh.pop %v3667
    %3670 = vrot.lane.b32.xlu0 %v3668, 32
    %v3671 = vpop.permute.xlu0 %3670
    %v3673 = vmul.f32 %v3655, %v3671
    %v3674 = vadd.f32 %v3472, %v3573
    %v3675 = vadd.f32 %v3473, %v3673
    %3677 = vrot.lane.b32.xlu0 %v3573, 64
    %v3678 = vpop.permute.xlu0 %3677
    %v3679 = vsel %vm297, %v3678, 0
    %3681 = vmatprep.subr.mxu0 0.0
    %3682 = vmatpush1.msra.mxu0 %v2263
    %3683 = vmatprep.subr.mxu0 0.0
    %3684 = vmatpush1.msra.mxu0 %v2264
    %3685 = vmatprep.subr.mxu0 0.0
    %3686 = vmatpush1.msra.mxu0 %v2265
    %3687 = vmatprep.subr.mxu0 0.0
    %3688 = vmatpush1.msra.mxu0 %v2266
    %3689 = vmatprep.subr.mxu0 0.0
    %3690 = vmatpush1.msra.mxu0 0.0
    %3691 = vmatprep.subr.mxu0 0.0
    %3692 = vmatpush1.msra.mxu0 0.0
    %3693 = vmatprep.subr.mxu0 0.0
    %3694 = vmatpush1.msra.mxu0 0.0
    %3695 = vmatprep.subr.mxu0 0.0
    %3696 = vmatpush1.msra.mxu0 0.0
    %3697 = vmatprep.subr.mxu0 0.0
    %3698 = vmatpush1.msra.mxu0 0.0
    %3699 = vmatprep.subr.mxu0 0.0
    %3700 = vmatpush1.msra.mxu0 0.0
    %3701 = vmatprep.subr.mxu0 0.0
    %3702 = vmatpush1.msra.mxu0 0.0
    %3703 = vmatprep.subr.mxu0 0.0
    %3704 = vmatpush1.msra.mxu0 0.0
    %3705 = vmatprep.subr.mxu0 0.0
    %3706 = vmatpush1.msra.mxu0 0.0
    %3707 = vmatprep.subr.mxu0 0.0
    %3708 = vmatpush1.msra.mxu0 0.0
    %3709 = vmatprep.subr.mxu0 0.0
    %3710 = vmatpush1.msra.mxu0 0.0
    %3711 = vmatprep.subr.mxu0 0.0
    %3712 = vmatpush1.msra.mxu0 0.0
    %3713 = vmatprep.subr.mxu0 0.0
    %3714 = vmatpush1.msra.mxu0 0.0
    %3715 = vmatprep.subr.mxu0 0.0
    %3716 = vmatpush1.msra.mxu0 0.0
    %3717 = vmatprep.subr.mxu0 0.0
    %3718 = vmatpush1.msra.mxu0 0.0
    %3719 = vmatprep.subr.mxu0 0.0
    %3720 = vmatpush1.msra.mxu0 0.0
    %3721 = vmatprep.subr.mxu0 0.0
    %3722 = vmatpush1.msra.mxu0 0.0
    %3723 = vmatprep.subr.mxu0 0.0
    %3724 = vmatpush1.msra.mxu0 0.0
    %3725 = vmatprep.subr.mxu0 0.0
    %3726 = vmatpush1.msra.mxu0 0.0
    %3727 = vmatprep.subr.mxu0 0.0
    %3728 = vmatpush1.msra.mxu0 0.0
    %3729 = vmatprep.subr.mxu0 0.0
    %3730 = vmatpush1.msra.mxu0 0.0
    %3731 = vmatprep.subr.mxu0 0.0
    %3732 = vmatpush1.msra.mxu0 0.0
    %3733 = vmatprep.subr.mxu0 0.0
    %3734 = vmatpush1.msra.mxu0 0.0
    %3735 = vmatprep.subr.mxu0 0.0
    %3736 = vmatpush1.msra.mxu0 0.0
    %3737 = vmatprep.subr.mxu0 0.0
    %3738 = vmatpush1.msra.mxu0 0.0
    %3739 = vmatprep.subr.mxu0 0.0
    %3740 = vmatpush1.msra.mxu0 0.0
    %3741 = vmatprep.subr.mxu0 0.0
    %3742 = vmatpush1.msra.mxu0 0.0
    %3743 = vmatprep.subr.mxu0 0.0
    %3744 = vmatpush1.msra.mxu0 0.0
    %3745 = vmatprep.mubr.f32.mxu0 0.0
    %3746 = vmatmul.mubr.f32.gmra.mrb[0].mxu0 %v3679
    %v3747 = vpop.f32.mrb[0].mxu0
    %v3748 = vadd.f32 0.0, %v3747
    %v3749 = vpop.f32.mrb[0].mxu0
    %3750 = vdwg.mxu0
    %v3751 = vadd.f32 %v2261, %v3748
    %v3752 = vxor.u32 %v3751, 2147483648
    %v3753 = vmul.f32 %v3752, 1.442695
    %v3754 = vpow.pop %v3753
    %v3755 = vadd.f32 %v3754, 1.0
    %v3756 = vrcp.pop %v3755
    %v3757 = vmul.f32 1.0, %v3756
    %v3758 = vtanh.pop %v3751
    %v3759 = vmul.f32 %v3757, %v3567
    %3761 = vrot.lane.b32.xlu0 %v3758, 32
    %v3762 = vpop.permute.xlu0 %3761
    %v3764 = vmul.f32 %v3757, %v3762
    %3766 = vrot.lane.b32.xlu0 %v3764, 32
    %v3767 = vpop.permute.xlu0 %3766
    %v3769 = vadd.f32 %v3759, %v3767
    %v3770 = vtanh.pop %v3769
    %3772 = vrot.lane.b32.xlu0 %v3770, 32
    %v3773 = vpop.permute.xlu0 %3772
    %v3775 = vmul.f32 %v3757, %v3773
    %3777 = vrot.lane.b32.xlu0 %v3673, 64
    %v3778 = vpop.permute.xlu0 %3777
    %v3779 = vsel %vm297, %v3778, 0
    %3781 = vmatprep.subr.mxu0 0.0
    %3782 = vmatpush1.msra.mxu0 %v2268
    %3783 = vmatprep.subr.mxu0 0.0
    %3784 = vmatpush1.msra.mxu0 %v2269
    %3785 = vmatprep.subr.mxu0 0.0
    %3786 = vmatpush1.msra.mxu0 %v2270
    %3787 = vmatprep.subr.mxu0 0.0
    %3788 = vmatpush1.msra.mxu0 %v2271
    %3789 = vmatprep.subr.mxu0 0.0
    %3790 = vmatpush1.msra.mxu0 0.0
    %3791 = vmatprep.subr.mxu0 0.0
    %3792 = vmatpush1.msra.mxu0 0.0
    %3793 = vmatprep.subr.mxu0 0.0
    %3794 = vmatpush1.msra.mxu0 0.0
    %3795 = vmatprep.subr.mxu0 0.0
    %3796 = vmatpush1.msra.mxu0 0.0
    %3797 = vmatprep.subr.mxu0 0.0
    %3798 = vmatpush1.msra.mxu0 0.0
    %3799 = vmatprep.subr.mxu0 0.0
    %3800 = vmatpush1.msra.mxu0 0.0
    %3801 = vmatprep.subr.mxu0 0.0
    %3802 = vmatpush1.msra.mxu0 0.0
    %3803 = vmatprep.subr.mxu0 0.0
    %3804 = vmatpush1.msra.mxu0 0.0
    %3805 = vmatprep.subr.mxu0 0.0
    %3806 = vmatpush1.msra.mxu0 0.0
    %3807 = vmatprep.subr.mxu0 0.0
    %3808 = vmatpush1.msra.mxu0 0.0
    %3809 = vmatprep.subr.mxu0 0.0
    %3810 = vmatpush1.msra.mxu0 0.0
    %3811 = vmatprep.subr.mxu0 0.0
    %3812 = vmatpush1.msra.mxu0 0.0
    %3813 = vmatprep.subr.mxu0 0.0
    %3814 = vmatpush1.msra.mxu0 0.0
    %3815 = vmatprep.subr.mxu0 0.0
    %3816 = vmatpush1.msra.mxu0 0.0
    %3817 = vmatprep.subr.mxu0 0.0
    %3818 = vmatpush1.msra.mxu0 0.0
    %3819 = vmatprep.subr.mxu0 0.0
    %3820 = vmatpush1.msra.mxu0 0.0
    %3821 = vmatprep.subr.mxu0 0.0
    %3822 = vmatpush1.msra.mxu0 0.0
    %3823 = vmatprep.subr.mxu0 0.0
    %3824 = vmatpush1.msra.mxu0 0.0
    %3825 = vmatprep.subr.mxu0 0.0
    %3826 = vmatpush1.msra.mxu0 0.0
    %3827 = vmatprep.subr.mxu0 0.0
    %3828 = vmatpush1.msra.mxu0 0.0
    %3829 = vmatprep.subr.mxu0 0.0
    %3830 = vmatpush1.msra.mxu0 0.0
    %3831 = vmatprep.subr.mxu0 0.0
    %3832 = vmatpush1.msra.mxu0 0.0
    %3833 = vmatprep.subr.mxu0 0.0
    %3834 = vmatpush1.msra.mxu0 0.0
    %3835 = vmatprep.subr.mxu0 0.0
    %3836 = vmatpush1.msra.mxu0 0.0
    %3837 = vmatprep.subr.mxu0 0.0
    %3838 = vmatpush1.msra.mxu0 0.0
    %3839 = vmatprep.subr.mxu0 0.0
    %3840 = vmatpush1.msra.mxu0 0.0
    %3841 = vmatprep.subr.mxu0 0.0
    %3842 = vmatpush1.msra.mxu0 0.0
    %3843 = vmatprep.subr.mxu0 0.0
    %3844 = vmatpush1.msra.mxu0 0.0
    %3845 = vmatprep.mubr.f32.mxu0 0.0
    %3846 = vmatmul.mubr.f32.gmra.mrb[0].mxu0 %v3779
    %v3847 = vpop.f32.mrb[0].mxu0
    %v3848 = vadd.f32 0.0, %v3847
    %v3849 = vpop.f32.mrb[0].mxu0
    %3850 = vdwg.mxu0
    %v3851 = vadd.f32 %v2248, %v3848
    %v3852 = vxor.u32 %v3851, 2147483648
    %v3853 = vmul.f32 %v3852, 1.442695
    %v3854 = vpow.pop %v3853
    %v3855 = vadd.f32 %v3854, 1.0
    %v3856 = vrcp.pop %v3855
    %v3857 = vmul.f32 1.0, %v3856
    %v3858 = vtanh.pop %v3851
    %v3859 = vmul.f32 %v3857, %v3667
    %3861 = vrot.lane.b32.xlu0 %v3858, 32
    %v3862 = vpop.permute.xlu0 %3861
    %v3864 = vmul.f32 %v3857, %v3862
    %3866 = vrot.lane.b32.xlu0 %v3864, 32
    %v3867 = vpop.permute.xlu0 %3866
    %v3869 = vadd.f32 %v3859, %v3867
    %v3870 = vtanh.pop %v3869
    %3872 = vrot.lane.b32.xlu0 %v3870, 32
    %v3873 = vpop.permute.xlu0 %3872
    %v3875 = vmul.f32 %v3857, %v3873
    %v3876 = vadd.f32 %v3674, %v3775
    %v3877 = vadd.f32 %v3675, %v3875
    %v3878 = vmul.f32 %v3876, 0.125
    %v3879 = vmul.f32 %v3877, 0.125
    %v3880 = vld [vmem:[%s8] sm:$0xff]
    %v3881 = vld [vmem:[%s8 + $0x8] sm:$0xff]
    %v3882 = vld [vmem:[%s8 + $0x10] sm:$0xff]
    %v3883 = vld [vmem:[%s8 + $0x18] sm:$0xff]
    %v3884 = vld [vmem:[#allocation9] sm:$0xff]
    %v3885 = vld [vmem:[#allocation9 + $0x8] sm:$0xff]
    %v3886 = vld [vmem:[#allocation9 + $0x10] sm:$0xff]
    %v3887 = vld [vmem:[#allocation9 + $0x18] sm:$0xff]
    %3889 = vrot.lane.b32.xlu0 %v3879, 64
    %v3890 = vpop.permute.xlu0 %3889
    %v3891 = vsel %vm297, %v3890, 0
    %3893 = vmatprep.subr.mxu0 0.0
    %3894 = vmatpush1.msra.mxu0 %v3884
    %3895 = vmatprep.subr.mxu0 0.0
    %3896 = vmatpush1.msra.mxu0 %v3885
    %3897 = vmatprep.subr.mxu0 0.0
    %3898 = vmatpush1.msra.mxu0 %v3886
    %3899 = vmatprep.subr.mxu0 0.0
    %3900 = vmatpush1.msra.mxu0 %v3887
    %3901 = vmatprep.subr.mxu0 0.0
    %3902 = vmatpush1.msra.mxu0 0.0
    %3903 = vmatprep.subr.mxu0 0.0
    %3904 = vmatpush1.msra.mxu0 0.0
    %3905 = vmatprep.subr.mxu0 0.0
    %3906 = vmatpush1.msra.mxu0 0.0
    %3907 = vmatprep.subr.mxu0 0.0
    %3908 = vmatpush1.msra.mxu0 0.0
    %3909 = vmatprep.subr.mxu0 0.0
    %3910 = vmatpush1.msra.mxu0 0.0
    %3911 = vmatprep.subr.mxu0 0.0
    %3912 = vmatpush1.msra.mxu0 0.0
    %3913 = vmatprep.subr.mxu0 0.0
    %3914 = vmatpush1.msra.mxu0 0.0
    %3915 = vmatprep.subr.mxu0 0.0
    %3916 = vmatpush1.msra.mxu0 0.0
    %3917 = vmatprep.subr.mxu0 0.0
    %3918 = vmatpush1.msra.mxu0 0.0
    %3919 = vmatprep.subr.mxu0 0.0
    %3920 = vmatpush1.msra.mxu0 0.0
    %3921 = vmatprep.subr.mxu0 0.0
    %3922 = vmatpush1.msra.mxu0 0.0
    %3923 = vmatprep.subr.mxu0 0.0
    %3924 = vmatpush1.msra.mxu0 0.0
    %3925 = vmatprep.subr.mxu0 0.0
    %3926 = vmatpush1.msra.mxu0 0.0
    %3927 = vmatprep.subr.mxu0 0.0
    %3928 = vmatpush1.msra.mxu0 0.0
    %3929 = vmatprep.subr.mxu0 0.0
    %3930 = vmatpush1.msra.mxu0 0.0
    %3931 = vmatprep.subr.mxu0 0.0
    %3932 = vmatpush1.msra.mxu0 0.0
    %3933 = vmatprep.subr.mxu0 0.0
    %3934 = vmatpush1.msra.mxu0 0.0
    %3935 = vmatprep.subr.mxu0 0.0
    %3936 = vmatpush1.msra.mxu0 0.0
    %3937 = vmatprep.subr.mxu0 0.0
    %3938 = vmatpush1.msra.mxu0 0.0
    %3939 = vmatprep.subr.mxu0 0.0
    %3940 = vmatpush1.msra.mxu0 0.0
    %3941 = vmatprep.subr.mxu0 0.0
    %3942 = vmatpush1.msra.mxu0 0.0
    %3943 = vmatprep.subr.mxu0 0.0
    %3944 = vmatpush1.msra.mxu0 0.0
    %3945 = vmatprep.subr.mxu0 0.0
    %3946 = vmatpush1.msra.mxu0 0.0
    %3947 = vmatprep.subr.mxu0 0.0
    %3948 = vmatpush1.msra.mxu0 0.0
    %3949 = vmatprep.subr.mxu0 0.0
    %3950 = vmatpush1.msra.mxu0 0.0
    %3951 = vmatprep.subr.mxu0 0.0
    %3952 = vmatpush1.msra.mxu0 0.0
    %3953 = vmatprep.subr.mxu0 0.0
    %3954 = vmatpush1.msra.mxu0 0.0
    %3955 = vmatprep.subr.mxu0 0.0
    %3956 = vmatpush1.msra.mxu0 0.0
    %3957 = vmatprep.mubr.f32.mxu0 0.0
    %3958 = vmatmul.mubr.f32.gmra.mrb[0].mxu0 %v3891
    %v3959 = vpop.f32.mrb[0].mxu0
    %v3960 = vadd.f32 0.0, %v3959
    %v3961 = vpop.f32.mrb[0].mxu0
    %3962 = vdwg.mxu0
    %3964 = vrot.lane.b32.xlu0 %v3878, 64
    %v3965 = vpop.permute.xlu0 %3964
    %v3966 = vsel %vm297, %v3965, 0
    %3968 = vmatprep.subr.mxu0 0.0
    %3969 = vmatpush1.msra.mxu0 %v3880
    %3970 = vmatprep.subr.mxu0 0.0
    %3971 = vmatpush1.msra.mxu0 %v3881
    %3972 = vmatprep.subr.mxu0 0.0
    %3973 = vmatpush1.msra.mxu0 %v3882
    %3974 = vmatprep.subr.mxu0 0.0
    %3975 = vmatpush1.msra.mxu0 %v3883
    %3976 = vmatprep.subr.mxu0 0.0
    %3977 = vmatpush1.msra.mxu0 0.0
    %3978 = vmatprep.subr.mxu0 0.0
    %3979 = vmatpush1.msra.mxu0 0.0
    %3980 = vmatprep.subr.mxu0 0.0
    %3981 = vmatpush1.msra.mxu0 0.0
    %3982 = vmatprep.subr.mxu0 0.0
    %3983 = vmatpush1.msra.mxu0 0.0
    %3984 = vmatprep.subr.mxu0 0.0
    %3985 = vmatpush1.msra.mxu0 0.0
    %3986 = vmatprep.subr.mxu0 0.0
    %3987 = vmatpush1.msra.mxu0 0.0
    %3988 = vmatprep.subr.mxu0 0.0
    %3989 = vmatpush1.msra.mxu0 0.0
    %3990 = vmatprep.subr.mxu0 0.0
    %3991 = vmatpush1.msra.mxu0 0.0
    %3992 = vmatprep.subr.mxu0 0.0
    %3993 = vmatpush1.msra.mxu0 0.0
    %3994 = vmatprep.subr.mxu0 0.0
    %3995 = vmatpush1.msra.mxu0 0.0
    %3996 = vmatprep.subr.mxu0 0.0
    %3997 = vmatpush1.msra.mxu0 0.0
    %3998 = vmatprep.subr.mxu0 0.0
    %3999 = vmatpush1.msra.mxu0 0.0
    %4000 = vmatprep.subr.mxu0 0.0
    %4001 = vmatpush1.msra.mxu0 0.0
    %4002 = vmatprep.subr.mxu0 0.0
    %4003 = vmatpush1.msra.mxu0 0.0
    %4004 = vmatprep.subr.mxu0 0.0
    %4005 = vmatpush1.msra.mxu0 0.0
    %4006 = vmatprep.subr.mxu0 0.0
    %4007 = vmatpush1.msra.mxu0 0.0
    %4008 = vmatprep.subr.mxu0 0.0
    %4009 = vmatpush1.msra.mxu0 0.0
    %4010 = vmatprep.subr.mxu0 0.0
    %4011 = vmatpush1.msra.mxu0 0.0
    %4012 = vmatprep.subr.mxu0 0.0
    %4013 = vmatpush1.msra.mxu0 0.0
    %4014 = vmatprep.subr.mxu0 0.0
    %4015 = vmatpush1.msra.mxu0 0.0
    %4016 = vmatprep.subr.mxu0 0.0
    %4017 = vmatpush1.msra.mxu0 0.0
    %4018 = vmatprep.subr.mxu0 0.0
    %4019 = vmatpush1.msra.mxu0 0.0
    %4020 = vmatprep.subr.mxu0 0.0
    %4021 = vmatpush1.msra.mxu0 0.0
    %4022 = vmatprep.subr.mxu0 0.0
    %4023 = vmatpush1.msra.mxu0 0.0
    %4024 = vmatprep.subr.mxu0 0.0
    %4025 = vmatpush1.msra.mxu0 0.0
    %4026 = vmatprep.subr.mxu0 0.0
    %4027 = vmatpush1.msra.mxu0 0.0
    %4028 = vmatprep.subr.mxu0 0.0
    %4029 = vmatpush1.msra.mxu0 0.0
    %4030 = vmatprep.subr.mxu0 0.0
    %4031 = vmatpush1.msra.mxu0 0.0
    %4032 = vmatprep.mubr.f32.mxu0 0.0
    %4033 = vmatmul.mubr.f32.gmra.mrb[0].mxu0 %v3966
    %v4034 = vpop.f32.mrb[0].mxu0
    %v4035 = vadd.f32 %v3960, %v4034
    %v4036 = vpop.f32.mrb[0].mxu0
    %4037 = vdwg.mxu0
    %v4038 = vld [vmem:[%s10] sm:$0x1]
    %v4040 = vlaneseq
    %v4041 = vshrl.u32 %v4040, 7
    %v4042 = vsub.s32 0, %v4041
    %v4043 = vrot.slane %v4038, %v4042
    %v4045 = vadd.f32 %v4035, %v4043
    %v4046 = vmax.f32 %v4045, 0.0
    %v4047 = vld [vmem:[%s13] sm:$0x1]
    %v4049 = vlaneseq
    %v4050 = vshrl.u32 %v4049, 7
    %v4051 = vsub.s32 0, %v4050
    %v4052 = vrot.slane %v4047, %v4051
    %v4054 = vsub.f32 %v4046, %v4052
    %v4055 = vld [vmem:[%s14] sm:$0x1]
    %v4056 = vadd.f32 %v4055, 1e-05
    %v4057 = vrsqrt.pop %v4056
    %v4059 = vlaneseq
    %v4060 = vshrl.u32 %v4059, 7
    %v4061 = vsub.s32 0, %v4060
    %v4062 = vrot.slane %v4057, %v4061
    %v4064 = vmul.f32 %v4054, %v4062
    %v4065 = vld [vmem:[%s11] sm:$0x1]
    %v4067 = vlaneseq
    %v4068 = vshrl.u32 %v4067, 7
    %v4069 = vsub.s32 0, %v4068
    %v4070 = vrot.slane %v4065, %v4069
    %v4072 = vmul.f32 %v4064, %v4070
    %v4073 = vld [vmem:[%s12] sm:$0x1]
    %v4075 = vlaneseq
    %v4076 = vshrl.u32 %v4075, 7
    %v4077 = vsub.s32 0, %v4076
    %v4078 = vrot.slane %v4073, %v4077
    %v4080 = vadd.f32 %v4072, %v4078
    %v4081 = vld [vmem:[#allocation10] sm:$0xff]
    %v4082 = vld [vmem:[#allocation10 + $0x8] sm:$0xff]
    %v4083 = vld [vmem:[#allocation10 + $0x10] sm:$0xff]
    %v4084 = vld [vmem:[#allocation10 + $0x18] sm:$0xff]
    %v4085 = vld [vmem:[#allocation12] sm:$0x1]
    %v4087 = vlaneseq
    %v4088 = vshrl.u32 %v4087, 7
    %v4089 = vsub.s32 0, %v4088
    %v4090 = vrot.slane %v4085, %v4089
    %v4093 = vsel %vm297, %v4080, 0
    %4095 = vmatprep.subr.mxu0 0.0
    %4096 = vmatpush1.msra.mxu0 %v4081
    %4097 = vmatprep.subr.mxu0 0.0
    %4098 = vmatpush1.msra.mxu0 %v4082
    %4099 = vmatprep.subr.mxu0 0.0
    %4100 = vmatpush1.msra.mxu0 %v4083
    %4101 = vmatprep.subr.mxu0 0.0
    %4102 = vmatpush1.msra.mxu0 %v4084
    %4103 = vmatprep.subr.mxu0 0.0
    %4104 = vmatpush1.msra.mxu0 0.0
    %4105 = vmatprep.subr.mxu0 0.0
    %4106 = vmatpush1.msra.mxu0 0.0
    %4107 = vmatprep.subr.mxu0 0.0
    %4108 = vmatpush1.msra.mxu0 0.0
    %4109 = vmatprep.subr.mxu0 0.0
    %4110 = vmatpush1.msra.mxu0 0.0
    %4111 = vmatprep.subr.mxu0 0.0
    %4112 = vmatpush1.msra.mxu0 0.0
    %4113 = vmatprep.subr.mxu0 0.0
    %4114 = vmatpush1.msra.mxu0 0.0
    %4115 = vmatprep.subr.mxu0 0.0
    %4116 = vmatpush1.msra.mxu0 0.0
    %4117 = vmatprep.subr.mxu0 0.0
    %4118 = vmatpush1.msra.mxu0 0.0
    %4119 = vmatprep.subr.mxu0 0.0
    %4120 = vmatpush1.msra.mxu0 0.0
    %4121 = vmatprep.subr.mxu0 0.0
    %4122 = vmatpush1.msra.mxu0 0.0
    %4123 = vmatprep.subr.mxu0 0.0
    %4124 = vmatpush1.msra.mxu0 0.0
    %4125 = vmatprep.subr.mxu0 0.0
    %4126 = vmatpush1.msra.mxu0 0.0
    %4127 = vmatprep.subr.mxu0 0.0
    %4128 = vmatpush1.msra.mxu0 0.0
    %4129 = vmatprep.subr.mxu0 0.0
    %4130 = vmatpush1.msra.mxu0 0.0
    %4131 = vmatprep.subr.mxu0 0.0
    %4132 = vmatpush1.msra.mxu0 0.0
    %4133 = vmatprep.subr.mxu0 0.0
    %4134 = vmatpush1.msra.mxu0 0.0
    %4135 = vmatprep.subr.mxu0 0.0
    %4136 = vmatpush1.msra.mxu0 0.0
    %4137 = vmatprep.subr.mxu0 0.0
    %4138 = vmatpush1.msra.mxu0 0.0
    %4139 = vmatprep.subr.mxu0 0.0
    %4140 = vmatpush1.msra.mxu0 0.0
    %4141 = vmatprep.subr.mxu0 0.0
    %4142 = vmatpush1.msra.mxu0 0.0
    %4143 = vmatprep.subr.mxu0 0.0
    %4144 = vmatpush1.msra.mxu0 0.0
    %4145 = vmatprep.subr.mxu0 0.0
    %4146 = vmatpush1.msra.mxu0 0.0
    %4147 = vmatprep.subr.mxu0 0.0
    %4148 = vmatpush1.msra.mxu0 0.0
    %4149 = vmatprep.subr.mxu0 0.0
    %4150 = vmatpush1.msra.mxu0 0.0
    %4151 = vmatprep.subr.mxu0 0.0
    %4152 = vmatpush1.msra.mxu0 0.0
    %4153 = vmatprep.subr.mxu0 0.0
    %4154 = vmatpush1.msra.mxu0 0.0
    %4155 = vmatprep.subr.mxu0 0.0
    %4156 = vmatpush1.msra.mxu0 0.0
    %4157 = vmatprep.subr.mxu0 0.0
    %4158 = vmatpush1.msra.mxu0 0.0
    %4159 = vmatprep.mubr.f32.mxu0 0.0
    %4160 = vmatmul.mubr.f32.gmra.mrb[0].mxu0 %v4093
    %v4161 = vpop.f32.mrb[0].mxu0
    %v4162 = vadd.f32 %v4090, %v4161
    %v4163 = vpop.f32.mrb[0].mxu0
    %4164 = vdwg.mxu0
    %s4165 = sld [smem:[#allocation4]]
    %s4166 = smax.f32 %s4165, 1e-06
    %v4167 = vstv %s4166
    %v4168 = vrcp.pop %v4167
    %v4169 = vmul.f32 %v4162, %v4168
    %4170 = vst [vmem:[%s18] sm:$0xff] %v4169
    // Predicated region
    $region94: #{af_prediction_forward.1} parent=1 // pred_check
      _
    $region95: #{af_prediction_forward.1} parent=1 // pred_check_branch
      %4172 = sbr.rel (0) target = $region97
    $region96: #{af_prediction_forward.1} parent=1 // pred_region
      _
    $region97: #{af_prediction_forward.1} parent=1 // pred_fallthru
      _
    // Predicated region
    $region98: #{af_prediction_forward.1} parent=1 // pred_check
      _
    $region99: #{af_prediction_forward.1} parent=1 // pred_check_branch
      %4174 = sbr.rel (0) target = $region101
    $region100: #{af_prediction_forward.1} parent=1 // pred_region
      _
    $region101: #{af_prediction_forward.1} parent=1 // pred_fallthru
      _
    %4175 = vsyncpa [#allocation6], 1
    %4176 = vsyncpa [#allocation8], 1
    %4177 = vsyncpa [#allocation11], 1

</llo_original>
